<compile_context>
chip_gen: v7x
topology: tpu7x:2x2x1
jax: 0.10.0
libtpu: 0.0.40
codegen_flags: <defaults>
</compile_context>

<pallas_src>
import functools

import jax
import jax.numpy as jnp
from jax import lax
from jax.experimental import pallas as pl
from jax.experimental.pallas import tpu as pltpu

LN_EPS = 1e-5                 # nn.LayerNorm default
MASK_FILL = -1e-20            # literal masked_fill value from the reference

_ROW_TILE = 512               # FFN / logits row tile (v6e/v5e sweet spot)
_VOCAB_TILE = 1024            # logits lane tile
_Q_TILE_CANDIDATES = (256, 128, 64, 32, 16, 8)
_H_TILE_CANDIDATES = (1024, 512, 256, 128)


@functools.lru_cache(maxsize=1)
def _vmem_limit_bytes():
    """~80% of this chip's physical VMEM (v7x 64MiB -> ~51MiB, v6e/v5e 128MiB -> ~102MiB)."""
    cap = 64 * 1024 * 1024
    try:
        info = pltpu.get_tpu_info()
        cap = int(getattr(info, "vmem_capacity_bytes", cap))
    except Exception:
        pass
    return int(cap * 0.8)


def _pick_tile(n, candidates):
    for t in candidates:
        if n % t == 0:
            return t
    return n                                  # fall back to full extent


def _layer_norm(z, gamma, beta):
    # Biased variance over the last dim (PyTorch LayerNorm semantics), f32 math.
    mean = jnp.mean(z, axis=-1, keepdims=True)
    var = jnp.mean((z - mean) ** 2, axis=-1, keepdims=True)
    return (z - mean) * lax.rsqrt(var + LN_EPS) * gamma + beta


# ---------------------------------------------------------------------------
# Fused attention block kernel (one batch element x one q-tile per grid step):
#   out = LayerNorm( softmax(mask(Q K^T) / sqrt(dh)) V @ Wo + bo + x_q )
# Weights are pre-split per head: Wq/Wk/Wv [heads, E, dh], Wo [heads, dh, E].
# K/V are processed in chunks with an online softmax (flash-style) so live
# values stay bounded for long sequences.
# ---------------------------------------------------------------------------
def _attn_block_kernel(xq_ref, xkv_ref, wq_ref, wk_ref, wv_ref, wo_ref, bo_ref,
                       m_ref, g_ref, b_ref, o_ref, *, heads, kv_chunk):
    tq, e = xq_ref.shape[1], xq_ref.shape[2]
    lk = xkv_ref.shape[1]
    dh = e // heads
    scale = dh ** -0.5
    # The fill is scaled like q so the result matches the reference's
    # mask-then-scale ordering.
    fill = jnp.float32(MASK_FILL * scale)

    xq = xq_ref[0]                              # [tq, E]  bf16 (also residual)
    xkv = xkv_ref[0]                            # [Lk, E]  bf16
    m_f = m_ref[0].astype(jnp.float32)          # [1 or tq, Lk], 0/1 (f32 compares)

    chunk_starts = tuple(range(0, lk, kv_chunk))

    acc_out = jnp.zeros((tq, e), jnp.float32)   # sum_h ctx_h @ Wo[h]
    for h in range(heads):
        qh = (jnp.dot(xq, wq_ref[h], preferred_element_type=jnp.float32)
              * scale).astype(jnp.bfloat16)                       # [tq, dh]
        m_run = jnp.full((tq, 1), -jnp.inf, jnp.float32)
        l_run = jnp.zeros((tq, 1), jnp.float32)
        ctx = jnp.zeros((tq, dh), jnp.float32)
        for k0 in chunk_starts:                                   # static loop
            tk = min(kv_chunk, lk - k0)
            xkv_c = xkv[k0:k0 + tk, :]                            # [tk, E] bf16
            kh = jnp.dot(xkv_c, wk_ref[h], preferred_element_type=jnp.float32)
            vh = jnp.dot(xkv_c, wv_ref[h], preferred_element_type=jnp.float32)
            # Contract on the last dim of both operands (no k.T materialization).
            s = lax.dot_general(qh, kh.astype(jnp.bfloat16),
                                (((1,), (1,)), ((), ())),
                                preferred_element_type=jnp.float32)  # [tq, tk]
            s = jnp.where(m_f[:, k0:k0 + tk] == 0.0, fill, s)
            m_new = jnp.maximum(m_run, jnp.max(s, axis=-1, keepdims=True))
            alpha = jnp.exp(m_run - m_new)
            p = jnp.exp(s - m_new)
            l_run = alpha * l_run + jnp.sum(p, axis=-1, keepdims=True)
            ctx = alpha * ctx + jnp.dot(p.astype(jnp.bfloat16),
                                        vh.astype(jnp.bfloat16),
                                        preferred_element_type=jnp.float32)
            m_run = m_new
        ctx = ctx * pl.reciprocal(l_run, approx=True)             # EUP slot
        acc_out = acc_out + jnp.dot(ctx.astype(jnp.bfloat16), wo_ref[h],
                                    preferred_element_type=jnp.float32)

    z = acc_out + bo_ref[...] + xq.astype(jnp.float32)            # f32 residual
    o_ref[0] = _layer_norm(z, g_ref[...], b_ref[...]).astype(o_ref.dtype)


def attention_block(xq, xkv, mask3, ap, ln_g, ln_b, heads, kv_chunk):
    """xq: [N, Lq, E], xkv: [N, Lk, E], mask3: [N, 1 or Lq, Lk] int8 -> bf16 [N, Lq, E]."""
    N, Lq, E = xq.shape
    Lk = xkv.shape[1]
    dh = E // heads
    xq = xq.astype(jnp.bfloat16)
    xkv = xkv.astype(jnp.bfloat16)

    tq = _pick_tile(Lq, _Q_TILE_CANDIDATES)
    n_q = Lq // tq

    rows = mask3.shape[1]
    if rows == 1:
        m_spec = pl.BlockSpec((1, 1, Lk), lambda b, qi: (b, 0, 0))
    else:
        m_spec = pl.BlockSpec((1, tq, Lk), lambda b, qi: (b, qi, 0))

    w_in_spec = pl.BlockSpec((heads, E, dh), lambda b, qi: (0, 0, 0))
    w_out_spec = pl.BlockSpec((heads, dh, E), lambda b, qi: (0, 0, 0))
    vec_spec = pl.BlockSpec((1, E), lambda b, qi: (0, 0))

    kernel = functools.partial(_attn_block_kernel, heads=heads,
                               kv_chunk=min(kv_chunk, Lk))
    return pl.pallas_call(
        kernel,
        out_shape=jax.ShapeDtypeStruct((N, Lq, E), jnp.bfloat16),
        grid=(N, n_q),
        in_specs=[
            pl.BlockSpec((1, tq, E), lambda b, qi: (b, qi, 0)),   # x_q (residual)
            pl.BlockSpec((1, Lk, E), lambda b, qi: (b, 0, 0)),    # x_kv
            w_in_spec, w_in_spec, w_in_spec,                      # Wq, Wk, Wv
            w_out_spec,                                           # Wo
            vec_spec,                                             # bo
            m_spec,                                               # mask (int8)
            vec_spec, vec_spec,                                   # LN gamma, beta
        ],
        out_specs=pl.BlockSpec((1, tq, E), lambda b, qi: (b, qi, 0)),
        compiler_params=pltpu.CompilerParams(
            dimension_semantics=("parallel", "parallel"),
            vmem_limit_bytes=_vmem_limit_bytes(),
        ),
    )(xq, xkv, ap["Wq"], ap["Wk"], ap["Wv"], ap["Wo"], ap["bo"], mask3, ln_g, ln_b)


# ---------------------------------------------------------------------------
# Fused FFN block kernel, tiled over rows of [M, E] and over the hidden dim H
# (reduction axis with an f32 VMEM accumulator, v7x-safe weight residency):
#   out = LayerNorm( relu(x W1 + b1) W2 + b2 + x )
# ---------------------------------------------------------------------------
def _ffn_ln_kernel(x_ref, w1_ref, b1_ref, w2_ref, b2_ref, g_ref, bt_ref, o_ref,
                   acc_ref):
    j = pl.program_id(1)

    @pl.when(j == 0)
    def _():
        acc_ref[...] = jnp.zeros_like(acc_ref)

    x = x_ref[...]                                                # [tm, E] bf16
    h = jnp.dot(x, w1_ref[...], preferred_element_type=jnp.float32) + b1_ref[...]
    h = jnp.maximum(h, 0.0)
    acc_ref[...] += jnp.dot(h.astype(jnp.bfloat16), w2_ref[...],
                            preferred_element_type=jnp.float32)

    @pl.when(j == pl.num_programs(1) - 1)
    def _():
        z = acc_ref[...] + b2_ref[...] + x.astype(jnp.float32)    # f32 residual
        o_ref[...] = _layer_norm(z, g_ref[...], bt_ref[...]).astype(o_ref.dtype)


def ffn_block(x2d, p):
    M, E = x2d.shape
    H = p["ff_w1"].shape[1]
    x2d = x2d.astype(jnp.bfloat16)
    tm = M if M <= _ROW_TILE else _ROW_TILE
    th = _pick_tile(H, _H_TILE_CANDIDATES)
    grid = (pl.cdiv(M, tm), H // th)
    return pl.pallas_call(
        _ffn_ln_kernel,
        out_shape=jax.ShapeDtypeStruct((M, E), jnp.bfloat16),
        grid=grid,
        in_specs=[
            pl.BlockSpec((tm, E), lambda i, j: (i, 0)),
            pl.BlockSpec((E, th), lambda i, j: (0, j)),
            pl.BlockSpec((1, th), lambda i, j: (0, j)),
            pl.BlockSpec((th, E), lambda i, j: (j, 0)),
            pl.BlockSpec((1, E), lambda i, j: (0, 0)),
            pl.BlockSpec((1, E), lambda i, j: (0, 0)),
            pl.BlockSpec((1, E), lambda i, j: (0, 0)),
        ],
        out_specs=pl.BlockSpec((tm, E), lambda i, j: (i, 0)),
        scratch_shapes=[pltpu.VMEM((tm, E), jnp.float32)],
        compiler_params=pltpu.CompilerParams(
            dimension_semantics=("parallel", "arbitrary"),
            vmem_limit_bytes=_vmem_limit_bytes(),
        ),
    )(x2d, p["ff_w1"], p["ff_b1"], p["ff_w2"], p["ff_b2"], p["ln2_g"], p["ln2_b"])


# ---------------------------------------------------------------------------
# Final logits projection, tiled over rows and vocab (lane-dense output tiles).
# ---------------------------------------------------------------------------
def _linear_bias_kernel(x_ref, w_ref, b_ref, o_ref):
    o_ref[...] = jnp.dot(x_ref[...], w_ref[...],
                         preferred_element_type=jnp.float32) + b_ref[...]


def logits_projection(x2d, w, b):
    M, E = x2d.shape
    V = w.shape[1]
    x2d = x2d.astype(jnp.bfloat16)
    tm = M if M <= _ROW_TILE else _ROW_TILE
    tn = V if V <= _VOCAB_TILE else _VOCAB_TILE
    grid = (pl.cdiv(M, tm), pl.cdiv(V, tn))
    return pl.pallas_call(
        _linear_bias_kernel,
        out_shape=jax.ShapeDtypeStruct((M, V), jnp.float32),
        grid=grid,
        in_specs=[
            pl.BlockSpec((tm, E), lambda i, j: (i, 0)),
            pl.BlockSpec((E, tn), lambda i, j: (0, j)),
            pl.BlockSpec((1, tn), lambda i, j: (0, j)),
        ],
        out_specs=pl.BlockSpec((tm, tn), lambda i, j: (i, j)),
        compiler_params=pltpu.CompilerParams(
            dimension_semantics=("parallel", "parallel"),
            vmem_limit_bytes=_vmem_limit_bytes(),
        ),
    )(x2d, w, b)


# ---------------------------------------------------------------------------
# Model glue (plain JAX around the fused Pallas kernels)
# ---------------------------------------------------------------------------
def _canon_mask(mask, N, Lk):
    """Compress a broadcastable mask to int8 [N, 1 or Lq, Lk] (no per-head / per-row blowup)."""
    m = jnp.asarray(mask)
    if m.ndim == 4:          # [N, 1(heads), rows, Lk]
        m = m[:, 0]
    if m.ndim == 2:          # [N, Lk]
        m = m[:, None, :]
    rows = m.shape[1]
    m = jnp.broadcast_to(m, (N, rows, Lk))
    return (m != 0).astype(jnp.int8)


def decoder_block_forward(p, x, enc, src_m, tgt_m, heads, kv_chunk):
    # x: [N, T, E] bf16, enc: [N, S, E] bf16
    N, T, E = x.shape
    # Self-attention + fc_out + residual(x) + DecoderBlock.norm (dropout = id).
    query = attention_block(x, x, tgt_m, p["self_attn"], p["ln_g"], p["ln_b"],
                            heads, kv_chunk)
    tb = p["tblock"]
    # Cross-attention + fc_out + residual(query) + TransformerBlock.norm1.
    x1 = attention_block(query, enc, src_m, tb["attn"], tb["ln1_g"], tb["ln1_b"],
                         heads, kv_chunk)
    # Feed-forward + residual(x1) + TransformerBlock.norm2.
    out2d = ffn_block(x1.reshape(N * T, E), tb)
    return out2d.reshape(N, T, E)


def decoder_forward(params, x_tokens, enc_out, src_mask, tgt_mask, heads,
                    kv_chunk=512):
    N, T = x_tokens.shape
    S = enc_out.shape[1]
    E = params["word_emb"].shape[1]

    # Embedding lookups (gather) stay in XLA; dropout = identity (eval).
    # Inter-kernel activations are bf16.
    h = (params["word_emb"][x_tokens] + params["pos_emb"][:T][None, :, :]
         ).astype(jnp.bfloat16)                                   # [N, T, E]
    enc16 = enc_out.astype(jnp.bfloat16)

    src_m = _canon_mask(src_mask, N, S)   # [N, 1, S]  int8 (row broadcast in-kernel)
    tgt_m = _canon_mask(tgt_mask, N, T)   # [N, T, T]  int8

    for lp in params["layers"]:
        h = decoder_block_forward(lp, h, enc16, src_m, tgt_m, heads, kv_chunk)

    logits = logits_projection(h.reshape(N * T, E),
                               params["fc_out_w"], params["fc_out_b"])
    V = params["fc_out_w"].shape[1]
    return logits.reshape(N, T, V)


# ---------------------------------------------------------------------------
# Deterministic parameter init.  Matmul weights stored bf16 (MXU); attention
# projections are pre-split per head: Wq/Wk/Wv -> [heads, E, dh], Wo -> [heads, dh, E].
# (A PyTorch [E_out, E_in] Linear weight maps via w.T then these splits.)
# ---------------------------------------------------------------------------
def _split_wqkv(w, heads):   # [E_in, E_out] -> [heads, E_in, dh]
    E = w.shape[0]
    dh = E // heads
    return jnp.transpose(w.reshape(E, heads, dh), (1, 0, 2))


def _split_wo(w, heads):     # [E_in, E_out] -> [heads, dh, E_out]
    E = w.shape[0]
    dh = E // heads
    return w.reshape(heads, dh, E)


def init_params(key, vocab, embed, num_layers, heads, fwd_exp, max_len):
    assert embed % heads == 0

    def nrm(k, shape, scale=0.02):
        return scale * jax.random.normal(k, shape, dtype=jnp.float32)

    keys = iter(jax.random.split(key, 8 + num_layers * 32))
    bf16 = jnp.bfloat16

    def attn_params():
        return {
            "Wq": _split_wqkv(nrm(next(keys), (embed, embed)), heads).astype(bf16),
            "Wk": _split_wqkv(nrm(next(keys), (embed, embed)), heads).astype(bf16),
            "Wv": _split_wqkv(nrm(next(keys), (embed, embed)), heads).astype(bf16),
            "Wo": _split_wo(nrm(next(keys), (embed, embed)), heads).astype(bf16),
            "bo": jnp.zeros((1, embed), jnp.float32),
        }

    hidden = fwd_exp * embed
    layers = []
    for _ in range(num_layers):
        layers.append({
            "self_attn": attn_params(),
            "ln_g": jnp.ones((1, embed), jnp.float32),
            "ln_b": jnp.zeros((1, embed), jnp.float32),
            "tblock": {
                "attn": attn_params(),
                "ln1_g": jnp.ones((1, embed), jnp.float32),
                "ln1_b": jnp.zeros((1, embed), jnp.float32),
                "ln2_g": jnp.ones((1, embed), jnp.float32),
                "ln2_b": jnp.zeros((1, embed), jnp.float32),
                "ff_w1": nrm(next(keys), (embed, hidden)).astype(bf16),
                "ff_b1": jnp.zeros((1, hidden), jnp.float32),
                "ff_w2": nrm(next(keys), (hidden, embed)).astype(bf16),
                "ff_b2": jnp.zeros((1, embed), jnp.float32),
            },
        })

    return {
        "word_emb": nrm(next(keys), (vocab, embed)),
        "pos_emb": nrm(next(keys), (max_len, embed)),
        "layers": layers,
        "fc_out_w": nrm(next(keys), (embed, vocab)).astype(bf16),
        "fc_out_b": jnp.zeros((1, vocab), jnp.float32),
    }


# ---------------------------------------------------------------------------
if __name__ == "__main__":
    def run_case(vocab, embed, num_layers, heads, fwd_exp, max_len, N, T, S,
                 kv_chunk):
        root = jax.random.PRNGKey(0)
        k_par, k_tok, k_enc = jax.random.split(root, 3)
        params = init_params(k_par, vocab, embed, num_layers, heads, fwd_exp,
                             max_len)
        x_tokens = jax.random.randint(k_tok, (N, T), 0, vocab, dtype=jnp.int32)
        enc_out = jax.random.normal(k_enc, (N, S, embed), dtype=jnp.float32)
        src_mask = jnp.ones((N, 1, 1, S), dtype=jnp.float32)
        tgt_mask = jnp.broadcast_to(
            jnp.tril(jnp.ones((T, T), dtype=jnp.float32))[None, None, :, :],
            (N, 1, T, T))
        fwd = jax.jit(functools.partial(decoder_forward, heads=heads,
                                        kv_chunk=kv_chunk))
        logits = fwd(params, x_tokens, enc_out, src_mask, tgt_mask)
        jax.block_until_ready(logits)
        assert logits.shape == (N, T, vocab)
        assert bool(jnp.all(jnp.isfinite(logits)))
        return logits

    # Case A: small config at the module's example scale (dh=8, single KV chunk).
    run_case(vocab=16, embed=32, num_layers=2, heads=4, fwd_exp=2, max_len=16,
             N=2, T=8, S=8, kv_chunk=512)
    # Case B: exercises the realistic-model paths: per-head dh=128 projections,
    # q-tiling at N=1 (second parallel axis), multi-chunk online softmax
    # (kv_chunk=128 < Lk) and the H-tiled FFN reduction (H=1024, th=512).
    run_case(vocab=512, embed=256, num_layers=1, heads=2, fwd_exp=4, max_len=512,
             N=1, T=512, S=256, kv_chunk=128)

    print("KERNEL_OK")
</pallas_src>

<mosaic_0001>
module attributes {stable_mosaic.version = 11 : i64} {
  func.func @_attn_block_kernel(%arg0: i32, %arg1: i32, %arg2: memref<1x8x32xbf16, #tpu.memory_space<vmem>>, %arg3: memref<1x8x32xbf16, #tpu.memory_space<vmem>>, %arg4: memref<4x32x8xbf16, #tpu.memory_space<vmem>>, %arg5: memref<4x32x8xbf16, #tpu.memory_space<vmem>>, %arg6: memref<4x32x8xbf16, #tpu.memory_space<vmem>>, %arg7: memref<4x8x32xbf16, #tpu.memory_space<vmem>>, %arg8: memref<1x32xf32, #tpu.memory_space<vmem>>, %arg9: memref<1x8x8xi8, #tpu.memory_space<vmem>>, %arg10: memref<1x32xf32, #tpu.memory_space<vmem>>, %arg11: memref<1x32xf32, #tpu.memory_space<vmem>>, %arg12: memref<1x8x32xbf16, #tpu.memory_space<vmem>>) attributes {dimension_semantics = [#tpu.dimension_semantics<parallel>, #tpu.dimension_semantics<parallel>], iteration_bounds = array<i64: 2, 1>, scalar_prefetch = 0 : i64, scratch_operands = 0 : i64, tpu.core_type = #tpu.core_type<tc>, window_params = [{transform_indices = @transform_0, window_bounds = array<i64: 1, 8, 32>}, {transform_indices = @transform_1, window_bounds = array<i64: 1, 8, 32>}, {pipeline_mode = #tpu.pipeline_mode<synchronous>, transform_indices = @transform_2, window_bounds = array<i64: 4, 32, 8>}, {pipeline_mode = #tpu.pipeline_mode<synchronous>, transform_indices = @transform_3, window_bounds = array<i64: 4, 32, 8>}, {pipeline_mode = #tpu.pipeline_mode<synchronous>, transform_indices = @transform_4, window_bounds = array<i64: 4, 32, 8>}, {pipeline_mode = #tpu.pipeline_mode<synchronous>, transform_indices = @transform_5, window_bounds = array<i64: 4, 8, 32>}, {pipeline_mode = #tpu.pipeline_mode<synchronous>, transform_indices = @transform_6, window_bounds = array<i64: 1, 32>}, {transform_indices = @transform_7, window_bounds = array<i64: 1, 8, 8>}, {pipeline_mode = #tpu.pipeline_mode<synchronous>, transform_indices = @transform_8, window_bounds = array<i64: 1, 32>}, {pipeline_mode = #tpu.pipeline_mode<synchronous>, transform_indices = @transform_9, window_bounds = array<i64: 1, 32>}, {transform_indices = @transform_10, window_bounds = array<i64: 1, 8, 32>}]} {
    %c0 = arith.constant 0 : index
    %c0_0 = arith.constant 0 : index
    %c0_1 = arith.constant 0 : index
    %0 = vector.load %arg2[%c0, %c0_0, %c0_1] : memref<1x8x32xbf16, #tpu.memory_space<vmem>>, vector<1x8x32xbf16>
    %1 = vector.shape_cast %0 : vector<1x8x32xbf16> to vector<8x32xbf16>
    %c0_2 = arith.constant 0 : index
    %c0_3 = arith.constant 0 : index
    %c0_4 = arith.constant 0 : index
    %2 = vector.load %arg3[%c0_2, %c0_3, %c0_4] : memref<1x8x32xbf16, #tpu.memory_space<vmem>>, vector<1x8x32xbf16>
    %3 = vector.shape_cast %2 : vector<1x8x32xbf16> to vector<8x32xbf16>
    %c0_5 = arith.constant 0 : index
    %c0_6 = arith.constant 0 : index
    %c0_7 = arith.constant 0 : index
    %4 = vector.load %arg9[%c0_5, %c0_6, %c0_7] : memref<1x8x8xi8, #tpu.memory_space<vmem>>, vector<1x8x8xi8>
    %5 = vector.shape_cast %4 : vector<1x8x8xi8> to vector<8x8xi8>
    %6 = arith.sitofp %5 : vector<8x8xi8> to vector<8x8xf32>
    %cst = arith.constant 0.000000e+00 : f32
    %7 = vector.broadcast %cst : f32 to vector<8x32xf32>
    %c0_8 = arith.constant 0 : index
    %c0_9 = arith.constant 0 : index
    %c0_10 = arith.constant 0 : index
    %8 = vector.load %arg4[%c0_8, %c0_9, %c0_10] : memref<4x32x8xbf16, #tpu.memory_space<vmem>>, vector<1x32x8xbf16>
    %9 = vector.shape_cast %8 : vector<1x32x8xbf16> to vector<32x8xbf16>
    %cst_11 = arith.constant dense<0.000000e+00> : vector<8x8xf32>
    %10 = tpu.matmul %1, %9, %cst_11 {dimension_numbers = #tpu.dot_dimension_numbers<[1], [0], [0], [1], [0, 0, 1, 1], [], []>} : vector<8x32xbf16>, vector<32x8xbf16>, vector<8x8xf32> -> vector<8x8xf32>
    %cst_12 = arith.constant 0.353553385 : f32
    %11 = vector.broadcast %cst_12 : f32 to vector<8x8xf32>
    %12 = arith.mulf %10, %11 : vector<8x8xf32>
    %13 = arith.truncf %12 : vector<8x8xf32> to vector<8x8xbf16>
    %cst_13 = arith.constant 0xFF800000 : f32
    %14 = vector.broadcast %cst_13 : f32 to vector<8x1xf32>
    %cst_14 = arith.constant 0.000000e+00 : f32
    %15 = vector.broadcast %cst_14 : f32 to vector<8x1xf32>
    %cst_15 = arith.constant 0.000000e+00 : f32
    %16 = vector.broadcast %cst_15 : f32 to vector<8x8xf32>
    %c0_16 = arith.constant 0 : index
    %c0_17 = arith.constant 0 : index
    %c0_18 = arith.constant 0 : index
    %17 = vector.load %arg5[%c0_16, %c0_17, %c0_18] : memref<4x32x8xbf16, #tpu.memory_space<vmem>>, vector<1x32x8xbf16>
    %18 = vector.shape_cast %17 : vector<1x32x8xbf16> to vector<32x8xbf16>
    %cst_19 = arith.constant dense<0.000000e+00> : vector<8x8xf32>
    %19 = tpu.matmul %3, %18, %cst_19 {dimension_numbers = #tpu.dot_dimension_numbers<[1], [0], [0], [1], [0, 0, 1, 1], [], []>} : vector<8x32xbf16>, vector<32x8xbf16>, vector<8x8xf32> -> vector<8x8xf32>
    %c0_20 = arith.constant 0 : index
    %c0_21 = arith.constant 0 : index
    %c0_22 = arith.constant 0 : index
    %20 = vector.load %arg6[%c0_20, %c0_21, %c0_22] : memref<4x32x8xbf16, #tpu.memory_space<vmem>>, vector<1x32x8xbf16>
    %21 = vector.shape_cast %20 : vector<1x32x8xbf16> to vector<32x8xbf16>
    %cst_23 = arith.constant dense<0.000000e+00> : vector<8x8xf32>
    %22 = tpu.matmul %3, %21, %cst_23 {dimension_numbers = #tpu.dot_dimension_numbers<[1], [0], [0], [1], [0, 0, 1, 1], [], []>} : vector<8x32xbf16>, vector<32x8xbf16>, vector<8x8xf32> -> vector<8x8xf32>
    %23 = arith.truncf %19 : vector<8x8xf32> to vector<8x8xbf16>
    %cst_24 = arith.constant dense<0.000000e+00> : vector<8x8xf32>
    %24 = tpu.matmul %13, %23, %cst_24 {dimension_numbers = #tpu.dot_dimension_numbers<[1], [1], [0], [0], [0, 0, 1, 0], [], []>} : vector<8x8xbf16>, vector<8x8xbf16>, vector<8x8xf32> -> vector<8x8xf32>
    %cst_25 = arith.constant 0.000000e+00 : f32
    %25 = vector.broadcast %cst_25 : f32 to vector<8x8xf32>
    %26 = arith.cmpf oeq, %6, %25 : vector<8x8xf32>
    %cst_26 = arith.constant -3.53553392E-21 : f32
    %27 = vector.broadcast %cst_26 : f32 to vector<8x8xf32>
    %28 = arith.select %26, %27, %24 : vector<8x8xi1>, vector<8x8xf32>
    %cst_27 = arith.constant dense<0xFF800000> : vector<8xf32>
    %29 = vector.multi_reduction <maximumf>, %28, %cst_27 [1] : vector<8x8xf32> to vector<8xf32>
    %30 = vector.shape_cast %29 : vector<8xf32> to vector<8x1xf32>
    %31 = arith.maximumf %14, %30 : vector<8x1xf32>
    %32 = arith.subf %14, %31 : vector<8x1xf32>
    %33 = math.exp %32 : vector<8x1xf32>
    %34 = vector.broadcast %31 : vector<8x1xf32> to vector<8x8xf32>
    %35 = arith.subf %28, %34 : vector<8x8xf32>
    %36 = math.exp %35 : vector<8x8xf32>
    %37 = arith.mulf %33, %15 : vector<8x1xf32>
    %cst_28 = arith.constant dense<0.000000e+00> : vector<8xf32>
    %38 = vector.multi_reduction <add>, %36, %cst_28 [1] : vector<8x8xf32> to vector<8xf32>
    %39 = vector.shape_cast %38 : vector<8xf32> to vector<8x1xf32>
    %40 = arith.addf %37, %39 : vector<8x1xf32>
    %41 = vector.broadcast %33 : vector<8x1xf32> to vector<8x8xf32>
    %42 = arith.mulf %41, %16 : vector<8x8xf32>
    %43 = arith.truncf %36 : vector<8x8xf32> to vector<8x8xbf16>
    %44 = arith.truncf %22 : vector<8x8xf32> to vector<8x8xbf16>
    %cst_29 = arith.constant dense<0.000000e+00> : vector<8x8xf32>
    %45 = tpu.matmul %43, %44, %cst_29 {dimension_numbers = #tpu.dot_dimension_numbers<[1], [0], [0], [1], [0, 0, 1, 1], [], []>} : vector<8x8xbf16>, vector<8x8xbf16>, vector<8x8xf32> -> vector<8x8xf32>
    %46 = arith.addf %42, %45 : vector<8x8xf32>
    %47 = tpu.reciprocal %40 {approx = true} : vector<8x1xf32> -> vector<8x1xf32>
    %48 = vector.broadcast %47 : vector<8x1xf32> to vector<8x8xf32>
    %49 = arith.mulf %46, %48 : vector<8x8xf32>
    %50 = arith.truncf %49 : vector<8x8xf32> to vector<8x8xbf16>
    %c0_30 = arith.constant 0 : index
    %c0_31 = arith.constant 0 : index
    %c0_32 = arith.constant 0 : index
    %51 = vector.load %arg7[%c0_30, %c0_31, %c0_32] : memref<4x8x32xbf16, #tpu.memory_space<vmem>>, vector<1x8x32xbf16>
    %52 = vector.shape_cast %51 : vector<1x8x32xbf16> to vector<8x32xbf16>
    %cst_33 = arith.constant dense<0.000000e+00> : vector<8x32xf32>
    %53 = tpu.matmul %50, %52, %cst_33 {dimension_numbers = #tpu.dot_dimension_numbers<[1], [0], [0], [1], [0, 0, 1, 1], [], []>} : vector<8x8xbf16>, vector<8x32xbf16>, vector<8x32xf32> -> vector<8x32xf32>
    %54 = arith.addf %7, %53 : vector<8x32xf32>
    %c1 = arith.constant 1 : index
    %c0_34 = arith.constant 0 : index
    %c0_35 = arith.constant 0 : index
    %55 = vector.load %arg4[%c1, %c0_34, %c0_35] : memref<4x32x8xbf16, #tpu.memory_space<vmem>>, vector<1x32x8xbf16>
    %56 = vector.shape_cast %55 : vector<1x32x8xbf16> to vector<32x8xbf16>
    %cst_36 = arith.constant dense<0.000000e+00> : vector<8x8xf32>
    %57 = tpu.matmul %1, %56, %cst_36 {dimension_numbers = #tpu.dot_dimension_numbers<[1], [0], [0], [1], [0, 0, 1, 1], [], []>} : vector<8x32xbf16>, vector<32x8xbf16>, vector<8x8xf32> -> vector<8x8xf32>
    %cst_37 = arith.constant 0.353553385 : f32
    %58 = vector.broadcast %cst_37 : f32 to vector<8x8xf32>
    %59 = arith.mulf %57, %58 : vector<8x8xf32>
    %60 = arith.truncf %59 : vector<8x8xf32> to vector<8x8xbf16>
    %cst_38 = arith.constant 0xFF800000 : f32
    %61 = vector.broadcast %cst_38 : f32 to vector<8x1xf32>
    %cst_39 = arith.constant 0.000000e+00 : f32
    %62 = vector.broadcast %cst_39 : f32 to vector<8x1xf32>
    %cst_40 = arith.constant 0.000000e+00 : f32
    %63 = vector.broadcast %cst_40 : f32 to vector<8x8xf32>
    %c1_41 = arith.constant 1 : index
    %c0_42 = arith.constant 0 : index
    %c0_43 = arith.constant 0 : index
    %64 = vector.load %arg5[%c1_41, %c0_42, %c0_43] : memref<4x32x8xbf16, #tpu.memory_space<vmem>>, vector<1x32x8xbf16>
    %65 = vector.shape_cast %64 : vector<1x32x8xbf16> to vector<32x8xbf16>
    %cst_44 = arith.constant dense<0.000000e+00> : vector<8x8xf32>
    %66 = tpu.matmul %3, %65, %cst_44 {dimension_numbers = #tpu.dot_dimension_numbers<[1], [0], [0], [1], [0, 0, 1, 1], [], []>} : vector<8x32xbf16>, vector<32x8xbf16>, vector<8x8xf32> -> vector<8x8xf32>
    %c1_45 = arith.constant 1 : index
    %c0_46 = arith.constant 0 : index
    %c0_47 = arith.constant 0 : index
    %67 = vector.load %arg6[%c1_45, %c0_46, %c0_47] : memref<4x32x8xbf16, #tpu.memory_space<vmem>>, vector<1x32x8xbf16>
    %68 = vector.shape_cast %67 : vector<1x32x8xbf16> to vector<32x8xbf16>
    %cst_48 = arith.constant dense<0.000000e+00> : vector<8x8xf32>
    %69 = tpu.matmul %3, %68, %cst_48 {dimension_numbers = #tpu.dot_dimension_numbers<[1], [0], [0], [1], [0, 0, 1, 1], [], []>} : vector<8x32xbf16>, vector<32x8xbf16>, vector<8x8xf32> -> vector<8x8xf32>
    %70 = arith.truncf %66 : vector<8x8xf32> to vector<8x8xbf16>
    %cst_49 = arith.constant dense<0.000000e+00> : vector<8x8xf32>
    %71 = tpu.matmul %60, %70, %cst_49 {dimension_numbers = #tpu.dot_dimension_numbers<[1], [1], [0], [0], [0, 0, 1, 0], [], []>} : vector<8x8xbf16>, vector<8x8xbf16>, vector<8x8xf32> -> vector<8x8xf32>
    %cst_50 = arith.constant 0.000000e+00 : f32
    %72 = vector.broadcast %cst_50 : f32 to vector<8x8xf32>
    %73 = arith.cmpf oeq, %6, %72 : vector<8x8xf32>
    %cst_51 = arith.constant -3.53553392E-21 : f32
    %74 = vector.broadcast %cst_51 : f32 to vector<8x8xf32>
    %75 = arith.select %73, %74, %71 : vector<8x8xi1>, vector<8x8xf32>
    %cst_52 = arith.constant dense<0xFF800000> : vector<8xf32>
    %76 = vector.multi_reduction <maximumf>, %75, %cst_52 [1] : vector<8x8xf32> to vector<8xf32>
    %77 = vector.shape_cast %76 : vector<8xf32> to vector<8x1xf32>
    %78 = arith.maximumf %61, %77 : vector<8x1xf32>
    %79 = arith.subf %61, %78 : vector<8x1xf32>
    %80 = math.exp %79 : vector<8x1xf32>
    %81 = vector.broadcast %78 : vector<8x1xf32> to vector<8x8xf32>
    %82 = arith.subf %75, %81 : vector<8x8xf32>
    %83 = math.exp %82 : vector<8x8xf32>
    %84 = arith.mulf %80, %62 : vector<8x1xf32>
    %cst_53 = arith.constant dense<0.000000e+00> : vector<8xf32>
    %85 = vector.multi_reduction <add>, %83, %cst_53 [1] : vector<8x8xf32> to vector<8xf32>
    %86 = vector.shape_cast %85 : vector<8xf32> to vector<8x1xf32>
    %87 = arith.addf %84, %86 : vector<8x1xf32>
    %88 = vector.broadcast %80 : vector<8x1xf32> to vector<8x8xf32>
    %89 = arith.mulf %88, %63 : vector<8x8xf32>
    %90 = arith.truncf %83 : vector<8x8xf32> to vector<8x8xbf16>
    %91 = arith.truncf %69 : vector<8x8xf32> to vector<8x8xbf16>
    %cst_54 = arith.constant dense<0.000000e+00> : vector<8x8xf32>
    %92 = tpu.matmul %90, %91, %cst_54 {dimension_numbers = #tpu.dot_dimension_numbers<[1], [0], [0], [1], [0, 0, 1, 1], [], []>} : vector<8x8xbf16>, vector<8x8xbf16>, vector<8x8xf32> -> vector<8x8xf32>
    %93 = arith.addf %89, %92 : vector<8x8xf32>
    %94 = tpu.reciprocal %87 {approx = true} : vector<8x1xf32> -> vector<8x1xf32>
    %95 = vector.broadcast %94 : vector<8x1xf32> to vector<8x8xf32>
    %96 = arith.mulf %93, %95 : vector<8x8xf32>
    %97 = arith.truncf %96 : vector<8x8xf32> to vector<8x8xbf16>
    %c1_55 = arith.constant 1 : index
    %c0_56 = arith.constant 0 : index
    %c0_57 = arith.constant 0 : index
    %98 = vector.load %arg7[%c1_55, %c0_56, %c0_57] : memref<4x8x32xbf16, #tpu.memory_space<vmem>>, vector<1x8x32xbf16>
    %99 = vector.shape_cast %98 : vector<1x8x32xbf16> to vector<8x32xbf16>
    %cst_58 = arith.constant dense<0.000000e+00> : vector<8x32xf32>
    %100 = tpu.matmul %97, %99, %cst_58 {dimension_numbers = #tpu.dot_dimension_numbers<[1], [0], [0], [1], [0, 0, 1, 1], [], []>} : vector<8x8xbf16>, vector<8x32xbf16>, vector<8x32xf32> -> vector<8x32xf32>
    %101 = arith.addf %54, %100 : vector<8x32xf32>
    %c2 = arith.constant 2 : index
    %c0_59 = arith.constant 0 : index
    %c0_60 = arith.constant 0 : index
    %102 = vector.load %arg4[%c2, %c0_59, %c0_60] : memref<4x32x8xbf16, #tpu.memory_space<vmem>>, vector<1x32x8xbf16>
    %103 = vector.shape_cast %102 : vector<1x32x8xbf16> to vector<32x8xbf16>
    %cst_61 = arith.constant dense<0.000000e+00> : vector<8x8xf32>
    %104 = tpu.matmul %1, %103, %cst_61 {dimension_numbers = #tpu.dot_dimension_numbers<[1], [0], [0], [1], [0, 0, 1, 1], [], []>} : vector<8x32xbf16>, vector<32x8xbf16>, vector<8x8xf32> -> vector<8x8xf32>
    %cst_62 = arith.constant 0.353553385 : f32
    %105 = vector.broadcast %cst_62 : f32 to vector<8x8xf32>
    %106 = arith.mulf %104, %105 : vector<8x8xf32>
    %107 = arith.truncf %106 : vector<8x8xf32> to vector<8x8xbf16>
    %cst_63 = arith.constant 0xFF800000 : f32
    %108 = vector.broadcast %cst_63 : f32 to vector<8x1xf32>
    %cst_64 = arith.constant 0.000000e+00 : f32
    %109 = vector.broadcast %cst_64 : f32 to vector<8x1xf32>
    %cst_65 = arith.constant 0.000000e+00 : f32
    %110 = vector.broadcast %cst_65 : f32 to vector<8x8xf32>
    %c2_66 = arith.constant 2 : index
    %c0_67 = arith.constant 0 : index
    %c0_68 = arith.constant 0 : index
    %111 = vector.load %arg5[%c2_66, %c0_67, %c0_68] : memref<4x32x8xbf16, #tpu.memory_space<vmem>>, vector<1x32x8xbf16>
    %112 = vector.shape_cast %111 : vector<1x32x8xbf16> to vector<32x8xbf16>
    %cst_69 = arith.constant dense<0.000000e+00> : vector<8x8xf32>
    %113 = tpu.matmul %3, %112, %cst_69 {dimension_numbers = #tpu.dot_dimension_numbers<[1], [0], [0], [1], [0, 0, 1, 1], [], []>} : vector<8x32xbf16>, vector<32x8xbf16>, vector<8x8xf32> -> vector<8x8xf32>
    %c2_70 = arith.constant 2 : index
    %c0_71 = arith.constant 0 : index
    %c0_72 = arith.constant 0 : index
    %114 = vector.load %arg6[%c2_70, %c0_71, %c0_72] : memref<4x32x8xbf16, #tpu.memory_space<vmem>>, vector<1x32x8xbf16>
    %115 = vector.shape_cast %114 : vector<1x32x8xbf16> to vector<32x8xbf16>
    %cst_73 = arith.constant dense<0.000000e+00> : vector<8x8xf32>
    %116 = tpu.matmul %3, %115, %cst_73 {dimension_numbers = #tpu.dot_dimension_numbers<[1], [0], [0], [1], [0, 0, 1, 1], [], []>} : vector<8x32xbf16>, vector<32x8xbf16>, vector<8x8xf32> -> vector<8x8xf32>
    %117 = arith.truncf %113 : vector<8x8xf32> to vector<8x8xbf16>
    %cst_74 = arith.constant dense<0.000000e+00> : vector<8x8xf32>
    %118 = tpu.matmul %107, %117, %cst_74 {dimension_numbers = #tpu.dot_dimension_numbers<[1], [1], [0], [0], [0, 0, 1, 0], [], []>} : vector<8x8xbf16>, vector<8x8xbf16>, vector<8x8xf32> -> vector<8x8xf32>
    %cst_75 = arith.constant 0.000000e+00 : f32
    %119 = vector.broadcast %cst_75 : f32 to vector<8x8xf32>
    %120 = arith.cmpf oeq, %6, %119 : vector<8x8xf32>
    %cst_76 = arith.constant -3.53553392E-21 : f32
    %121 = vector.broadcast %cst_76 : f32 to vector<8x8xf32>
    %122 = arith.select %120, %121, %118 : vector<8x8xi1>, vector<8x8xf32>
    %cst_77 = arith.constant dense<0xFF800000> : vector<8xf32>
    %123 = vector.multi_reduction <maximumf>, %122, %cst_77 [1] : vector<8x8xf32> to vector<8xf32>
    %124 = vector.shape_cast %123 : vector<8xf32> to vector<8x1xf32>
    %125 = arith.maximumf %108, %124 : vector<8x1xf32>
    %126 = arith.subf %108, %125 : vector<8x1xf32>
    %127 = math.exp %126 : vector<8x1xf32>
    %128 = vector.broadcast %125 : vector<8x1xf32> to vector<8x8xf32>
    %129 = arith.subf %122, %128 : vector<8x8xf32>
    %130 = math.exp %129 : vector<8x8xf32>
    %131 = arith.mulf %127, %109 : vector<8x1xf32>
    %cst_78 = arith.constant dense<0.000000e+00> : vector<8xf32>
    %132 = vector.multi_reduction <add>, %130, %cst_78 [1] : vector<8x8xf32> to vector<8xf32>
    %133 = vector.shape_cast %132 : vector<8xf32> to vector<8x1xf32>
    %134 = arith.addf %131, %133 : vector<8x1xf32>
    %135 = vector.broadcast %127 : vector<8x1xf32> to vector<8x8xf32>
    %136 = arith.mulf %135, %110 : vector<8x8xf32>
    %137 = arith.truncf %130 : vector<8x8xf32> to vector<8x8xbf16>
    %138 = arith.truncf %116 : vector<8x8xf32> to vector<8x8xbf16>
    %cst_79 = arith.constant dense<0.000000e+00> : vector<8x8xf32>
    %139 = tpu.matmul %137, %138, %cst_79 {dimension_numbers = #tpu.dot_dimension_numbers<[1], [0], [0], [1], [0, 0, 1, 1], [], []>} : vector<8x8xbf16>, vector<8x8xbf16>, vector<8x8xf32> -> vector<8x8xf32>
    %140 = arith.addf %136, %139 : vector<8x8xf32>
    %141 = tpu.reciprocal %134 {approx = true} : vector<8x1xf32> -> vector<8x1xf32>
    %142 = vector.broadcast %141 : vector<8x1xf32> to vector<8x8xf32>
    %143 = arith.mulf %140, %142 : vector<8x8xf32>
    %144 = arith.truncf %143 : vector<8x8xf32> to vector<8x8xbf16>
    %c2_80 = arith.constant 2 : index
    %c0_81 = arith.constant 0 : index
    %c0_82 = arith.constant 0 : index
    %145 = vector.load %arg7[%c2_80, %c0_81, %c0_82] : memref<4x8x32xbf16, #tpu.memory_space<vmem>>, vector<1x8x32xbf16>
    %146 = vector.shape_cast %145 : vector<1x8x32xbf16> to vector<8x32xbf16>
    %cst_83 = arith.constant dense<0.000000e+00> : vector<8x32xf32>
    %147 = tpu.matmul %144, %146, %cst_83 {dimension_numbers = #tpu.dot_dimension_numbers<[1], [0], [0], [1], [0, 0, 1, 1], [], []>} : vector<8x8xbf16>, vector<8x32xbf16>, vector<8x32xf32> -> vector<8x32xf32>
    %148 = arith.addf %101, %147 : vector<8x32xf32>
    %c3 = arith.constant 3 : index
    %c0_84 = arith.constant 0 : index
    %c0_85 = arith.constant 0 : index
    %149 = vector.load %arg4[%c3, %c0_84, %c0_85] : memref<4x32x8xbf16, #tpu.memory_space<vmem>>, vector<1x32x8xbf16>
    %150 = vector.shape_cast %149 : vector<1x32x8xbf16> to vector<32x8xbf16>
    %cst_86 = arith.constant dense<0.000000e+00> : vector<8x8xf32>
    %151 = tpu.matmul %1, %150, %cst_86 {dimension_numbers = #tpu.dot_dimension_numbers<[1], [0], [0], [1], [0, 0, 1, 1], [], []>} : vector<8x32xbf16>, vector<32x8xbf16>, vector<8x8xf32> -> vector<8x8xf32>
    %cst_87 = arith.constant 0.353553385 : f32
    %152 = vector.broadcast %cst_87 : f32 to vector<8x8xf32>
    %153 = arith.mulf %151, %152 : vector<8x8xf32>
    %154 = arith.truncf %153 : vector<8x8xf32> to vector<8x8xbf16>
    %cst_88 = arith.constant 0xFF800000 : f32
    %155 = vector.broadcast %cst_88 : f32 to vector<8x1xf32>
    %cst_89 = arith.constant 0.000000e+00 : f32
    %156 = vector.broadcast %cst_89 : f32 to vector<8x1xf32>
    %cst_90 = arith.constant 0.000000e+00 : f32
    %157 = vector.broadcast %cst_90 : f32 to vector<8x8xf32>
    %c3_91 = arith.constant 3 : index
    %c0_92 = arith.constant 0 : index
    %c0_93 = arith.constant 0 : index
    %158 = vector.load %arg5[%c3_91, %c0_92, %c0_93] : memref<4x32x8xbf16, #tpu.memory_space<vmem>>, vector<1x32x8xbf16>
    %159 = vector.shape_cast %158 : vector<1x32x8xbf16> to vector<32x8xbf16>
    %cst_94 = arith.constant dense<0.000000e+00> : vector<8x8xf32>
    %160 = tpu.matmul %3, %159, %cst_94 {dimension_numbers = #tpu.dot_dimension_numbers<[1], [0], [0], [1], [0, 0, 1, 1], [], []>} : vector<8x32xbf16>, vector<32x8xbf16>, vector<8x8xf32> -> vector<8x8xf32>
    %c3_95 = arith.constant 3 : index
    %c0_96 = arith.constant 0 : index
    %c0_97 = arith.constant 0 : index
    %161 = vector.load %arg6[%c3_95, %c0_96, %c0_97] : memref<4x32x8xbf16, #tpu.memory_space<vmem>>, vector<1x32x8xbf16>
    %162 = vector.shape_cast %161 : vector<1x32x8xbf16> to vector<32x8xbf16>
    %cst_98 = arith.constant dense<0.000000e+00> : vector<8x8xf32>
    %163 = tpu.matmul %3, %162, %cst_98 {dimension_numbers = #tpu.dot_dimension_numbers<[1], [0], [0], [1], [0, 0, 1, 1], [], []>} : vector<8x32xbf16>, vector<32x8xbf16>, vector<8x8xf32> -> vector<8x8xf32>
    %164 = arith.truncf %160 : vector<8x8xf32> to vector<8x8xbf16>
    %cst_99 = arith.constant dense<0.000000e+00> : vector<8x8xf32>
    %165 = tpu.matmul %154, %164, %cst_99 {dimension_numbers = #tpu.dot_dimension_numbers<[1], [1], [0], [0], [0, 0, 1, 0], [], []>} : vector<8x8xbf16>, vector<8x8xbf16>, vector<8x8xf32> -> vector<8x8xf32>
    %cst_100 = arith.constant 0.000000e+00 : f32
    %166 = vector.broadcast %cst_100 : f32 to vector<8x8xf32>
    %167 = arith.cmpf oeq, %6, %166 : vector<8x8xf32>
    %cst_101 = arith.constant -3.53553392E-21 : f32
    %168 = vector.broadcast %cst_101 : f32 to vector<8x8xf32>
    %169 = arith.select %167, %168, %165 : vector<8x8xi1>, vector<8x8xf32>
    %cst_102 = arith.constant dense<0xFF800000> : vector<8xf32>
    %170 = vector.multi_reduction <maximumf>, %169, %cst_102 [1] : vector<8x8xf32> to vector<8xf32>
    %171 = vector.shape_cast %170 : vector<8xf32> to vector<8x1xf32>
    %172 = arith.maximumf %155, %171 : vector<8x1xf32>
    %173 = arith.subf %155, %172 : vector<8x1xf32>
    %174 = math.exp %173 : vector<8x1xf32>
    %175 = vector.broadcast %172 : vector<8x1xf32> to vector<8x8xf32>
    %176 = arith.subf %169, %175 : vector<8x8xf32>
    %177 = math.exp %176 : vector<8x8xf32>
    %178 = arith.mulf %174, %156 : vector<8x1xf32>
    %cst_103 = arith.constant dense<0.000000e+00> : vector<8xf32>
    %179 = vector.multi_reduction <add>, %177, %cst_103 [1] : vector<8x8xf32> to vector<8xf32>
    %180 = vector.shape_cast %179 : vector<8xf32> to vector<8x1xf32>
    %181 = arith.addf %178, %180 : vector<8x1xf32>
    %182 = vector.broadcast %174 : vector<8x1xf32> to vector<8x8xf32>
    %183 = arith.mulf %182, %157 : vector<8x8xf32>
    %184 = arith.truncf %177 : vector<8x8xf32> to vector<8x8xbf16>
    %185 = arith.truncf %163 : vector<8x8xf32> to vector<8x8xbf16>
    %cst_104 = arith.constant dense<0.000000e+00> : vector<8x8xf32>
    %186 = tpu.matmul %184, %185, %cst_104 {dimension_numbers = #tpu.dot_dimension_numbers<[1], [0], [0], [1], [0, 0, 1, 1], [], []>} : vector<8x8xbf16>, vector<8x8xbf16>, vector<8x8xf32> -> vector<8x8xf32>
    %187 = arith.addf %183, %186 : vector<8x8xf32>
    %188 = tpu.reciprocal %181 {approx = true} : vector<8x1xf32> -> vector<8x1xf32>
    %189 = vector.broadcast %188 : vector<8x1xf32> to vector<8x8xf32>
    %190 = arith.mulf %187, %189 : vector<8x8xf32>
    %191 = arith.truncf %190 : vector<8x8xf32> to vector<8x8xbf16>
    %c3_105 = arith.constant 3 : index
    %c0_106 = arith.constant 0 : index
    %c0_107 = arith.constant 0 : index
    %192 = vector.load %arg7[%c3_105, %c0_106, %c0_107] : memref<4x8x32xbf16, #tpu.memory_space<vmem>>, vector<1x8x32xbf16>
    %193 = vector.shape_cast %192 : vector<1x8x32xbf16> to vector<8x32xbf16>
    %cst_108 = arith.constant dense<0.000000e+00> : vector<8x32xf32>
    %194 = tpu.matmul %191, %193, %cst_108 {dimension_numbers = #tpu.dot_dimension_numbers<[1], [0], [0], [1], [0, 0, 1, 1], [], []>} : vector<8x8xbf16>, vector<8x32xbf16>, vector<8x32xf32> -> vector<8x32xf32>
    %195 = arith.addf %148, %194 : vector<8x32xf32>
    %c0_109 = arith.constant 0 : index
    %c0_110 = arith.constant 0 : index
    %196 = vector.load %arg8[%c0_109, %c0_110] : memref<1x32xf32, #tpu.memory_space<vmem>>, vector<1x32xf32>
    %197 = vector.broadcast %196 : vector<1x32xf32> to vector<8x32xf32>
    %198 = arith.addf %195, %197 : vector<8x32xf32>
    %199 = arith.extf %1 : vector<8x32xbf16> to vector<8x32xf32>
    %200 = arith.addf %198, %199 : vector<8x32xf32>
    %c0_111 = arith.constant 0 : index
    %c0_112 = arith.constant 0 : index
    %201 = vector.load %arg10[%c0_111, %c0_112] : memref<1x32xf32, #tpu.memory_space<vmem>>, vector<1x32xf32>
    %c0_113 = arith.constant 0 : index
    %c0_114 = arith.constant 0 : index
    %202 = vector.load %arg11[%c0_113, %c0_114] : memref<1x32xf32, #tpu.memory_space<vmem>>, vector<1x32xf32>
    %cst_115 = arith.constant dense<0.000000e+00> : vector<8xf32>
    %203 = vector.multi_reduction <add>, %200, %cst_115 [1] : vector<8x32xf32> to vector<8xf32>
    %204 = vector.shape_cast %203 : vector<8xf32> to vector<8x1xf32>
    %cst_116 = arith.constant 3.200000e+01 : f32
    %205 = vector.broadcast %cst_116 : f32 to vector<8x1xf32>
    %206 = arith.divf %204, %205 : vector<8x1xf32>
    %207 = vector.broadcast %206 : vector<8x1xf32> to vector<8x32xf32>
    %208 = arith.subf %200, %207 : vector<8x32xf32>
    %209 = arith.mulf %208, %208 : vector<8x32xf32>
    %cst_117 = arith.constant dense<0.000000e+00> : vector<8xf32>
    %210 = vector.multi_reduction <add>, %209, %cst_117 [1] : vector<8x32xf32> to vector<8xf32>
    %211 = vector.shape_cast %210 : vector<8xf32> to vector<8x1xf32>
    %cst_118 = arith.constant 3.200000e+01 : f32
    %212 = vector.broadcast %cst_118 : f32 to vector<8x1xf32>
    %213 = arith.divf %211, %212 : vector<8x1xf32>
    %214 = vector.broadcast %206 : vector<8x1xf32> to vector<8x32xf32>
    %215 = arith.subf %200, %214 : vector<8x32xf32>
    %cst_119 = arith.constant 9.99999974E-6 : f32
    %216 = vector.broadcast %cst_119 : f32 to vector<8x1xf32>
    %217 = arith.addf %213, %216 : vector<8x1xf32>
    %218 = math.rsqrt %217 : vector<8x1xf32>
    %219 = vector.broadcast %218 : vector<8x1xf32> to vector<8x32xf32>
    %220 = arith.mulf %215, %219 : vector<8x32xf32>
    %221 = vector.broadcast %201 : vector<1x32xf32> to vector<8x32xf32>
    %222 = arith.mulf %220, %221 : vector<8x32xf32>
    %223 = vector.broadcast %202 : vector<1x32xf32> to vector<8x32xf32>
    %224 = arith.addf %222, %223 : vector<8x32xf32>
    %225 = arith.truncf %224 : vector<8x32xf32> to vector<8x32xbf16>
    %c0_120 = arith.constant 0 : index
    %c0_121 = arith.constant 0 : index
    %c0_122 = arith.constant 0 : index
    %226 = vector.load %arg12[%c0_120, %c0_121, %c0_122] : memref<1x8x32xbf16, #tpu.memory_space<vmem>>, vector<1x8x32xbf16>
    %227 = vector.shape_cast %226 : vector<1x8x32xbf16> to vector<8x32xbf16>
    %228 = vector.shape_cast %225 : vector<8x32xbf16> to vector<1x8x32xbf16>
    tpu.vector_store %arg12[%c0_120, %c0_121, %c0_122], %228 {strides = array<i32>} : memref<1x8x32xbf16, #tpu.memory_space<vmem>>, vector<1x8x32xbf16>,
    return
  }
  func.func @transform_0(%arg0: i32, %arg1: i32) -> (i32, i32, i32) {
    %c0_i32 = arith.constant 0 : i32
    %c0_i32_0 = arith.constant 0 : i32
    return %arg0, %arg1, %c0_i32 : i32, i32, i32
  }
  func.func @transform_1(%arg0: i32, %arg1: i32) -> (i32, i32, i32) {
    %c0_i32 = arith.constant 0 : i32
    %c0_i32_0 = arith.constant 0 : i32
    %c0_i32_1 = arith.constant 0 : i32
    return %arg0, %c0_i32, %c0_i32_0 : i32, i32, i32
  }
  func.func @transform_2(%arg0: i32, %arg1: i32) -> (i32, i32, i32) {
    %c0_i32 = arith.constant 0 : i32
    %c0_i32_0 = arith.constant 0 : i32
    %c0_i32_1 = arith.constant 0 : i32
    %c0_i32_2 = arith.constant 0 : i32
    return %c0_i32, %c0_i32_0, %c0_i32_1 : i32, i32, i32
  }
  func.func @transform_3(%arg0: i32, %arg1: i32) -> (i32, i32, i32) {
    %c0_i32 = arith.constant 0 : i32
    %c0_i32_0 = arith.constant 0 : i32
    %c0_i32_1 = arith.constant 0 : i32
    %c0_i32_2 = arith.constant 0 : i32
    return %c0_i32, %c0_i32_0, %c0_i32_1 : i32, i32, i32
  }
  func.func @transform_4(%arg0: i32, %arg1: i32) -> (i32, i32, i32) {
    %c0_i32 = arith.constant 0 : i32
    %c0_i32_0 = arith.constant 0 : i32
    %c0_i32_1 = arith.constant 0 : i32
    %c0_i32_2 = arith.constant 0 : i32
    return %c0_i32, %c0_i32_0, %c0_i32_1 : i32, i32, i32
  }
  func.func @transform_5(%arg0: i32, %arg1: i32) -> (i32, i32, i32) {
    %c0_i32 = arith.constant 0 : i32
    %c0_i32_0 = arith.constant 0 : i32
    %c0_i32_1 = arith.constant 0 : i32
    %c0_i32_2 = arith.constant 0 : i32
    return %c0_i32, %c0_i32_0, %c0_i32_1 : i32, i32, i32
  }
  func.func @transform_6(%arg0: i32, %arg1: i32) -> (i32, i32) {
    %c0_i32 = arith.constant 0 : i32
    %c0_i32_0 = arith.constant 0 : i32
    %c0_i32_1 = arith.constant 0 : i32
    return %c0_i32, %c0_i32_0 : i32, i32
  }
  func.func @transform_7(%arg0: i32, %arg1: i32) -> (i32, i32, i32) {
    %c0_i32 = arith.constant 0 : i32
    %c0_i32_0 = arith.constant 0 : i32
    return %arg0, %arg1, %c0_i32 : i32, i32, i32
  }
  func.func @transform_8(%arg0: i32, %arg1: i32) -> (i32, i32) {
    %c0_i32 = arith.constant 0 : i32
    %c0_i32_0 = arith.constant 0 : i32
    %c0_i32_1 = arith.constant 0 : i32
    return %c0_i32, %c0_i32_0 : i32, i32
  }
  func.func @transform_9(%arg0: i32, %arg1: i32) -> (i32, i32) {
    %c0_i32 = arith.constant 0 : i32
    %c0_i32_0 = arith.constant 0 : i32
    %c0_i32_1 = arith.constant 0 : i32
    return %c0_i32, %c0_i32_0 : i32, i32
  }
  func.func @transform_10(%arg0: i32, %arg1: i32) -> (i32, i32, i32) {
    %c0_i32 = arith.constant 0 : i32
    %c0_i32_0 = arith.constant 0 : i32
    return %arg0, %arg1, %c0_i32 : i32, i32, i32
  }
}

module attributes {stable_mosaic.version = 11 : i64} {
  func.func @_ffn_ln_kernel(%arg0: i32, %arg1: i32, %arg2: memref<16x32xbf16, #tpu.memory_space<vmem>>, %arg3: memref<32x64xbf16, #tpu.memory_space<vmem>>, %arg4: memref<1x64xf32, #tpu.memory_space<vmem>>, %arg5: memref<64x32xbf16, #tpu.memory_space<vmem>>, %arg6: memref<1x32xf32, #tpu.memory_space<vmem>>, %arg7: memref<1x32xf32, #tpu.memory_space<vmem>>, %arg8: memref<1x32xf32, #tpu.memory_space<vmem>>, %arg9: memref<16x32xbf16, #tpu.memory_space<vmem>>, %arg10: memref<16x32xf32, #tpu.memory_space<vmem>>) attributes {dimension_semantics = [#tpu.dimension_semantics<parallel>, #tpu.dimension_semantics<arbitrary>], iteration_bounds = array<i64: 1, 1>, scalar_prefetch = 0 : i64, scratch_operands = 1 : i64, tpu.core_type = #tpu.core_type<tc>, window_params = [{transform_indices = @transform_0, window_bounds = array<i64: 16, 32>}, {transform_indices = @transform_1, window_bounds = array<i64: 32, 64>}, {transform_indices = @transform_2, window_bounds = array<i64: 1, 64>}, {transform_indices = @transform_3, window_bounds = array<i64: 64, 32>}, {pipeline_mode = #tpu.pipeline_mode<synchronous>, transform_indices = @transform_4, window_bounds = array<i64: 1, 32>}, {pipeline_mode = #tpu.pipeline_mode<synchronous>, transform_indices = @transform_5, window_bounds = array<i64: 1, 32>}, {pipeline_mode = #tpu.pipeline_mode<synchronous>, transform_indices = @transform_6, window_bounds = array<i64: 1, 32>}, {transform_indices = @transform_7, window_bounds = array<i64: 16, 32>}]} {
    %c0_i32 = arith.constant 0 : i32
    %0 = arith.cmpi eq, %arg1, %c0_i32 : i32
    %1 = arith.extui %0 : i1 to i32
    %c0_i32_0 = arith.constant 0 : i32
    %2 = arith.cmpi ne, %1, %c0_i32_0 : i32
    scf.if %2 {
      %cst_16 = arith.constant 0.000000e+00 : f32
      %20 = vector.broadcast %cst_16 : f32 to vector<16x32xf32>
      %c0_17 = arith.constant 0 : index
      %c0_18 = arith.constant 0 : index
      %21 = vector.load %arg10[%c0_17, %c0_18] : memref<16x32xf32, #tpu.memory_space<vmem>>, vector<16x32xf32>
      tpu.vector_store %arg10[%c0_17, %c0_18], %20 {strides = array<i32>} : memref<16x32xf32, #tpu.memory_space<vmem>>, vector<16x32xf32>,
    } else {
    }
    %c0 = arith.constant 0 : index
    %c0_1 = arith.constant 0 : index
    %3 = vector.load %arg2[%c0, %c0_1] : memref<16x32xbf16, #tpu.memory_space<vmem>>, vector<16x32xbf16>
    %c0_2 = arith.constant 0 : index
    %c0_3 = arith.constant 0 : index
    %4 = vector.load %arg3[%c0_2, %c0_3] : memref<32x64xbf16, #tpu.memory_space<vmem>>, vector<32x64xbf16>
    %cst = arith.constant dense<0.000000e+00> : vector<16x64xf32>
    %5 = tpu.matmul %3, %4, %cst {dimension_numbers = #tpu.dot_dimension_numbers<[1], [0], [0], [1], [0, 0, 1, 1], [], []>} : vector<16x32xbf16>, vector<32x64xbf16>, vector<16x64xf32> -> vector<16x64xf32>
    %c0_4 = arith.constant 0 : index
    %c0_5 = arith.constant 0 : index
    %6 = vector.load %arg4[%c0_4, %c0_5] : memref<1x64xf32, #tpu.memory_space<vmem>>, vector<1x64xf32>
    %7 = vector.broadcast %6 : vector<1x64xf32> to vector<16x64xf32>
    %8 = arith.addf %5, %7 : vector<16x64xf32>
    %cst_6 = arith.constant 0.000000e+00 : f32
    %9 = vector.broadcast %cst_6 : f32 to vector<16x64xf32>
    %10 = arith.maximumf %8, %9 : vector<16x64xf32>
    %c0_7 = arith.constant 0 : index
    %c0_8 = arith.constant 0 : index
    %11 = vector.load %arg10[%c0_7, %c0_8] : memref<16x32xf32, #tpu.memory_space<vmem>>, vector<16x32xf32>
    %12 = arith.truncf %10 : vector<16x64xf32> to vector<16x64xbf16>
    %c0_9 = arith.constant 0 : index
    %c0_10 = arith.constant 0 : index
    %13 = vector.load %arg5[%c0_9, %c0_10] : memref<64x32xbf16, #tpu.memory_space<vmem>>, vector<64x32xbf16>
    %cst_11 = arith.constant dense<0.000000e+00> : vector<16x32xf32>
    %14 = tpu.matmul %12, %13, %cst_11 {dimension_numbers = #tpu.dot_dimension_numbers<[1], [0], [0], [1], [0, 0, 1, 1], [], []>} : vector<16x64xbf16>, vector<64x32xbf16>, vector<16x32xf32> -> vector<16x32xf32>
    %15 = arith.addf %11, %14 : vector<16x32xf32>
    %c0_12 = arith.constant 0 : index
    %c0_13 = arith.constant 0 : index
    %16 = vector.load %arg10[%c0_12, %c0_13] : memref<16x32xf32, #tpu.memory_space<vmem>>, vector<16x32xf32>
    tpu.vector_store %arg10[%c0_12, %c0_13], %15 {strides = array<i32>} : memref<16x32xf32, #tpu.memory_space<vmem>>, vector<16x32xf32>,
    %c0_i32_14 = arith.constant 0 : i32
    %17 = arith.cmpi eq, %arg1, %c0_i32_14 : i32
    %18 = arith.extui %17 : i1 to i32
    %c0_i32_15 = arith.constant 0 : i32
    %19 = arith.cmpi ne, %18, %c0_i32_15 : i32
    scf.if %19 {
      %c0_16 = arith.constant 0 : index
      %c0_17 = arith.constant 0 : index
      %20 = vector.load %arg10[%c0_16, %c0_17] : memref<16x32xf32, #tpu.memory_space<vmem>>, vector<16x32xf32>
      %c0_18 = arith.constant 0 : index
      %c0_19 = arith.constant 0 : index
      %21 = vector.load %arg6[%c0_18, %c0_19] : memref<1x32xf32, #tpu.memory_space<vmem>>, vector<1x32xf32>
      %22 = vector.broadcast %21 : vector<1x32xf32> to vector<16x32xf32>
      %23 = arith.addf %20, %22 : vector<16x32xf32>
      %24 = arith.extf %3 : vector<16x32xbf16> to vector<16x32xf32>
      %25 = arith.addf %23, %24 : vector<16x32xf32>
      %c0_20 = arith.constant 0 : index
      %c0_21 = arith.constant 0 : index
      %26 = vector.load %arg7[%c0_20, %c0_21] : memref<1x32xf32, #tpu.memory_space<vmem>>, vector<1x32xf32>
      %c0_22 = arith.constant 0 : index
      %c0_23 = arith.constant 0 : index
      %27 = vector.load %arg8[%c0_22, %c0_23] : memref<1x32xf32, #tpu.memory_space<vmem>>, vector<1x32xf32>
      %cst_24 = arith.constant dense<0.000000e+00> : vector<16xf32>
      %28 = vector.multi_reduction <add>, %25, %cst_24 [1] : vector<16x32xf32> to vector<16xf32>
      %29 = vector.shape_cast %28 : vector<16xf32> to vector<16x1xf32>
      %cst_25 = arith.constant 3.200000e+01 : f32
      %30 = vector.broadcast %cst_25 : f32 to vector<16x1xf32>
      %31 = arith.divf %29, %30 : vector<16x1xf32>
      %32 = vector.broadcast %31 : vector<16x1xf32> to vector<16x32xf32>
      %33 = arith.subf %25, %32 : vector<16x32xf32>
      %34 = arith.mulf %33, %33 : vector<16x32xf32>
      %cst_26 = arith.constant dense<0.000000e+00> : vector<16xf32>
      %35 = vector.multi_reduction <add>, %34, %cst_26 [1] : vector<16x32xf32> to vector<16xf32>
      %36 = vector.shape_cast %35 : vector<16xf32> to vector<16x1xf32>
      %cst_27 = arith.constant 3.200000e+01 : f32
      %37 = vector.broadcast %cst_27 : f32 to vector<16x1xf32>
      %38 = arith.divf %36, %37 : vector<16x1xf32>
      %39 = vector.broadcast %31 : vector<16x1xf32> to vector<16x32xf32>
      %40 = arith.subf %25, %39 : vector<16x32xf32>
      %cst_28 = arith.constant 9.99999974E-6 : f32
      %41 = vector.broadcast %cst_28 : f32 to vector<16x1xf32>
      %42 = arith.addf %38, %41 : vector<16x1xf32>
      %43 = math.rsqrt %42 : vector<16x1xf32>
      %44 = vector.broadcast %43 : vector<16x1xf32> to vector<16x32xf32>
      %45 = arith.mulf %40, %44 : vector<16x32xf32>
      %46 = vector.broadcast %26 : vector<1x32xf32> to vector<16x32xf32>
      %47 = arith.mulf %45, %46 : vector<16x32xf32>
      %48 = vector.broadcast %27 : vector<1x32xf32> to vector<16x32xf32>
      %49 = arith.addf %47, %48 : vector<16x32xf32>
      %50 = arith.truncf %49 : vector<16x32xf32> to vector<16x32xbf16>
      %c0_29 = arith.constant 0 : index
      %c0_30 = arith.constant 0 : index
      %51 = vector.load %arg9[%c0_29, %c0_30] : memref<16x32xbf16, #tpu.memory_space<vmem>>, vector<16x32xbf16>
      tpu.vector_store %arg9[%c0_29, %c0_30], %50 {strides = array<i32>} : memref<16x32xbf16, #tpu.memory_space<vmem>>, vector<16x32xbf16>,
    } else {
    }
    return
  }
  func.func @transform_0(%arg0: i32, %arg1: i32) -> (i32, i32) {
    %c0_i32 = arith.constant 0 : i32
    %c0_i32_0 = arith.constant 0 : i32
    return %arg0, %c0_i32 : i32, i32
  }
  func.func @transform_1(%arg0: i32, %arg1: i32) -> (i32, i32) {
    %c0_i32 = arith.constant 0 : i32
    %c0_i32_0 = arith.constant 0 : i32
    return %c0_i32, %arg1 : i32, i32
  }
  func.func @transform_2(%arg0: i32, %arg1: i32) -> (i32, i32) {
    %c0_i32 = arith.constant 0 : i32
    %c0_i32_0 = arith.constant 0 : i32
    return %c0_i32, %arg1 : i32, i32
  }
  func.func @transform_3(%arg0: i32, %arg1: i32) -> (i32, i32) {
    %c0_i32 = arith.constant 0 : i32
    %c0_i32_0 = arith.constant 0 : i32
    return %arg1, %c0_i32 : i32, i32
  }
  func.func @transform_4(%arg0: i32, %arg1: i32) -> (i32, i32) {
    %c0_i32 = arith.constant 0 : i32
    %c0_i32_0 = arith.constant 0 : i32
    %c0_i32_1 = arith.constant 0 : i32
    return %c0_i32, %c0_i32_0 : i32, i32
  }
  func.func @transform_5(%arg0: i32, %arg1: i32) -> (i32, i32) {
    %c0_i32 = arith.constant 0 : i32
    %c0_i32_0 = arith.constant 0 : i32
    %c0_i32_1 = arith.constant 0 : i32
    return %c0_i32, %c0_i32_0 : i32, i32
  }
  func.func @transform_6(%arg0: i32, %arg1: i32) -> (i32, i32) {
    %c0_i32 = arith.constant 0 : i32
    %c0_i32_0 = arith.constant 0 : i32
    %c0_i32_1 = arith.constant 0 : i32
    return %c0_i32, %c0_i32_0 : i32, i32
  }
  func.func @transform_7(%arg0: i32, %arg1: i32) -> (i32, i32) {
    %c0_i32 = arith.constant 0 : i32
    %c0_i32_0 = arith.constant 0 : i32
    return %arg0, %c0_i32 : i32, i32
  }
}

module attributes {stable_mosaic.version = 11 : i64} {
  func.func @_linear_bias_kernel(%arg0: i32, %arg1: i32, %arg2: memref<16x32xbf16, #tpu.memory_space<vmem>>, %arg3: memref<32x16xbf16, #tpu.memory_space<vmem>>, %arg4: memref<1x16xf32, #tpu.memory_space<vmem>>, %arg5: memref<16x16xf32, #tpu.memory_space<vmem>>) attributes {dimension_semantics = [#tpu.dimension_semantics<parallel>, #tpu.dimension_semantics<parallel>], iteration_bounds = array<i64: 1, 1>, scalar_prefetch = 0 : i64, scratch_operands = 0 : i64, tpu.core_type = #tpu.core_type<tc>, window_params = [{transform_indices = @transform_0, window_bounds = array<i64: 16, 32>}, {transform_indices = @transform_1, window_bounds = array<i64: 32, 16>}, {transform_indices = @transform_2, window_bounds = array<i64: 1, 16>}, {transform_indices = @transform_3, window_bounds = array<i64: 16, 16>}]} {
    %c0 = arith.constant 0 : index
    %c0_0 = arith.constant 0 : index
    %0 = vector.load %arg2[%c0, %c0_0] : memref<16x32xbf16, #tpu.memory_space<vmem>>, vector<16x32xbf16>
    %c0_1 = arith.constant 0 : index
    %c0_2 = arith.constant 0 : index
    %1 = vector.load %arg3[%c0_1, %c0_2] : memref<32x16xbf16, #tpu.memory_space<vmem>>, vector<32x16xbf16>
    %cst = arith.constant dense<0.000000e+00> : vector<16x16xf32>
    %2 = tpu.matmul %0, %1, %cst {dimension_numbers = #tpu.dot_dimension_numbers<[1], [0], [0], [1], [0, 0, 1, 1], [], []>} : vector<16x32xbf16>, vector<32x16xbf16>, vector<16x16xf32> -> vector<16x16xf32>
    %c0_3 = arith.constant 0 : index
    %c0_4 = arith.constant 0 : index
    %3 = vector.load %arg4[%c0_3, %c0_4] : memref<1x16xf32, #tpu.memory_space<vmem>>, vector<1x16xf32>
    %4 = vector.broadcast %3 : vector<1x16xf32> to vector<16x16xf32>
    %5 = arith.addf %2, %4 : vector<16x16xf32>
    %c0_5 = arith.constant 0 : index
    %c0_6 = arith.constant 0 : index
    %6 = vector.load %arg5[%c0_5, %c0_6] : memref<16x16xf32, #tpu.memory_space<vmem>>, vector<16x16xf32>
    tpu.vector_store %arg5[%c0_5, %c0_6], %5 {strides = array<i32>} : memref<16x16xf32, #tpu.memory_space<vmem>>, vector<16x16xf32>,
    return
  }
  func.func @transform_0(%arg0: i32, %arg1: i32) -> (i32, i32) {
    %c0_i32 = arith.constant 0 : i32
    %c0_i32_0 = arith.constant 0 : i32
    return %arg0, %c0_i32 : i32, i32
  }
  func.func @transform_1(%arg0: i32, %arg1: i32) -> (i32, i32) {
    %c0_i32 = arith.constant 0 : i32
    %c0_i32_0 = arith.constant 0 : i32
    return %c0_i32, %arg1 : i32, i32
  }
  func.func @transform_2(%arg0: i32, %arg1: i32) -> (i32, i32) {
    %c0_i32 = arith.constant 0 : i32
    %c0_i32_0 = arith.constant 0 : i32
    return %c0_i32, %arg1 : i32, i32
  }
  func.func @transform_3(%arg0: i32, %arg1: i32) -> (i32, i32) {
    %c0_i32 = arith.constant 0 : i32
    return %arg0, %arg1 : i32, i32
  }
}

module attributes {stable_mosaic.version = 11 : i64} {
  func.func @_attn_block_kernel(%arg0: i32, %arg1: i32, %arg2: memref<1x8x32xbf16, #tpu.memory_space<vmem>>, %arg3: memref<1x8x32xbf16, #tpu.memory_space<vmem>>, %arg4: memref<4x32x8xbf16, #tpu.memory_space<vmem>>, %arg5: memref<4x32x8xbf16, #tpu.memory_space<vmem>>, %arg6: memref<4x32x8xbf16, #tpu.memory_space<vmem>>, %arg7: memref<4x8x32xbf16, #tpu.memory_space<vmem>>, %arg8: memref<1x32xf32, #tpu.memory_space<vmem>>, %arg9: memref<1x1x8xi8, #tpu.memory_space<vmem>>, %arg10: memref<1x32xf32, #tpu.memory_space<vmem>>, %arg11: memref<1x32xf32, #tpu.memory_space<vmem>>, %arg12: memref<1x8x32xbf16, #tpu.memory_space<vmem>>) attributes {dimension_semantics = [#tpu.dimension_semantics<parallel>, #tpu.dimension_semantics<parallel>], iteration_bounds = array<i64: 2, 1>, scalar_prefetch = 0 : i64, scratch_operands = 0 : i64, tpu.core_type = #tpu.core_type<tc>, window_params = [{transform_indices = @transform_0, window_bounds = array<i64: 1, 8, 32>}, {transform_indices = @transform_1, window_bounds = array<i64: 1, 8, 32>}, {pipeline_mode = #tpu.pipeline_mode<synchronous>, transform_indices = @transform_2, window_bounds = array<i64: 4, 32, 8>}, {pipeline_mode = #tpu.pipeline_mode<synchronous>, transform_indices = @transform_3, window_bounds = array<i64: 4, 32, 8>}, {pipeline_mode = #tpu.pipeline_mode<synchronous>, transform_indices = @transform_4, window_bounds = array<i64: 4, 32, 8>}, {pipeline_mode = #tpu.pipeline_mode<synchronous>, transform_indices = @transform_5, window_bounds = array<i64: 4, 8, 32>}, {pipeline_mode = #tpu.pipeline_mode<synchronous>, transform_indices = @transform_6, window_bounds = array<i64: 1, 32>}, {transform_indices = @transform_7, window_bounds = array<i64: 1, 1, 8>}, {pipeline_mode = #tpu.pipeline_mode<synchronous>, transform_indices = @transform_8, window_bounds = array<i64: 1, 32>}, {pipeline_mode = #tpu.pipeline_mode<synchronous>, transform_indices = @transform_9, window_bounds = array<i64: 1, 32>}, {transform_indices = @transform_10, window_bounds = array<i64: 1, 8, 32>}]} {
    %c0 = arith.constant 0 : index
    %c0_0 = arith.constant 0 : index
    %c0_1 = arith.constant 0 : index
    %0 = vector.load %arg2[%c0, %c0_0, %c0_1] : memref<1x8x32xbf16, #tpu.memory_space<vmem>>, vector<1x8x32xbf16>
    %1 = vector.shape_cast %0 : vector<1x8x32xbf16> to vector<8x32xbf16>
    %c0_2 = arith.constant 0 : index
    %c0_3 = arith.constant 0 : index
    %c0_4 = arith.constant 0 : index
    %2 = vector.load %arg3[%c0_2, %c0_3, %c0_4] : memref<1x8x32xbf16, #tpu.memory_space<vmem>>, vector<1x8x32xbf16>
    %3 = vector.shape_cast %2 : vector<1x8x32xbf16> to vector<8x32xbf16>
    %c0_5 = arith.constant 0 : index
    %c0_6 = arith.constant 0 : index
    %c0_7 = arith.constant 0 : index
    %4 = vector.load %arg9[%c0_5, %c0_6, %c0_7] : memref<1x1x8xi8, #tpu.memory_space<vmem>>, vector<1x1x8xi8>
    %5 = vector.shape_cast %4 : vector<1x1x8xi8> to vector<1x8xi8>
    %6 = arith.sitofp %5 : vector<1x8xi8> to vector<1x8xf32>
    %cst = arith.constant 0.000000e+00 : f32
    %7 = vector.broadcast %cst : f32 to vector<8x32xf32>
    %c0_8 = arith.constant 0 : index
    %c0_9 = arith.constant 0 : index
    %c0_10 = arith.constant 0 : index
    %8 = vector.load %arg4[%c0_8, %c0_9, %c0_10] : memref<4x32x8xbf16, #tpu.memory_space<vmem>>, vector<1x32x8xbf16>
    %9 = vector.shape_cast %8 : vector<1x32x8xbf16> to vector<32x8xbf16>
    %cst_11 = arith.constant dense<0.000000e+00> : vector<8x8xf32>
    %10 = tpu.matmul %1, %9, %cst_11 {dimension_numbers = #tpu.dot_dimension_numbers<[1], [0], [0], [1], [0, 0, 1, 1], [], []>} : vector<8x32xbf16>, vector<32x8xbf16>, vector<8x8xf32> -> vector<8x8xf32>
    %cst_12 = arith.constant 0.353553385 : f32
    %11 = vector.broadcast %cst_12 : f32 to vector<8x8xf32>
    %12 = arith.mulf %10, %11 : vector<8x8xf32>
    %13 = arith.truncf %12 : vector<8x8xf32> to vector<8x8xbf16>
    %cst_13 = arith.constant 0xFF800000 : f32
    %14 = vector.broadcast %cst_13 : f32 to vector<8x1xf32>
    %cst_14 = arith.constant 0.000000e+00 : f32
    %15 = vector.broadcast %cst_14 : f32 to vector<8x1xf32>
    %cst_15 = arith.constant 0.000000e+00 : f32
    %16 = vector.broadcast %cst_15 : f32 to vector<8x8xf32>
    %c0_16 = arith.constant 0 : index
    %c0_17 = arith.constant 0 : index
    %c0_18 = arith.constant 0 : index
    %17 = vector.load %arg5[%c0_16, %c0_17, %c0_18] : memref<4x32x8xbf16, #tpu.memory_space<vmem>>, vector<1x32x8xbf16>
    %18 = vector.shape_cast %17 : vector<1x32x8xbf16> to vector<32x8xbf16>
    %cst_19 = arith.constant dense<0.000000e+00> : vector<8x8xf32>
    %19 = tpu.matmul %3, %18, %cst_19 {dimension_numbers = #tpu.dot_dimension_numbers<[1], [0], [0], [1], [0, 0, 1, 1], [], []>} : vector<8x32xbf16>, vector<32x8xbf16>, vector<8x8xf32> -> vector<8x8xf32>
    %c0_20 = arith.constant 0 : index
    %c0_21 = arith.constant 0 : index
    %c0_22 = arith.constant 0 : index
    %20 = vector.load %arg6[%c0_20, %c0_21, %c0_22] : memref<4x32x8xbf16, #tpu.memory_space<vmem>>, vector<1x32x8xbf16>
    %21 = vector.shape_cast %20 : vector<1x32x8xbf16> to vector<32x8xbf16>
    %cst_23 = arith.constant dense<0.000000e+00> : vector<8x8xf32>
    %22 = tpu.matmul %3, %21, %cst_23 {dimension_numbers = #tpu.dot_dimension_numbers<[1], [0], [0], [1], [0, 0, 1, 1], [], []>} : vector<8x32xbf16>, vector<32x8xbf16>, vector<8x8xf32> -> vector<8x8xf32>
    %23 = arith.truncf %19 : vector<8x8xf32> to vector<8x8xbf16>
    %cst_24 = arith.constant dense<0.000000e+00> : vector<8x8xf32>
    %24 = tpu.matmul %13, %23, %cst_24 {dimension_numbers = #tpu.dot_dimension_numbers<[1], [1], [0], [0], [0, 0, 1, 0], [], []>} : vector<8x8xbf16>, vector<8x8xbf16>, vector<8x8xf32> -> vector<8x8xf32>
    %cst_25 = arith.constant 0.000000e+00 : f32
    %25 = vector.broadcast %cst_25 : f32 to vector<1x8xf32>
    %26 = arith.cmpf oeq, %6, %25 : vector<1x8xf32>
    %cst_26 = arith.constant -3.53553392E-21 : f32
    %27 = vector.shape_cast %26 : vector<1x8xi1> to vector<1x8xi1>
    %28 = vector.broadcast %27 : vector<1x8xi1> to vector<8x8xi1>
    %29 = vector.broadcast %cst_26 : f32 to vector<8x8xf32>
    %30 = arith.select %28, %29, %24 : vector<8x8xi1>, vector<8x8xf32>
    %cst_27 = arith.constant dense<0xFF800000> : vector<8xf32>
    %31 = vector.multi_reduction <maximumf>, %30, %cst_27 [1] : vector<8x8xf32> to vector<8xf32>
    %32 = vector.shape_cast %31 : vector<8xf32> to vector<8x1xf32>
    %33 = arith.maximumf %14, %32 : vector<8x1xf32>
    %34 = arith.subf %14, %33 : vector<8x1xf32>
    %35 = math.exp %34 : vector<8x1xf32>
    %36 = vector.broadcast %33 : vector<8x1xf32> to vector<8x8xf32>
    %37 = arith.subf %30, %36 : vector<8x8xf32>
    %38 = math.exp %37 : vector<8x8xf32>
    %39 = arith.mulf %35, %15 : vector<8x1xf32>
    %cst_28 = arith.constant dense<0.000000e+00> : vector<8xf32>
    %40 = vector.multi_reduction <add>, %38, %cst_28 [1] : vector<8x8xf32> to vector<8xf32>
    %41 = vector.shape_cast %40 : vector<8xf32> to vector<8x1xf32>
    %42 = arith.addf %39, %41 : vector<8x1xf32>
    %43 = vector.broadcast %35 : vector<8x1xf32> to vector<8x8xf32>
    %44 = arith.mulf %43, %16 : vector<8x8xf32>
    %45 = arith.truncf %38 : vector<8x8xf32> to vector<8x8xbf16>
    %46 = arith.truncf %22 : vector<8x8xf32> to vector<8x8xbf16>
    %cst_29 = arith.constant dense<0.000000e+00> : vector<8x8xf32>
    %47 = tpu.matmul %45, %46, %cst_29 {dimension_numbers = #tpu.dot_dimension_numbers<[1], [0], [0], [1], [0, 0, 1, 1], [], []>} : vector<8x8xbf16>, vector<8x8xbf16>, vector<8x8xf32> -> vector<8x8xf32>
    %48 = arith.addf %44, %47 : vector<8x8xf32>
    %49 = tpu.reciprocal %42 {approx = true} : vector<8x1xf32> -> vector<8x1xf32>
    %50 = vector.broadcast %49 : vector<8x1xf32> to vector<8x8xf32>
    %51 = arith.mulf %48, %50 : vector<8x8xf32>
    %52 = arith.truncf %51 : vector<8x8xf32> to vector<8x8xbf16>
    %c0_30 = arith.constant 0 : index
    %c0_31 = arith.constant 0 : index
    %c0_32 = arith.constant 0 : index
    %53 = vector.load %arg7[%c0_30, %c0_31, %c0_32] : memref<4x8x32xbf16, #tpu.memory_space<vmem>>, vector<1x8x32xbf16>
    %54 = vector.shape_cast %53 : vector<1x8x32xbf16> to vector<8x32xbf16>
    %cst_33 = arith.constant dense<0.000000e+00> : vector<8x32xf32>
    %55 = tpu.matmul %52, %54, %cst_33 {dimension_numbers = #tpu.dot_dimension_numbers<[1], [0], [0], [1], [0, 0, 1, 1], [], []>} : vector<8x8xbf16>, vector<8x32xbf16>, vector<8x32xf32> -> vector<8x32xf32>
    %56 = arith.addf %7, %55 : vector<8x32xf32>
    %c1 = arith.constant 1 : index
    %c0_34 = arith.constant 0 : index
    %c0_35 = arith.constant 0 : index
    %57 = vector.load %arg4[%c1, %c0_34, %c0_35] : memref<4x32x8xbf16, #tpu.memory_space<vmem>>, vector<1x32x8xbf16>
    %58 = vector.shape_cast %57 : vector<1x32x8xbf16> to vector<32x8xbf16>
    %cst_36 = arith.constant dense<0.000000e+00> : vector<8x8xf32>
    %59 = tpu.matmul %1, %58, %cst_36 {dimension_numbers = #tpu.dot_dimension_numbers<[1], [0], [0], [1], [0, 0, 1, 1], [], []>} : vector<8x32xbf16>, vector<32x8xbf16>, vector<8x8xf32> -> vector<8x8xf32>
    %cst_37 = arith.constant 0.353553385 : f32
    %60 = vector.broadcast %cst_37 : f32 to vector<8x8xf32>
    %61 = arith.mulf %59, %60 : vector<8x8xf32>
    %62 = arith.truncf %61 : vector<8x8xf32> to vector<8x8xbf16>
    %cst_38 = arith.constant 0xFF800000 : f32
    %63 = vector.broadcast %cst_38 : f32 to vector<8x1xf32>
    %cst_39 = arith.constant 0.000000e+00 : f32
    %64 = vector.broadcast %cst_39 : f32 to vector<8x1xf32>
    %cst_40 = arith.constant 0.000000e+00 : f32
    %65 = vector.broadcast %cst_40 : f32 to vector<8x8xf32>
    %c1_41 = arith.constant 1 : index
    %c0_42 = arith.constant 0 : index
    %c0_43 = arith.constant 0 : index
    %66 = vector.load %arg5[%c1_41, %c0_42, %c0_43] : memref<4x32x8xbf16, #tpu.memory_space<vmem>>, vector<1x32x8xbf16>
    %67 = vector.shape_cast %66 : vector<1x32x8xbf16> to vector<32x8xbf16>
    %cst_44 = arith.constant dense<0.000000e+00> : vector<8x8xf32>
    %68 = tpu.matmul %3, %67, %cst_44 {dimension_numbers = #tpu.dot_dimension_numbers<[1], [0], [0], [1], [0, 0, 1, 1], [], []>} : vector<8x32xbf16>, vector<32x8xbf16>, vector<8x8xf32> -> vector<8x8xf32>
    %c1_45 = arith.constant 1 : index
    %c0_46 = arith.constant 0 : index
    %c0_47 = arith.constant 0 : index
    %69 = vector.load %arg6[%c1_45, %c0_46, %c0_47] : memref<4x32x8xbf16, #tpu.memory_space<vmem>>, vector<1x32x8xbf16>
    %70 = vector.shape_cast %69 : vector<1x32x8xbf16> to vector<32x8xbf16>
    %cst_48 = arith.constant dense<0.000000e+00> : vector<8x8xf32>
    %71 = tpu.matmul %3, %70, %cst_48 {dimension_numbers = #tpu.dot_dimension_numbers<[1], [0], [0], [1], [0, 0, 1, 1], [], []>} : vector<8x32xbf16>, vector<32x8xbf16>, vector<8x8xf32> -> vector<8x8xf32>
    %72 = arith.truncf %68 : vector<8x8xf32> to vector<8x8xbf16>
    %cst_49 = arith.constant dense<0.000000e+00> : vector<8x8xf32>
    %73 = tpu.matmul %62, %72, %cst_49 {dimension_numbers = #tpu.dot_dimension_numbers<[1], [1], [0], [0], [0, 0, 1, 0], [], []>} : vector<8x8xbf16>, vector<8x8xbf16>, vector<8x8xf32> -> vector<8x8xf32>
    %cst_50 = arith.constant 0.000000e+00 : f32
    %74 = vector.broadcast %cst_50 : f32 to vector<1x8xf32>
    %75 = arith.cmpf oeq, %6, %74 : vector<1x8xf32>
    %cst_51 = arith.constant -3.53553392E-21 : f32
    %76 = vector.shape_cast %75 : vector<1x8xi1> to vector<1x8xi1>
    %77 = vector.broadcast %76 : vector<1x8xi1> to vector<8x8xi1>
    %78 = vector.broadcast %cst_51 : f32 to vector<8x8xf32>
    %79 = arith.select %77, %78, %73 : vector<8x8xi1>, vector<8x8xf32>
    %cst_52 = arith.constant dense<0xFF800000> : vector<8xf32>
    %80 = vector.multi_reduction <maximumf>, %79, %cst_52 [1] : vector<8x8xf32> to vector<8xf32>
    %81 = vector.shape_cast %80 : vector<8xf32> to vector<8x1xf32>
    %82 = arith.maximumf %63, %81 : vector<8x1xf32>
    %83 = arith.subf %63, %82 : vector<8x1xf32>
    %84 = math.exp %83 : vector<8x1xf32>
    %85 = vector.broadcast %82 : vector<8x1xf32> to vector<8x8xf32>
    %86 = arith.subf %79, %85 : vector<8x8xf32>
    %87 = math.exp %86 : vector<8x8xf32>
    %88 = arith.mulf %84, %64 : vector<8x1xf32>
    %cst_53 = arith.constant dense<0.000000e+00> : vector<8xf32>
    %89 = vector.multi_reduction <add>, %87, %cst_53 [1] : vector<8x8xf32> to vector<8xf32>
    %90 = vector.shape_cast %89 : vector<8xf32> to vector<8x1xf32>
    %91 = arith.addf %88, %90 : vector<8x1xf32>
    %92 = vector.broadcast %84 : vector<8x1xf32> to vector<8x8xf32>
    %93 = arith.mulf %92, %65 : vector<8x8xf32>
    %94 = arith.truncf %87 : vector<8x8xf32> to vector<8x8xbf16>
    %95 = arith.truncf %71 : vector<8x8xf32> to vector<8x8xbf16>
    %cst_54 = arith.constant dense<0.000000e+00> : vector<8x8xf32>
    %96 = tpu.matmul %94, %95, %cst_54 {dimension_numbers = #tpu.dot_dimension_numbers<[1], [0], [0], [1], [0, 0, 1, 1], [], []>} : vector<8x8xbf16>, vector<8x8xbf16>, vector<8x8xf32> -> vector<8x8xf32>
    %97 = arith.addf %93, %96 : vector<8x8xf32>
    %98 = tpu.reciprocal %91 {approx = true} : vector<8x1xf32> -> vector<8x1xf32>
    %99 = vector.broadcast %98 : vector<8x1xf32> to vector<8x8xf32>
    %100 = arith.mulf %97, %99 : vector<8x8xf32>
    %101 = arith.truncf %100 : vector<8x8xf32> to vector<8x8xbf16>
    %c1_55 = arith.constant 1 : index
    %c0_56 = arith.constant 0 : index
    %c0_57 = arith.constant 0 : index
    %102 = vector.load %arg7[%c1_55, %c0_56, %c0_57] : memref<4x8x32xbf16, #tpu.memory_space<vmem>>, vector<1x8x32xbf16>
    %103 = vector.shape_cast %102 : vector<1x8x32xbf16> to vector<8x32xbf16>
    %cst_58 = arith.constant dense<0.000000e+00> : vector<8x32xf32>
    %104 = tpu.matmul %101, %103, %cst_58 {dimension_numbers = #tpu.dot_dimension_numbers<[1], [0], [0], [1], [0, 0, 1, 1], [], []>} : vector<8x8xbf16>, vector<8x32xbf16>, vector<8x32xf32> -> vector<8x32xf32>
    %105 = arith.addf %56, %104 : vector<8x32xf32>
    %c2 = arith.constant 2 : index
    %c0_59 = arith.constant 0 : index
    %c0_60 = arith.constant 0 : index
    %106 = vector.load %arg4[%c2, %c0_59, %c0_60] : memref<4x32x8xbf16, #tpu.memory_space<vmem>>, vector<1x32x8xbf16>
    %107 = vector.shape_cast %106 : vector<1x32x8xbf16> to vector<32x8xbf16>
    %cst_61 = arith.constant dense<0.000000e+00> : vector<8x8xf32>
    %108 = tpu.matmul %1, %107, %cst_61 {dimension_numbers = #tpu.dot_dimension_numbers<[1], [0], [0], [1], [0, 0, 1, 1], [], []>} : vector<8x32xbf16>, vector<32x8xbf16>, vector<8x8xf32> -> vector<8x8xf32>
    %cst_62 = arith.constant 0.353553385 : f32
    %109 = vector.broadcast %cst_62 : f32 to vector<8x8xf32>
    %110 = arith.mulf %108, %109 : vector<8x8xf32>
    %111 = arith.truncf %110 : vector<8x8xf32> to vector<8x8xbf16>
    %cst_63 = arith.constant 0xFF800000 : f32
    %112 = vector.broadcast %cst_63 : f32 to vector<8x1xf32>
    %cst_64 = arith.constant 0.000000e+00 : f32
    %113 = vector.broadcast %cst_64 : f32 to vector<8x1xf32>
    %cst_65 = arith.constant 0.000000e+00 : f32
    %114 = vector.broadcast %cst_65 : f32 to vector<8x8xf32>
    %c2_66 = arith.constant 2 : index
    %c0_67 = arith.constant 0 : index
    %c0_68 = arith.constant 0 : index
    %115 = vector.load %arg5[%c2_66, %c0_67, %c0_68] : memref<4x32x8xbf16, #tpu.memory_space<vmem>>, vector<1x32x8xbf16>
    %116 = vector.shape_cast %115 : vector<1x32x8xbf16> to vector<32x8xbf16>
    %cst_69 = arith.constant dense<0.000000e+00> : vector<8x8xf32>
    %117 = tpu.matmul %3, %116, %cst_69 {dimension_numbers = #tpu.dot_dimension_numbers<[1], [0], [0], [1], [0, 0, 1, 1], [], []>} : vector<8x32xbf16>, vector<32x8xbf16>, vector<8x8xf32> -> vector<8x8xf32>
    %c2_70 = arith.constant 2 : index
    %c0_71 = arith.constant 0 : index
    %c0_72 = arith.constant 0 : index
    %118 = vector.load %arg6[%c2_70, %c0_71, %c0_72] : memref<4x32x8xbf16, #tpu.memory_space<vmem>>, vector<1x32x8xbf16>
    %119 = vector.shape_cast %118 : vector<1x32x8xbf16> to vector<32x8xbf16>
    %cst_73 = arith.constant dense<0.000000e+00> : vector<8x8xf32>
    %120 = tpu.matmul %3, %119, %cst_73 {dimension_numbers = #tpu.dot_dimension_numbers<[1], [0], [0], [1], [0, 0, 1, 1], [], []>} : vector<8x32xbf16>, vector<32x8xbf16>, vector<8x8xf32> -> vector<8x8xf32>
    %121 = arith.truncf %117 : vector<8x8xf32> to vector<8x8xbf16>
    %cst_74 = arith.constant dense<0.000000e+00> : vector<8x8xf32>
    %122 = tpu.matmul %111, %121, %cst_74 {dimension_numbers = #tpu.dot_dimension_numbers<[1], [1], [0], [0], [0, 0, 1, 0], [], []>} : vector<8x8xbf16>, vector<8x8xbf16>, vector<8x8xf32> -> vector<8x8xf32>
    %cst_75 = arith.constant 0.000000e+00 : f32
    %123 = vector.broadcast %cst_75 : f32 to vector<1x8xf32>
    %124 = arith.cmpf oeq, %6, %123 : vector<1x8xf32>
    %cst_76 = arith.constant -3.53553392E-21 : f32
    %125 = vector.shape_cast %124 : vector<1x8xi1> to vector<1x8xi1>
    %126 = vector.broadcast %125 : vector<1x8xi1> to vector<8x8xi1>
    %127 = vector.broadcast %cst_76 : f32 to vector<8x8xf32>
    %128 = arith.select %126, %127, %122 : vector<8x8xi1>, vector<8x8xf32>
    %cst_77 = arith.constant dense<0xFF800000> : vector<8xf32>
    %129 = vector.multi_reduction <maximumf>, %128, %cst_77 [1] : vector<8x8xf32> to vector<8xf32>
    %130 = vector.shape_cast %129 : vector<8xf32> to vector<8x1xf32>
    %131 = arith.maximumf %112, %130 : vector<8x1xf32>
    %132 = arith.subf %112, %131 : vector<8x1xf32>
    %133 = math.exp %132 : vector<8x1xf32>
    %134 = vector.broadcast %131 : vector<8x1xf32> to vector<8x8xf32>
    %135 = arith.subf %128, %134 : vector<8x8xf32>
    %136 = math.exp %135 : vector<8x8xf32>
    %137 = arith.mulf %133, %113 : vector<8x1xf32>
    %cst_78 = arith.constant dense<0.000000e+00> : vector<8xf32>
    %138 = vector.multi_reduction <add>, %136, %cst_78 [1] : vector<8x8xf32> to vector<8xf32>
    %139 = vector.shape_cast %138 : vector<8xf32> to vector<8x1xf32>
    %140 = arith.addf %137, %139 : vector<8x1xf32>
    %141 = vector.broadcast %133 : vector<8x1xf32> to vector<8x8xf32>
    %142 = arith.mulf %141, %114 : vector<8x8xf32>
    %143 = arith.truncf %136 : vector<8x8xf32> to vector<8x8xbf16>
    %144 = arith.truncf %120 : vector<8x8xf32> to vector<8x8xbf16>
    %cst_79 = arith.constant dense<0.000000e+00> : vector<8x8xf32>
    %145 = tpu.matmul %143, %144, %cst_79 {dimension_numbers = #tpu.dot_dimension_numbers<[1], [0], [0], [1], [0, 0, 1, 1], [], []>} : vector<8x8xbf16>, vector<8x8xbf16>, vector<8x8xf32> -> vector<8x8xf32>
    %146 = arith.addf %142, %145 : vector<8x8xf32>
    %147 = tpu.reciprocal %140 {approx = true} : vector<8x1xf32> -> vector<8x1xf32>
    %148 = vector.broadcast %147 : vector<8x1xf32> to vector<8x8xf32>
    %149 = arith.mulf %146, %148 : vector<8x8xf32>
    %150 = arith.truncf %149 : vector<8x8xf32> to vector<8x8xbf16>
    %c2_80 = arith.constant 2 : index
    %c0_81 = arith.constant 0 : index
    %c0_82 = arith.constant 0 : index
    %151 = vector.load %arg7[%c2_80, %c0_81, %c0_82] : memref<4x8x32xbf16, #tpu.memory_space<vmem>>, vector<1x8x32xbf16>
    %152 = vector.shape_cast %151 : vector<1x8x32xbf16> to vector<8x32xbf16>
    %cst_83 = arith.constant dense<0.000000e+00> : vector<8x32xf32>
    %153 = tpu.matmul %150, %152, %cst_83 {dimension_numbers = #tpu.dot_dimension_numbers<[1], [0], [0], [1], [0, 0, 1, 1], [], []>} : vector<8x8xbf16>, vector<8x32xbf16>, vector<8x32xf32> -> vector<8x32xf32>
    %154 = arith.addf %105, %153 : vector<8x32xf32>
    %c3 = arith.constant 3 : index
    %c0_84 = arith.constant 0 : index
    %c0_85 = arith.constant 0 : index
    %155 = vector.load %arg4[%c3, %c0_84, %c0_85] : memref<4x32x8xbf16, #tpu.memory_space<vmem>>, vector<1x32x8xbf16>
    %156 = vector.shape_cast %155 : vector<1x32x8xbf16> to vector<32x8xbf16>
    %cst_86 = arith.constant dense<0.000000e+00> : vector<8x8xf32>
    %157 = tpu.matmul %1, %156, %cst_86 {dimension_numbers = #tpu.dot_dimension_numbers<[1], [0], [0], [1], [0, 0, 1, 1], [], []>} : vector<8x32xbf16>, vector<32x8xbf16>, vector<8x8xf32> -> vector<8x8xf32>
    %cst_87 = arith.constant 0.353553385 : f32
    %158 = vector.broadcast %cst_87 : f32 to vector<8x8xf32>
    %159 = arith.mulf %157, %158 : vector<8x8xf32>
    %160 = arith.truncf %159 : vector<8x8xf32> to vector<8x8xbf16>
    %cst_88 = arith.constant 0xFF800000 : f32
    %161 = vector.broadcast %cst_88 : f32 to vector<8x1xf32>
    %cst_89 = arith.constant 0.000000e+00 : f32
    %162 = vector.broadcast %cst_89 : f32 to vector<8x1xf32>
    %cst_90 = arith.constant 0.000000e+00 : f32
    %163 = vector.broadcast %cst_90 : f32 to vector<8x8xf32>
    %c3_91 = arith.constant 3 : index
    %c0_92 = arith.constant 0 : index
    %c0_93 = arith.constant 0 : index
    %164 = vector.load %arg5[%c3_91, %c0_92, %c0_93] : memref<4x32x8xbf16, #tpu.memory_space<vmem>>, vector<1x32x8xbf16>
    %165 = vector.shape_cast %164 : vector<1x32x8xbf16> to vector<32x8xbf16>
    %cst_94 = arith.constant dense<0.000000e+00> : vector<8x8xf32>
    %166 = tpu.matmul %3, %165, %cst_94 {dimension_numbers = #tpu.dot_dimension_numbers<[1], [0], [0], [1], [0, 0, 1, 1], [], []>} : vector<8x32xbf16>, vector<32x8xbf16>, vector<8x8xf32> -> vector<8x8xf32>
    %c3_95 = arith.constant 3 : index
    %c0_96 = arith.constant 0 : index
    %c0_97 = arith.constant 0 : index
    %167 = vector.load %arg6[%c3_95, %c0_96, %c0_97] : memref<4x32x8xbf16, #tpu.memory_space<vmem>>, vector<1x32x8xbf16>
    %168 = vector.shape_cast %167 : vector<1x32x8xbf16> to vector<32x8xbf16>
    %cst_98 = arith.constant dense<0.000000e+00> : vector<8x8xf32>
    %169 = tpu.matmul %3, %168, %cst_98 {dimension_numbers = #tpu.dot_dimension_numbers<[1], [0], [0], [1], [0, 0, 1, 1], [], []>} : vector<8x32xbf16>, vector<32x8xbf16>, vector<8x8xf32> -> vector<8x8xf32>
    %170 = arith.truncf %166 : vector<8x8xf32> to vector<8x8xbf16>
    %cst_99 = arith.constant dense<0.000000e+00> : vector<8x8xf32>
    %171 = tpu.matmul %160, %170, %cst_99 {dimension_numbers = #tpu.dot_dimension_numbers<[1], [1], [0], [0], [0, 0, 1, 0], [], []>} : vector<8x8xbf16>, vector<8x8xbf16>, vector<8x8xf32> -> vector<8x8xf32>
    %cst_100 = arith.constant 0.000000e+00 : f32
    %172 = vector.broadcast %cst_100 : f32 to vector<1x8xf32>
    %173 = arith.cmpf oeq, %6, %172 : vector<1x8xf32>
    %cst_101 = arith.constant -3.53553392E-21 : f32
    %174 = vector.shape_cast %173 : vector<1x8xi1> to vector<1x8xi1>
    %175 = vector.broadcast %174 : vector<1x8xi1> to vector<8x8xi1>
    %176 = vector.broadcast %cst_101 : f32 to vector<8x8xf32>
    %177 = arith.select %175, %176, %171 : vector<8x8xi1>, vector<8x8xf32>
    %cst_102 = arith.constant dense<0xFF800000> : vector<8xf32>
    %178 = vector.multi_reduction <maximumf>, %177, %cst_102 [1] : vector<8x8xf32> to vector<8xf32>
    %179 = vector.shape_cast %178 : vector<8xf32> to vector<8x1xf32>
    %180 = arith.maximumf %161, %179 : vector<8x1xf32>
    %181 = arith.subf %161, %180 : vector<8x1xf32>
    %182 = math.exp %181 : vector<8x1xf32>
    %183 = vector.broadcast %180 : vector<8x1xf32> to vector<8x8xf32>
    %184 = arith.subf %177, %183 : vector<8x8xf32>
    %185 = math.exp %184 : vector<8x8xf32>
    %186 = arith.mulf %182, %162 : vector<8x1xf32>
    %cst_103 = arith.constant dense<0.000000e+00> : vector<8xf32>
    %187 = vector.multi_reduction <add>, %185, %cst_103 [1] : vector<8x8xf32> to vector<8xf32>
    %188 = vector.shape_cast %187 : vector<8xf32> to vector<8x1xf32>
    %189 = arith.addf %186, %188 : vector<8x1xf32>
    %190 = vector.broadcast %182 : vector<8x1xf32> to vector<8x8xf32>
    %191 = arith.mulf %190, %163 : vector<8x8xf32>
    %192 = arith.truncf %185 : vector<8x8xf32> to vector<8x8xbf16>
    %193 = arith.truncf %169 : vector<8x8xf32> to vector<8x8xbf16>
    %cst_104 = arith.constant dense<0.000000e+00> : vector<8x8xf32>
    %194 = tpu.matmul %192, %193, %cst_104 {dimension_numbers = #tpu.dot_dimension_numbers<[1], [0], [0], [1], [0, 0, 1, 1], [], []>} : vector<8x8xbf16>, vector<8x8xbf16>, vector<8x8xf32> -> vector<8x8xf32>
    %195 = arith.addf %191, %194 : vector<8x8xf32>
    %196 = tpu.reciprocal %189 {approx = true} : vector<8x1xf32> -> vector<8x1xf32>
    %197 = vector.broadcast %196 : vector<8x1xf32> to vector<8x8xf32>
    %198 = arith.mulf %195, %197 : vector<8x8xf32>
    %199 = arith.truncf %198 : vector<8x8xf32> to vector<8x8xbf16>
    %c3_105 = arith.constant 3 : index
    %c0_106 = arith.constant 0 : index
    %c0_107 = arith.constant 0 : index
    %200 = vector.load %arg7[%c3_105, %c0_106, %c0_107] : memref<4x8x32xbf16, #tpu.memory_space<vmem>>, vector<1x8x32xbf16>
    %201 = vector.shape_cast %200 : vector<1x8x32xbf16> to vector<8x32xbf16>
    %cst_108 = arith.constant dense<0.000000e+00> : vector<8x32xf32>
    %202 = tpu.matmul %199, %201, %cst_108 {dimension_numbers = #tpu.dot_dimension_numbers<[1], [0], [0], [1], [0, 0, 1, 1], [], []>} : vector<8x8xbf16>, vector<8x32xbf16>, vector<8x32xf32> -> vector<8x32xf32>
    %203 = arith.addf %154, %202 : vector<8x32xf32>
    %c0_109 = arith.constant 0 : index
    %c0_110 = arith.constant 0 : index
    %204 = vector.load %arg8[%c0_109, %c0_110] : memref<1x32xf32, #tpu.memory_space<vmem>>, vector<1x32xf32>
    %205 = vector.broadcast %204 : vector<1x32xf32> to vector<8x32xf32>
    %206 = arith.addf %203, %205 : vector<8x32xf32>
    %207 = arith.extf %1 : vector<8x32xbf16> to vector<8x32xf32>
    %208 = arith.addf %206, %207 : vector<8x32xf32>
    %c0_111 = arith.constant 0 : index
    %c0_112 = arith.constant 0 : index
    %209 = vector.load %arg10[%c0_111, %c0_112] : memref<1x32xf32, #tpu.memory_space<vmem>>, vector<1x32xf32>
    %c0_113 = arith.constant 0 : index
    %c0_114 = arith.constant 0 : index
    %210 = vector.load %arg11[%c0_113, %c0_114] : memref<1x32xf32, #tpu.memory_space<vmem>>, vector<1x32xf32>
    %cst_115 = arith.constant dense<0.000000e+00> : vector<8xf32>
    %211 = vector.multi_reduction <add>, %208, %cst_115 [1] : vector<8x32xf32> to vector<8xf32>
    %212 = vector.shape_cast %211 : vector<8xf32> to vector<8x1xf32>
    %cst_116 = arith.constant 3.200000e+01 : f32
    %213 = vector.broadcast %cst_116 : f32 to vector<8x1xf32>
    %214 = arith.divf %212, %213 : vector<8x1xf32>
    %215 = vector.broadcast %214 : vector<8x1xf32> to vector<8x32xf32>
    %216 = arith.subf %208, %215 : vector<8x32xf32>
    %217 = arith.mulf %216, %216 : vector<8x32xf32>
    %cst_117 = arith.constant dense<0.000000e+00> : vector<8xf32>
    %218 = vector.multi_reduction <add>, %217, %cst_117 [1] : vector<8x32xf32> to vector<8xf32>
    %219 = vector.shape_cast %218 : vector<8xf32> to vector<8x1xf32>
    %cst_118 = arith.constant 3.200000e+01 : f32
    %220 = vector.broadcast %cst_118 : f32 to vector<8x1xf32>
    %221 = arith.divf %219, %220 : vector<8x1xf32>
    %222 = vector.broadcast %214 : vector<8x1xf32> to vector<8x32xf32>
    %223 = arith.subf %208, %222 : vector<8x32xf32>
    %cst_119 = arith.constant 9.99999974E-6 : f32
    %224 = vector.broadcast %cst_119 : f32 to vector<8x1xf32>
    %225 = arith.addf %221, %224 : vector<8x1xf32>
    %226 = math.rsqrt %225 : vector<8x1xf32>
    %227 = vector.broadcast %226 : vector<8x1xf32> to vector<8x32xf32>
    %228 = arith.mulf %223, %227 : vector<8x32xf32>
    %229 = vector.broadcast %209 : vector<1x32xf32> to vector<8x32xf32>
    %230 = arith.mulf %228, %229 : vector<8x32xf32>
    %231 = vector.broadcast %210 : vector<1x32xf32> to vector<8x32xf32>
    %232 = arith.addf %230, %231 : vector<8x32xf32>
    %233 = arith.truncf %232 : vector<8x32xf32> to vector<8x32xbf16>
    %c0_120 = arith.constant 0 : index
    %c0_121 = arith.constant 0 : index
    %c0_122 = arith.constant 0 : index
    %234 = vector.load %arg12[%c0_120, %c0_121, %c0_122] : memref<1x8x32xbf16, #tpu.memory_space<vmem>>, vector<1x8x32xbf16>
    %235 = vector.shape_cast %234 : vector<1x8x32xbf16> to vector<8x32xbf16>
    %236 = vector.shape_cast %233 : vector<8x32xbf16> to vector<1x8x32xbf16>
    tpu.vector_store %arg12[%c0_120, %c0_121, %c0_122], %236 {strides = array<i32>} : memref<1x8x32xbf16, #tpu.memory_space<vmem>>, vector<1x8x32xbf16>,
    return
  }
  func.func @transform_0(%arg0: i32, %arg1: i32) -> (i32, i32, i32) {
    %c0_i32 = arith.constant 0 : i32
    %c0_i32_0 = arith.constant 0 : i32
    return %arg0, %arg1, %c0_i32 : i32, i32, i32
  }
  func.func @transform_1(%arg0: i32, %arg1: i32) -> (i32, i32, i32) {
    %c0_i32 = arith.constant 0 : i32
    %c0_i32_0 = arith.constant 0 : i32
    %c0_i32_1 = arith.constant 0 : i32
    return %arg0, %c0_i32, %c0_i32_0 : i32, i32, i32
  }
  func.func @transform_2(%arg0: i32, %arg1: i32) -> (i32, i32, i32) {
    %c0_i32 = arith.constant 0 : i32
    %c0_i32_0 = arith.constant 0 : i32
    %c0_i32_1 = arith.constant 0 : i32
    %c0_i32_2 = arith.constant 0 : i32
    return %c0_i32, %c0_i32_0, %c0_i32_1 : i32, i32, i32
  }
  func.func @transform_3(%arg0: i32, %arg1: i32) -> (i32, i32, i32) {
    %c0_i32 = arith.constant 0 : i32
    %c0_i32_0 = arith.constant 0 : i32
    %c0_i32_1 = arith.constant 0 : i32
    %c0_i32_2 = arith.constant 0 : i32
    return %c0_i32, %c0_i32_0, %c0_i32_1 : i32, i32, i32
  }
  func.func @transform_4(%arg0: i32, %arg1: i32) -> (i32, i32, i32) {
    %c0_i32 = arith.constant 0 : i32
    %c0_i32_0 = arith.constant 0 : i32
    %c0_i32_1 = arith.constant 0 : i32
    %c0_i32_2 = arith.constant 0 : i32
    return %c0_i32, %c0_i32_0, %c0_i32_1 : i32, i32, i32
  }
  func.func @transform_5(%arg0: i32, %arg1: i32) -> (i32, i32, i32) {
    %c0_i32 = arith.constant 0 : i32
    %c0_i32_0 = arith.constant 0 : i32
    %c0_i32_1 = arith.constant 0 : i32
    %c0_i32_2 = arith.constant 0 : i32
    return %c0_i32, %c0_i32_0, %c0_i32_1 : i32, i32, i32
  }
  func.func @transform_6(%arg0: i32, %arg1: i32) -> (i32, i32) {
    %c0_i32 = arith.constant 0 : i32
    %c0_i32_0 = arith.constant 0 : i32
    %c0_i32_1 = arith.constant 0 : i32
    return %c0_i32, %c0_i32_0 : i32, i32
  }
  func.func @transform_7(%arg0: i32, %arg1: i32) -> (i32, i32, i32) {
    %c0_i32 = arith.constant 0 : i32
    %c0_i32_0 = arith.constant 0 : i32
    %c0_i32_1 = arith.constant 0 : i32
    return %arg0, %c0_i32, %c0_i32_0 : i32, i32, i32
  }
  func.func @transform_8(%arg0: i32, %arg1: i32) -> (i32, i32) {
    %c0_i32 = arith.constant 0 : i32
    %c0_i32_0 = arith.constant 0 : i32
    %c0_i32_1 = arith.constant 0 : i32
    return %c0_i32, %c0_i32_0 : i32, i32
  }
  func.func @transform_9(%arg0: i32, %arg1: i32) -> (i32, i32) {
    %c0_i32 = arith.constant 0 : i32
    %c0_i32_0 = arith.constant 0 : i32
    %c0_i32_1 = arith.constant 0 : i32
    return %c0_i32, %c0_i32_0 : i32, i32
  }
  func.func @transform_10(%arg0: i32, %arg1: i32) -> (i32, i32, i32) {
    %c0_i32 = arith.constant 0 : i32
    %c0_i32_0 = arith.constant 0 : i32
    return %arg0, %arg1, %c0_i32 : i32, i32, i32
  }
}

</mosaic_0001>

<llo_original>
// kernel: decoder_forward.13
$region0: #{decoder_forward.13}
  #allocation0 [shape = 'u32[]', space=smem, size = 0x4, offset = 0x4, fixed_abs, tag = 'smem constant byte address 0x4 - core index']
  #allocation1 [shape = 'u32[144,128]{1,0:T(1,128)}', space=vmem, size = 0x12000, scoped, tag = 'internal scratch']
  %s0 = inlined_call_operand.vmem [shape: bf16[16,32], index: 0, kind: input, shape index: {}]
  %s1 = inlined_call_operand.vmem [shape: bf16[32,16], index: 1, kind: input, shape index: {}]
  %s2 = inlined_call_operand.vmem [shape: f32[1,16], index: 2, kind: input, shape index: {}]
  %s3 = inlined_call_operand.hbm [shape: f32[16,16], index: 3, kind: output, shape index: {}]
  %s4 = sld [smem:[#allocation0]]
  $region22: #{decoder_forward.13} parent=0
    _
  %s6 = ssub.s32 1, %s4
  %s7 = scalar_select 0, %s6, %s4
  $region1: #{decoder_forward.13} parent=0
    #allocation2 [shape = 'u8[8192]{0}', space=vmem, size = 0x2000, scoped, tag = 'output window, operand 0, single buffered']
    #allocation3 [shape = 's32[1]{0}', space=sflag, size = 0x4, scoped, tag = 'scoped memory for decoder_forward.13']
    %8 = vsyncpa [#allocation3], 0
    // Predicated region
    $region2: #{decoder_forward.13} parent=1 // pred_check
      _
    $region3: #{decoder_forward.13} parent=1 // pred_check_branch
      %10 = sbr.rel (0) target = $region5
    $region4: #{decoder_forward.13} parent=1 // pred_region
      _
    $region5: #{decoder_forward.13} parent=1 // pred_fallthru
      _
    // Predicated region
    $region6: #{decoder_forward.13} parent=1 // pred_check
      _
    $region7: #{decoder_forward.13} parent=1 // pred_check_branch
      %12 = sbr.rel (0) target = $region9
    $region8: #{decoder_forward.13} parent=1 // pred_region
      _
    $region9: #{decoder_forward.13} parent=1 // pred_fallthru
      _
    // Predicated region
    $region10: #{decoder_forward.13} parent=1 // pred_check
      _
    $region11: #{decoder_forward.13} parent=1 // pred_check_branch
      %14 = sbr.rel (0) target = $region13
    $region12: #{decoder_forward.13} parent=1 // pred_region
      _
    $region13: #{decoder_forward.13} parent=1 // pred_fallthru
      _
    %v16 = vld [vmem:[%s0] sm:$0xf]
    %v17 = vld [vmem:[%s0 + $0x4] sm:$0xf]
    %v18 = vld [vmem:[%s1] sm:$0xf]
    %v19 = vld [vmem:[%s1 + $0x4] sm:$0xf]
    %v20 = vld [vmem:[%s1 + $0x8] sm:$0xf]
    %v21 = vld [vmem:[%s1 + $0xc] sm:$0xf]
    %v22 = vld [vmem:[%s2] sm:$0x1]
    %v24 = vlaneseq
    %v25 = vshrl.u32 %v24, 7
    %v26 = vsub.s32 0, %v25
    %v27 = vrot.slane %v22, %v26
    %v31 = vunpack.c.l.b16 %v16
    %v32 = vunpack.c.l.b16 %v17
    %v33 = vpack.c.b16 %v32, %v31
    %v38 = vunpack.c.l.b16 %v18
    %v39 = vunpack.c.l.b16 %v19
    %v40 = vunpack.c.l.b16 %v20
    %v41 = vunpack.c.l.b16 %v21
    %v42 = vpack.c.b16 %v39, %v38
    %v43 = vpack.c.b16 %v41, %v40
    %vm46 = vcmask 261120
    %v48 = vsel %vm46, %v33, 0
    %50 = vmatprep.subr.bf16.mxu0 0
    %51 = vmatpush1.bf16.msra.mxu0 %v42
    %52 = vmatprep.subr.bf16.mxu0 0
    %53 = vmatpush1.bf16.msra.mxu0 %v43
    %54 = vmatprep.subr.bf16.mxu0 0
    %55 = vmatpush1.bf16.msra.mxu0 0
    %56 = vmatprep.subr.bf16.mxu0 0
    %57 = vmatpush1.bf16.msra.mxu0 0
    %58 = vmatprep.subr.bf16.mxu0 0
    %59 = vmatpush1.bf16.msra.mxu0 0
    %60 = vmatprep.subr.bf16.mxu0 0
    %61 = vmatpush1.bf16.msra.mxu0 0
    %62 = vmatprep.subr.bf16.mxu0 0
    %63 = vmatpush1.bf16.msra.mxu0 0
    %64 = vmatprep.subr.bf16.mxu0 0
    %65 = vmatpush1.bf16.msra.mxu0 0
    %66 = vmatprep.subr.bf16.mxu0 0
    %67 = vmatpush1.bf16.msra.mxu0 0
    %68 = vmatprep.subr.bf16.mxu0 0
    %69 = vmatpush1.bf16.msra.mxu0 0
    %70 = vmatprep.subr.bf16.mxu0 0
    %71 = vmatpush1.bf16.msra.mxu0 0
    %72 = vmatprep.subr.bf16.mxu0 0
    %73 = vmatpush1.bf16.msra.mxu0 0
    %74 = vmatprep.subr.bf16.mxu0 0
    %75 = vmatpush1.bf16.msra.mxu0 0
    %76 = vmatprep.subr.bf16.mxu0 0
    %77 = vmatpush1.bf16.msra.mxu0 0
    %78 = vmatprep.subr.bf16.mxu0 0
    %79 = vmatpush1.bf16.msra.mxu0 0
    %80 = vmatprep.subr.bf16.mxu0 0
    %81 = vmatpush1.bf16.msra.mxu0 0
    %82 = vmatprep.mubr.bf16.mxu0 0
    %83 = vmatmul.mubr.bf16.gmra.mrb[0].mxu0 %v48
    %v84 = vpop.f32.mrb[0].mxu0
    %v85 = vadd.f32 %v27, %v84
    %v86 = vpop.f32.mrb[0].mxu0
    %v87 = vpop.f32.mrb[0].mxu0
    %v88 = vadd.f32 %v27, %v87
    %v89 = vpop.f32.mrb[0].mxu0
    %90 = vdwg.mxu0
    %vm91 = vcmask 130048
    %92 = vst.msk [vmem:[#allocation2] sm:$0xff] %vm91, %v85
    %93 = vst.msk [vmem:[#allocation2 + $0x8] sm:$0xff] %vm91, %v88
    // Predicated region
    $region14: #{decoder_forward.13} parent=1 // pred_check
      _
    $region15: #{decoder_forward.13} parent=1 // pred_check_branch
      %95 = sbr.rel (0) target = $region17
    $region16: #{decoder_forward.13} parent=1 // pred_region
      %s97 = ssub.s32 256, 256
      %98 = vsyncadd [#allocation3], %s97
      %s99 = sshll.u32 [#allocation2], 4
      %s100 = int_to_ptr.vmem [resolvable:$true] %s99
      %105 = dma.vmem_to_hbm [thread:$0]  %s100, 256, %s3, [#allocation3], 128, 128, 8
    $region17: #{decoder_forward.13} parent=1 // pred_fallthru
      _
    // Predicated region
    $region18: #{decoder_forward.13} parent=1 // pred_check
      _
    $region19: #{decoder_forward.13} parent=1 // pred_check_branch
      %107 = sbr.rel (0) target = $region21
    $region20: #{decoder_forward.13} parent=1 // pred_region
      %108 = dma.done [#allocation3], 256
    $region21: #{decoder_forward.13} parent=1 // pred_fallthru
      _
    %109 = vsyncpa [#allocation3], 1

// kernel: decoder_forward.9
$region0: #{decoder_forward.9}
  #allocation0 [shape = 'u32[]', space=smem, size = 0x4, offset = 0x4, fixed_abs, tag = 'smem constant byte address 0x4 - core index']
  #allocation1 [shape = 'u32[144,128]{1,0:T(1,128)}', space=vmem, size = 0x12000, scoped, tag = 'internal scratch']
  #allocation2 [shape = 'f32[16,32]{1,0:T(8,128)}', space=vmem, size = 0x2000, scoped, tag = 'scratch operand']
  %s0 = inlined_call_operand.vmem [shape: bf16[16,32], index: 0, kind: input, shape index: {}]
  %s1 = inlined_call_operand.vmem [shape: bf16[32,64], index: 1, kind: input, shape index: {}]
  %s2 = inlined_call_operand.vmem [shape: f32[1,64], index: 2, kind: input, shape index: {}]
  %s3 = inlined_call_operand.vmem [shape: bf16[64,32], index: 3, kind: input, shape index: {}]
  %s4 = inlined_call_operand.vmem [shape: f32[1,32], index: 4, kind: input, shape index: {}]
  %s5 = inlined_call_operand.vmem [shape: f32[1,32], index: 5, kind: input, shape index: {}]
  %s6 = inlined_call_operand.vmem [shape: f32[1,32], index: 6, kind: input, shape index: {}]
  %s7 = inlined_call_operand.vmem [shape: bf16[16,32], index: 7, kind: output, shape index: {}]
  %s8 = sld [smem:[#allocation0]]
  $region46: #{decoder_forward.9} parent=0
    _
  %s10 = ssub.s32 1, %s8
  %s11 = scalar_select 0, %s10, %s8
  // Predicated region
  $region2: #{decoder_forward.9} parent=0 // pred_check
    _
  $region3: #{decoder_forward.9} parent=0 // pred_check_branch
    %13 = sbr.rel (0) target = $region5
  $region4: #{decoder_forward.9} parent=0 // pred_region
    _
  $region5: #{decoder_forward.9} parent=0 // pred_fallthru
    _
  // Predicated region
  $region6: #{decoder_forward.9} parent=0 // pred_check
    _
  $region7: #{decoder_forward.9} parent=0 // pred_check_branch
    %15 = sbr.rel (0) target = $region9
  $region8: #{decoder_forward.9} parent=0 // pred_region
    _
  $region9: #{decoder_forward.9} parent=0 // pred_fallthru
    _
  // Predicated region
  $region10: #{decoder_forward.9} parent=0 // pred_check
    _
  $region11: #{decoder_forward.9} parent=0 // pred_check_branch
    %17 = sbr.rel (0) target = $region13
  $region12: #{decoder_forward.9} parent=0 // pred_region
    _
  $region13: #{decoder_forward.9} parent=0 // pred_fallthru
    _
  // Predicated region
  $region14: #{decoder_forward.9} parent=0 // pred_check
    _
  $region15: #{decoder_forward.9} parent=0 // pred_check_branch
    %19 = sbr.rel (0) target = $region17
  $region16: #{decoder_forward.9} parent=0 // pred_region
    _
  $region17: #{decoder_forward.9} parent=0 // pred_fallthru
    _
  // Predicated region
  $region18: #{decoder_forward.9} parent=0 // pred_check
    _
  $region19: #{decoder_forward.9} parent=0 // pred_check_branch
    %21 = sbr.rel (0) target = $region21
  $region20: #{decoder_forward.9} parent=0 // pred_region
    _
  $region21: #{decoder_forward.9} parent=0 // pred_fallthru
    _
  // Predicated region
  $region22: #{decoder_forward.9} parent=0 // pred_check
    _
  $region23: #{decoder_forward.9} parent=0 // pred_check_branch
    %23 = sbr.rel (0) target = $region25
  $region24: #{decoder_forward.9} parent=0 // pred_region
    _
  $region25: #{decoder_forward.9} parent=0 // pred_fallthru
    _
  // Predicated region
  $region26: #{decoder_forward.9} parent=0 // pred_check
    _
  $region27: #{decoder_forward.9} parent=0 // pred_check_branch
    %25 = sbr.rel (0) target = $region29
  $region28: #{decoder_forward.9} parent=0 // pred_region
    _
  $region29: #{decoder_forward.9} parent=0 // pred_fallthru
    _
  %p27 = scmp.eq.s32.totalorder 0, 0
  // Predicated region
  $region30: #{decoder_forward.9} parent=0 // pred_check
    %p28 = pneg %p27
  $region31: #{decoder_forward.9} parent=0 // pred_check_branch
    %30 = sbr.rel (%p28) target = $region33
  $region32: #{decoder_forward.9} parent=0 // pred_region
    %vm31 = vcmask 261120
    %32 = vst.msk [vmem:[#allocation2] sm:$0xff] %vm31, 0.0
    %33 = vst.msk [vmem:[#allocation2 + $0x8] sm:$0xff] %vm31, 0.0
  $region33: #{decoder_forward.9} parent=0 // pred_fallthru
    _
  %v34 = vld [vmem:[%s0] sm:$0xf]
  %v35 = vld [vmem:[%s0 + $0x4] sm:$0xf]
  %v36 = vld [vmem:[%s1] sm:$0xf]
  %v37 = vld [vmem:[%s1 + $0x4] sm:$0xf]
  %v38 = vld [vmem:[%s1 + $0x8] sm:$0xf]
  %v39 = vld [vmem:[%s1 + $0xc] sm:$0xf]
  %v40 = vld [vmem:[%s2] sm:$0x1]
  %v42 = vlaneseq
  %v43 = vshrl.u32 %v42, 7
  %v44 = vsub.s32 0, %v43
  %v45 = vrot.slane %v40, %v44
  %v49 = vunpack.c.l.b16 %v34
  %v50 = vunpack.c.l.b16 %v35
  %v51 = vpack.c.b16 %v50, %v49
  %v56 = vunpack.c.l.b16 %v36
  %v57 = vunpack.c.l.b16 %v37
  %v58 = vunpack.c.l.b16 %v38
  %v59 = vunpack.c.l.b16 %v39
  %v60 = vpack.c.b16 %v57, %v56
  %v61 = vpack.c.b16 %v59, %v58
  %vm64 = vcmask 261120
  %v66 = vsel %vm64, %v51, 0
  %68 = vmatprep.subr.bf16.mxu0 0
  %69 = vmatpush1.bf16.msra.mxu0 %v60
  %70 = vmatprep.subr.bf16.mxu0 0
  %71 = vmatpush1.bf16.msra.mxu0 %v61
  %72 = vmatprep.subr.bf16.mxu0 0
  %73 = vmatpush1.bf16.msra.mxu0 0
  %74 = vmatprep.subr.bf16.mxu0 0
  %75 = vmatpush1.bf16.msra.mxu0 0
  %76 = vmatprep.subr.bf16.mxu0 0
  %77 = vmatpush1.bf16.msra.mxu0 0
  %78 = vmatprep.subr.bf16.mxu0 0
  %79 = vmatpush1.bf16.msra.mxu0 0
  %80 = vmatprep.subr.bf16.mxu0 0
  %81 = vmatpush1.bf16.msra.mxu0 0
  %82 = vmatprep.subr.bf16.mxu0 0
  %83 = vmatpush1.bf16.msra.mxu0 0
  %84 = vmatprep.subr.bf16.mxu0 0
  %85 = vmatpush1.bf16.msra.mxu0 0
  %86 = vmatprep.subr.bf16.mxu0 0
  %87 = vmatpush1.bf16.msra.mxu0 0
  %88 = vmatprep.subr.bf16.mxu0 0
  %89 = vmatpush1.bf16.msra.mxu0 0
  %90 = vmatprep.subr.bf16.mxu0 0
  %91 = vmatpush1.bf16.msra.mxu0 0
  %92 = vmatprep.subr.bf16.mxu0 0
  %93 = vmatpush1.bf16.msra.mxu0 0
  %94 = vmatprep.subr.bf16.mxu0 0
  %95 = vmatpush1.bf16.msra.mxu0 0
  %96 = vmatprep.subr.bf16.mxu0 0
  %97 = vmatpush1.bf16.msra.mxu0 0
  %98 = vmatprep.subr.bf16.mxu0 0
  %99 = vmatpush1.bf16.msra.mxu0 0
  %100 = vmatprep.mubr.bf16.mxu0 0
  %101 = vmatmul.mubr.bf16.gmra.mrb[0].mxu0 %v66
  %v102 = vpop.f32.mrb[0].mxu0
  %v103 = vadd.f32 %v45, %v102
  %v104 = vpop.f32.mrb[0].mxu0
  %v105 = vpop.f32.mrb[0].mxu0
  %v106 = vadd.f32 %v45, %v105
  %v107 = vpop.f32.mrb[0].mxu0
  %108 = vdwg.mxu0
  %v109 = vmax.f32 %v103, 0.0
  %v110 = vmax.f32 %v106, 0.0
  %v111 = vld [vmem:[#allocation2] sm:$0xff]
  %v112 = vld [vmem:[#allocation2 + $0x8] sm:$0xff]
  %v113 = vpack.c.bf16 %v110, %v109
  %v114 = vld [vmem:[%s3] sm:$0xf]
  %v115 = vld [vmem:[%s3 + $0x4] sm:$0xf]
  %v116 = vld [vmem:[%s3 + $0x8] sm:$0xf]
  %v117 = vld [vmem:[%s3 + $0xc] sm:$0xf]
  %v118 = vld [vmem:[%s3 + $0x10] sm:$0xf]
  %v119 = vld [vmem:[%s3 + $0x14] sm:$0xf]
  %v120 = vld [vmem:[%s3 + $0x18] sm:$0xf]
  %v121 = vld [vmem:[%s3 + $0x1c] sm:$0xf]
  %v130 = vunpack.c.l.b16 %v114
  %v131 = vunpack.c.l.b16 %v115
  %v132 = vunpack.c.l.b16 %v116
  %v133 = vunpack.c.l.b16 %v117
  %v134 = vunpack.c.l.b16 %v118
  %v135 = vunpack.c.l.b16 %v119
  %v136 = vunpack.c.l.b16 %v120
  %v137 = vunpack.c.l.b16 %v121
  %v138 = vpack.c.b16 %v131, %v130
  %v139 = vpack.c.b16 %v133, %v132
  %v140 = vpack.c.b16 %v135, %v134
  %v141 = vpack.c.b16 %v137, %v136
  %vm146 = vcmask 523264
  %v148 = vsel %vm146, %v113, 0
  %150 = vmatprep.subr.bf16.mxu0 0
  %151 = vmatpush1.bf16.msra.mxu0 %v138
  %152 = vmatprep.subr.bf16.mxu0 0
  %153 = vmatpush1.bf16.msra.mxu0 %v139
  %154 = vmatprep.subr.bf16.mxu0 0
  %155 = vmatpush1.bf16.msra.mxu0 %v140
  %156 = vmatprep.subr.bf16.mxu0 0
  %157 = vmatpush1.bf16.msra.mxu0 %v141
  %158 = vmatprep.subr.bf16.mxu0 0
  %159 = vmatpush1.bf16.msra.mxu0 0
  %160 = vmatprep.subr.bf16.mxu0 0
  %161 = vmatpush1.bf16.msra.mxu0 0
  %162 = vmatprep.subr.bf16.mxu0 0
  %163 = vmatpush1.bf16.msra.mxu0 0
  %164 = vmatprep.subr.bf16.mxu0 0
  %165 = vmatpush1.bf16.msra.mxu0 0
  %166 = vmatprep.subr.bf16.mxu0 0
  %167 = vmatpush1.bf16.msra.mxu0 0
  %168 = vmatprep.subr.bf16.mxu0 0
  %169 = vmatpush1.bf16.msra.mxu0 0
  %170 = vmatprep.subr.bf16.mxu0 0
  %171 = vmatpush1.bf16.msra.mxu0 0
  %172 = vmatprep.subr.bf16.mxu0 0
  %173 = vmatpush1.bf16.msra.mxu0 0
  %174 = vmatprep.subr.bf16.mxu0 0
  %175 = vmatpush1.bf16.msra.mxu0 0
  %176 = vmatprep.subr.bf16.mxu0 0
  %177 = vmatpush1.bf16.msra.mxu0 0
  %178 = vmatprep.subr.bf16.mxu0 0
  %179 = vmatpush1.bf16.msra.mxu0 0
  %180 = vmatprep.subr.bf16.mxu0 0
  %181 = vmatpush1.bf16.msra.mxu0 0
  %182 = vmatprep.mubr.bf16.mxu0 0
  %183 = vmatmul.mubr.bf16.gmra.mrb[0].mxu0 %v148
  %v184 = vpop.f32.mrb[0].mxu0
  %v185 = vadd.f32 0.0, %v184
  %v186 = vpop.f32.mrb[0].mxu0
  %v187 = vpop.f32.mrb[0].mxu0
  %v188 = vadd.f32 0.0, %v187
  %v189 = vpop.f32.mrb[0].mxu0
  %190 = vdwg.mxu0
  %v191 = vadd.f32 %v111, %v185
  %v192 = vadd.f32 %v112, %v188
  %193 = vst.msk [vmem:[#allocation2] sm:$0xff] %vm64, %v191
  %194 = vst.msk [vmem:[#allocation2 + $0x8] sm:$0xff] %vm64, %v192
  // Predicated region
  $region34: #{decoder_forward.9} parent=0 // pred_check
    %p195 = pneg %p27
  $region35: #{decoder_forward.9} parent=0 // pred_check_branch
    %197 = sbr.rel (%p195) target = $region37
  $region36: #{decoder_forward.9} parent=0 // pred_region
    %v198 = vld [vmem:[#allocation2] sm:$0xff]
    %v199 = vld [vmem:[#allocation2 + $0x8] sm:$0xff]
    %v200 = vld [vmem:[%s4] sm:$0x1]
    %v202 = vlaneseq
    %v203 = vshrl.u32 %v202, 7
    %v204 = vsub.s32 0, %v203
    %v205 = vrot.slane %v200, %v204
    %v207 = vadd.f32 %v198, %v205
    %v208 = vadd.f32 %v199, %v205
    %v209 = vunpack.c.l.bf16 %v34
    %v210 = vunpack.c.l.bf16 %v35
    %v211 = vadd.f32 %v207, %v209
    %v212 = vadd.f32 %v208, %v210
    %v213 = vld [vmem:[%s5] sm:$0x1]
    %v214 = vld [vmem:[%s6] sm:$0x1]
    %v215 = vsel %vm64, %v211, 0.0
    %216 = vadd.xlane.f32.xlu0 %v215
    %v217 = vpop.xlane.xlu0 %216
    %v218 = vsel %vm64, %v212, 0.0
    %219 = vadd.xlane.f32.xlu0 %v218
    %v220 = vpop.xlane.xlu0 %219
    %v221 = vrcp.pop 32.0
    %v222 = vmul.f32 %v217, %v221
    %v223 = vmul.f32 %v220, %v221
    %v224 = vsub.f32 %v211, %v222
    %v225 = vsub.f32 %v212, %v223
    %v226 = vmul.f32 %v224, %v224
    %v227 = vmul.f32 %v225, %v225
    %v228 = vsel %vm64, %v226, 0.0
    %229 = vadd.xlane.f32.xlu0 %v228
    %v230 = vpop.xlane.xlu0 %229
    %v231 = vsel %vm64, %v227, 0.0
    %232 = vadd.xlane.f32.xlu0 %v231
    %v233 = vpop.xlane.xlu0 %232
    %v234 = vmul.f32 %v230, %v221
    %v235 = vmul.f32 %v233, %v221
    %v236 = vadd.f32 %v234, 1e-05
    %v237 = vadd.f32 %v235, 1e-05
    %v238 = vrsqrt.pop %v236
    %v239 = vrsqrt.pop %v237
    %v240 = vmul.f32 %v224, %v238
    %v241 = vmul.f32 %v225, %v239
    %v243 = vlaneseq
    %v244 = vshrl.u32 %v243, 7
    %v245 = vsub.s32 0, %v244
    %v246 = vrot.slane %v213, %v245
    %v248 = vmul.f32 %v240, %v246
    %v249 = vmul.f32 %v241, %v246
    %v251 = vlaneseq
    %v252 = vshrl.u32 %v251, 7
    %v253 = vsub.s32 0, %v252
    %v254 = vrot.slane %v214, %v253
    %v256 = vadd.f32 %v248, %v254
    %v257 = vadd.f32 %v249, %v254
    %v258 = vpack.c.bf16 %v257, %v256
    %v260 = vunpack.c.l.b16 %v258
    %v261 = vunpack.c.h.b16 %v258
    %v262 = vpack.c.b16 %v260, %v260
    %v263 = vpack.c.b16 %v261, %v261
    %vm266 = vcmask 257024
    %267 = vst.msk [vmem:[%s7] sm:$0xf] %vm266, %v262
    %268 = vst.msk [vmem:[%s7 + $0x4] sm:$0xf] %vm266, %v263
  $region37: #{decoder_forward.9} parent=0 // pred_fallthru
    _
  // Predicated region
  $region38: #{decoder_forward.9} parent=0 // pred_check
    _
  $region39: #{decoder_forward.9} parent=0 // pred_check_branch
    %270 = sbr.rel (0) target = $region41
  $region40: #{decoder_forward.9} parent=0 // pred_region
    _
  $region41: #{decoder_forward.9} parent=0 // pred_fallthru
    _
  // Predicated region
  $region42: #{decoder_forward.9} parent=0 // pred_check
    _
  $region43: #{decoder_forward.9} parent=0 // pred_check_branch
    %272 = sbr.rel (0) target = $region45
  $region44: #{decoder_forward.9} parent=0 // pred_region
    _
  $region45: #{decoder_forward.9} parent=0 // pred_fallthru
    _

// kernel: decoder_forward.7
$region0: #{decoder_forward.7}
  #allocation0 [shape = 'u32[]', space=smem, size = 0x4, offset = 0x4, fixed_abs, tag = 'smem constant byte address 0x4 - core index']
  #allocation1 [shape = 'u32[144,128]{1,0:T(1,128)}', space=vmem, size = 0x12000, scoped, tag = 'internal scratch']
  %s0 = inlined_call_operand.vmem [shape: bf16[2,8,32], index: 0, kind: input, shape index: {}, may-alias: {0,1}]
  %s1 = inlined_call_operand.vmem [shape: bf16[2,8,32], index: 1, kind: input, shape index: {}, may-alias: {0,1}]
  %s2 = inlined_call_operand.vmem [shape: bf16[4,32,8], index: 2, kind: input, shape index: {}]
  %s3 = inlined_call_operand.vmem [shape: bf16[4,32,8], index: 3, kind: input, shape index: {}]
  %s4 = inlined_call_operand.vmem [shape: bf16[4,32,8], index: 4, kind: input, shape index: {}]
  %s5 = inlined_call_operand.vmem [shape: bf16[4,8,32], index: 5, kind: input, shape index: {}]
  %s6 = inlined_call_operand.vmem [shape: f32[1,32], index: 6, kind: input, shape index: {}]
  %s7 = inlined_call_operand.vmem [shape: s8[2,8,8], index: 7, kind: input, shape index: {}]
  %s8 = inlined_call_operand.vmem [shape: f32[1,32], index: 8, kind: input, shape index: {}]
  %s9 = inlined_call_operand.vmem [shape: f32[1,32], index: 9, kind: input, shape index: {}]
  %s10 = inlined_call_operand.vmem [shape: bf16[2,8,32], index: 10, kind: output, shape index: {}]
  %s11 = sld [smem:[#allocation0]]
  $region73: #{decoder_forward.7} parent=0
    _
  %s13 = ssub.s32 1, %s11
  %s14 = scalar_select 0, %s13, %s11
  loop: start=0, step=1, limit=4
  $region2: #{decoder_forward.7} parent=0 // loop_pre_header
    _
  $region3: #{decoder_forward.7} parent=0 // loop_header
    %s16 = sphi 0, %s20
    %p17 = scmp.ge.s32.totalorder %s16, 4
    %s23 = sphi 0, %s35
    %s24 = sphi 0, %s31
    %s25 = sphi 0, %s23
    %s26 = sphi 0, %s24
    %s27 = sphi 0, %s25
    %s28 = sphi 0, %s26
    %s40 = sphi 0, %s42
    %s43 = sphi 0, %s40
    %s44 = sphi 0, %s43
    %s60 = sphi 0, %s44
    %s66 = sphi 0, %s68
    %s69 = sphi 0, %s66
    %s70 = sphi 0, %s69
    %s86 = sphi 0, %s70
    %s90 = sphi 0, %s90
    %s92 = sphi 0, %s90
    %s93 = sphi 0, %s92
    %s107 = sphi 0, %s93
    %s111 = sphi 0, %s111
    %s113 = sphi 0, %s111
    %s114 = sphi 0, %s113
    %s128 = sphi 0, %s114
    %s132 = sphi 0, %s132
    %s134 = sphi 0, %s132
    %s135 = sphi 0, %s134
    %s149 = sphi 0, %s135
    %s153 = sphi 0, %s153
    %s155 = sphi 0, %s153
    %s156 = sphi 0, %s155
    %s170 = sphi 0, %s156
    %s174 = sphi 0, %s174
    %s176 = sphi 0, %s174
    %s177 = sphi 0, %s176
    %s191 = sphi 0, %s177
    %s199 = sphi 0, %s201
    %s202 = sphi 0, %s199
    %s203 = sphi 0, %s202
    %s219 = sphi 0, %s203
    %s223 = sphi 0, %s223
    %s225 = sphi 0, %s223
    %s226 = sphi 0, %s225
    %s240 = sphi 0, %s226
    %s244 = sphi 0, %s244
    %s246 = sphi 0, %s244
    %s247 = sphi 0, %s246
    %s261 = sphi 0, %s247
    %s269 = sphi 0, %s271
    %s272 = sphi 0, %s269
    %s273 = sphi 0, %s272
    %s289 = sphi 0, %s273
  $region4: #{decoder_forward.7} parent=0 // loop_header_branch
    %19 = sbr.rel (%p17) target = $region8
  $region5: #{decoder_forward.7} parent=0 // loop_body
    %s21 = ssub.s32 %s16, 1
    %s22 = ssub.s32 %s16, 2
    %s29 = sadd.s32 1, %s24
    %p30 = scmp.ge.s32.totalorder %s29, 1
    %s31 = scalar_select %p30, 0, %s29
    %s32 = sadd.s32 1, %s23
    %s33 = scalar_select %p30, %s32, %s23
    %p34 = scmp.ge.s32.totalorder %s33, 2
    %s35 = scalar_select %p34, 0, %s33
    %s36 = ssub.s32 %s23, %s35
    %s37 = ssub.s32 %s24, %s31
    %s38 = sor.u32 %s36, %s37
    %p39 = scmp.eq.s32.totalorder %s38, 0
    %s41 = sadd.s32 %s40, 1
    %s42 = scalar_select %p39, %s40, %s41
    %p45 = pneg %p39
    %p46 = scmp.eq.s32.totalorder %s16, 1
    %p47 = por %p45, %p46
    %p48 = scmp.ne.s32.totalorder %s40, %s43
    %p49 = scmp.eq.s32.totalorder %s16, 0
    %p50 = por %p48, %p49
    %p51 = scmp.ne.s32.totalorder %s40, %s43
    %p52 = scmp.eq.s32.totalorder %s21, 1
    %p53 = por %p51, %p52
    %p54 = scmp.ne.s32.totalorder %s43, %s44
    %p55 = scmp.eq.s32.totalorder %s21, 0
    %p56 = por %p54, %p55
    %p57 = scmp.ne.s32.totalorder %s43, %s44
    %p58 = scmp.eq.s32.totalorder %s22, 1
    %p59 = por %p57, %p58
    %p61 = scmp.ne.s32.totalorder %s44, %s60
    %p62 = scmp.eq.s32.totalorder %s22, 0
    %p63 = por %p61, %p62
    %s64 = ssub.s32 %s23, %s35
    %p65 = scmp.eq.s32.totalorder %s64, 0
    %s67 = sadd.s32 %s66, 1
    %s68 = scalar_select %p65, %s66, %s67
    %p71 = pneg %p65
    %p72 = scmp.eq.s32.totalorder %s16, 1
    %p73 = por %p71, %p72
    %p74 = scmp.ne.s32.totalorder %s66, %s69
    %p75 = scmp.eq.s32.totalorder %s16, 0
    %p76 = por %p74, %p75
    %p77 = scmp.ne.s32.totalorder %s66, %s69
    %p78 = scmp.eq.s32.totalorder %s21, 1
    %p79 = por %p77, %p78
    %p80 = scmp.ne.s32.totalorder %s69, %s70
    %p81 = scmp.eq.s32.totalorder %s21, 0
    %p82 = por %p80, %p81
    %p83 = scmp.ne.s32.totalorder %s69, %s70
    %p84 = scmp.eq.s32.totalorder %s22, 1
    %p85 = por %p83, %p84
    %p87 = scmp.ne.s32.totalorder %s70, %s86
    %p88 = scmp.eq.s32.totalorder %s22, 0
    %p89 = por %p87, %p88
    %s91 = sadd.s32 %s90, 1
    %p94 = scmp.eq.s32.totalorder %s16, 1
    %p95 = scmp.ne.s32.totalorder %s90, %s92
    %p96 = scmp.eq.s32.totalorder %s16, 0
    %p97 = por %p95, %p96
    %p98 = scmp.ne.s32.totalorder %s90, %s92
    %p99 = scmp.eq.s32.totalorder %s21, 1
    %p100 = por %p98, %p99
    %p101 = scmp.ne.s32.totalorder %s92, %s93
    %p102 = scmp.eq.s32.totalorder %s21, 0
    %p103 = por %p101, %p102
    %p104 = scmp.ne.s32.totalorder %s92, %s93
    %p105 = scmp.eq.s32.totalorder %s22, 1
    %p106 = por %p104, %p105
    %p108 = scmp.ne.s32.totalorder %s93, %s107
    %p109 = scmp.eq.s32.totalorder %s22, 0
    %p110 = por %p108, %p109
    %s112 = sadd.s32 %s111, 1
    %p115 = scmp.eq.s32.totalorder %s16, 1
    %p116 = scmp.ne.s32.totalorder %s111, %s113
    %p117 = scmp.eq.s32.totalorder %s16, 0
    %p118 = por %p116, %p117
    %p119 = scmp.ne.s32.totalorder %s111, %s113
    %p120 = scmp.eq.s32.totalorder %s21, 1
    %p121 = por %p119, %p120
    %p122 = scmp.ne.s32.totalorder %s113, %s114
    %p123 = scmp.eq.s32.totalorder %s21, 0
    %p124 = por %p122, %p123
    %p125 = scmp.ne.s32.totalorder %s113, %s114
    %p126 = scmp.eq.s32.totalorder %s22, 1
    %p127 = por %p125, %p126
    %p129 = scmp.ne.s32.totalorder %s114, %s128
    %p130 = scmp.eq.s32.totalorder %s22, 0
    %p131 = por %p129, %p130
    %s133 = sadd.s32 %s132, 1
    %p136 = scmp.eq.s32.totalorder %s16, 1
    %p137 = scmp.ne.s32.totalorder %s132, %s134
    %p138 = scmp.eq.s32.totalorder %s16, 0
    %p139 = por %p137, %p138
    %p140 = scmp.ne.s32.totalorder %s132, %s134
    %p141 = scmp.eq.s32.totalorder %s21, 1
    %p142 = por %p140, %p141
    %p143 = scmp.ne.s32.totalorder %s134, %s135
    %p144 = scmp.eq.s32.totalorder %s21, 0
    %p145 = por %p143, %p144
    %p146 = scmp.ne.s32.totalorder %s134, %s135
    %p147 = scmp.eq.s32.totalorder %s22, 1
    %p148 = por %p146, %p147
    %p150 = scmp.ne.s32.totalorder %s135, %s149
    %p151 = scmp.eq.s32.totalorder %s22, 0
    %p152 = por %p150, %p151
    %s154 = sadd.s32 %s153, 1
    %p157 = scmp.eq.s32.totalorder %s16, 1
    %p158 = scmp.ne.s32.totalorder %s153, %s155
    %p159 = scmp.eq.s32.totalorder %s16, 0
    %p160 = por %p158, %p159
    %p161 = scmp.ne.s32.totalorder %s153, %s155
    %p162 = scmp.eq.s32.totalorder %s21, 1
    %p163 = por %p161, %p162
    %p164 = scmp.ne.s32.totalorder %s155, %s156
    %p165 = scmp.eq.s32.totalorder %s21, 0
    %p166 = por %p164, %p165
    %p167 = scmp.ne.s32.totalorder %s155, %s156
    %p168 = scmp.eq.s32.totalorder %s22, 1
    %p169 = por %p167, %p168
    %p171 = scmp.ne.s32.totalorder %s156, %s170
    %p172 = scmp.eq.s32.totalorder %s22, 0
    %p173 = por %p171, %p172
    %s175 = sadd.s32 %s174, 1
    %p178 = scmp.eq.s32.totalorder %s16, 1
    %p179 = scmp.ne.s32.totalorder %s174, %s176
    %p180 = scmp.eq.s32.totalorder %s16, 0
    %p181 = por %p179, %p180
    %p182 = scmp.ne.s32.totalorder %s174, %s176
    %p183 = scmp.eq.s32.totalorder %s21, 1
    %p184 = por %p182, %p183
    %p185 = scmp.ne.s32.totalorder %s176, %s177
    %p186 = scmp.eq.s32.totalorder %s21, 0
    %p187 = por %p185, %p186
    %p188 = scmp.ne.s32.totalorder %s176, %s177
    %p189 = scmp.eq.s32.totalorder %s22, 1
    %p190 = por %p188, %p189
    %p192 = scmp.ne.s32.totalorder %s177, %s191
    %p193 = scmp.eq.s32.totalorder %s22, 0
    %p194 = por %p192, %p193
    %s195 = ssub.s32 %s23, %s35
    %s196 = ssub.s32 %s24, %s31
    %s197 = sor.u32 %s195, %s196
    %p198 = scmp.eq.s32.totalorder %s197, 0
    %s200 = sadd.s32 %s199, 1
    %s201 = scalar_select %p198, %s199, %s200
    %p204 = pneg %p198
    %p205 = scmp.eq.s32.totalorder %s16, 1
    %p206 = por %p204, %p205
    %p207 = scmp.ne.s32.totalorder %s199, %s202
    %p208 = scmp.eq.s32.totalorder %s16, 0
    %p209 = por %p207, %p208
    %p210 = scmp.ne.s32.totalorder %s199, %s202
    %p211 = scmp.eq.s32.totalorder %s21, 1
    %p212 = por %p210, %p211
    %p213 = scmp.ne.s32.totalorder %s202, %s203
    %p214 = scmp.eq.s32.totalorder %s21, 0
    %p215 = por %p213, %p214
    %p216 = scmp.ne.s32.totalorder %s202, %s203
    %p217 = scmp.eq.s32.totalorder %s22, 1
    %p218 = por %p216, %p217
    %p220 = scmp.ne.s32.totalorder %s203, %s219
    %p221 = scmp.eq.s32.totalorder %s22, 0
    %p222 = por %p220, %p221
    %s224 = sadd.s32 %s223, 1
    %p227 = scmp.eq.s32.totalorder %s16, 1
    %p228 = scmp.ne.s32.totalorder %s223, %s225
    %p229 = scmp.eq.s32.totalorder %s16, 0
    %p230 = por %p228, %p229
    %p231 = scmp.ne.s32.totalorder %s223, %s225
    %p232 = scmp.eq.s32.totalorder %s21, 1
    %p233 = por %p231, %p232
    %p234 = scmp.ne.s32.totalorder %s225, %s226
    %p235 = scmp.eq.s32.totalorder %s21, 0
    %p236 = por %p234, %p235
    %p237 = scmp.ne.s32.totalorder %s225, %s226
    %p238 = scmp.eq.s32.totalorder %s22, 1
    %p239 = por %p237, %p238
    %p241 = scmp.ne.s32.totalorder %s226, %s240
    %p242 = scmp.eq.s32.totalorder %s22, 0
    %p243 = por %p241, %p242
    %s245 = sadd.s32 %s244, 1
    %p248 = scmp.eq.s32.totalorder %s16, 1
    %p249 = scmp.ne.s32.totalorder %s244, %s246
    %p250 = scmp.eq.s32.totalorder %s16, 0
    %p251 = por %p249, %p250
    %p252 = scmp.ne.s32.totalorder %s244, %s246
    %p253 = scmp.eq.s32.totalorder %s21, 1
    %p254 = por %p252, %p253
    %p255 = scmp.ne.s32.totalorder %s246, %s247
    %p256 = scmp.eq.s32.totalorder %s21, 0
    %p257 = por %p255, %p256
    %p258 = scmp.ne.s32.totalorder %s246, %s247
    %p259 = scmp.eq.s32.totalorder %s22, 1
    %p260 = por %p258, %p259
    %p262 = scmp.ne.s32.totalorder %s247, %s261
    %p263 = scmp.eq.s32.totalorder %s22, 0
    %p264 = por %p262, %p263
    %s265 = ssub.s32 %s23, %s35
    %s266 = ssub.s32 %s24, %s31
    %s267 = sor.u32 %s265, %s266
    %p268 = scmp.eq.s32.totalorder %s267, 0
    %s270 = sadd.s32 %s269, 1
    %s271 = scalar_select %p268, %s269, %s270
    %p274 = pneg %p268
    %p275 = scmp.eq.s32.totalorder %s16, 1
    %p276 = por %p274, %p275
    %p277 = scmp.ne.s32.totalorder %s269, %s272
    %p278 = scmp.eq.s32.totalorder %s16, 0
    %p279 = por %p277, %p278
    %p280 = scmp.ne.s32.totalorder %s269, %s272
    %p281 = scmp.eq.s32.totalorder %s21, 1
    %p282 = por %p280, %p281
    %p283 = scmp.ne.s32.totalorder %s272, %s273
    %p284 = scmp.eq.s32.totalorder %s21, 0
    %p285 = por %p283, %p284
    %p286 = scmp.ne.s32.totalorder %s272, %s273
    %p287 = scmp.eq.s32.totalorder %s22, 1
    %p288 = por %p286, %p287
    %p290 = scmp.ne.s32.totalorder %s273, %s289
    %p291 = scmp.eq.s32.totalorder %s22, 0
    %p292 = por %p290, %p291
    %p293 = scmp.le.s32.totalorder 1, %s16
    %p294 = scmp.lt.s32.totalorder %s16, 3
    %p295 = pnand %p293, %p294
    %p296 = pneg %p295
    // Predicated region
    $region9: #{decoder_forward.7} parent=5 // pred_check
      _
    $region10: #{decoder_forward.7} parent=5 // pred_check_branch
      %298 = sbr.rel (%p295) target = $region12
    $region11: #{decoder_forward.7} parent=5 // pred_region
      %s299 = ssub.s32 %s16, 1
      // Predicated region
      $region13: #{decoder_forward.7} parent=11 // pred_check
        %p300 = pneg %p103
      $region14: #{decoder_forward.7} parent=11 // pred_check_branch
        %302 = sbr.rel (%p300) target = $region16
      $region15: #{decoder_forward.7} parent=11 // pred_region
        _
      $region16: #{decoder_forward.7} parent=11 // pred_fallthru
        _
      // Predicated region
      $region17: #{decoder_forward.7} parent=11 // pred_check
        %p303 = pneg %p124
      $region18: #{decoder_forward.7} parent=11 // pred_check_branch
        %305 = sbr.rel (%p303) target = $region20
      $region19: #{decoder_forward.7} parent=11 // pred_region
        _
      $region20: #{decoder_forward.7} parent=11 // pred_fallthru
        _
      // Predicated region
      $region21: #{decoder_forward.7} parent=11 // pred_check
        %p306 = pneg %p145
      $region22: #{decoder_forward.7} parent=11 // pred_check_branch
        %308 = sbr.rel (%p306) target = $region24
      $region23: #{decoder_forward.7} parent=11 // pred_region
        _
      $region24: #{decoder_forward.7} parent=11 // pred_fallthru
        _
      // Predicated region
      $region25: #{decoder_forward.7} parent=11 // pred_check
        %p309 = pneg %p166
      $region26: #{decoder_forward.7} parent=11 // pred_check_branch
        %311 = sbr.rel (%p309) target = $region28
      $region27: #{decoder_forward.7} parent=11 // pred_region
        _
      $region28: #{decoder_forward.7} parent=11 // pred_fallthru
        _
      // Predicated region
      $region29: #{decoder_forward.7} parent=11 // pred_check
        %p312 = pneg %p187
      $region30: #{decoder_forward.7} parent=11 // pred_check_branch
        %314 = sbr.rel (%p312) target = $region32
      $region31: #{decoder_forward.7} parent=11 // pred_region
        _
      $region32: #{decoder_forward.7} parent=11 // pred_fallthru
        _
      // Predicated region
      $region33: #{decoder_forward.7} parent=11 // pred_check
        %p315 = pneg %p236
      $region34: #{decoder_forward.7} parent=11 // pred_check_branch
        %317 = sbr.rel (%p315) target = $region36
      $region35: #{decoder_forward.7} parent=11 // pred_region
        _
      $region36: #{decoder_forward.7} parent=11 // pred_fallthru
        _
      // Predicated region
      $region37: #{decoder_forward.7} parent=11 // pred_check
        %p318 = pneg %p257
      $region38: #{decoder_forward.7} parent=11 // pred_check_branch
        %320 = sbr.rel (%p318) target = $region40
      $region39: #{decoder_forward.7} parent=11 // pred_region
        _
      $region40: #{decoder_forward.7} parent=11 // pred_fallthru
        _
    $region12: #{decoder_forward.7} parent=5 // pred_fallthru
      _
    %p321 = scmp.lt.s32.totalorder %s16, 2
    // Predicated region
    $region41: #{decoder_forward.7} parent=5 // pred_check
      %p322 = pneg %p321
    $region42: #{decoder_forward.7} parent=5 // pred_check_branch
      %324 = sbr.rel (%p322) target = $region44
    $region43: #{decoder_forward.7} parent=5 // pred_region
      // Predicated region
      $region45: #{decoder_forward.7} parent=43 // pred_check
        %p325 = pneg %p50
      $region46: #{decoder_forward.7} parent=43 // pred_check_branch
        %327 = sbr.rel (%p325) target = $region48
      $region47: #{decoder_forward.7} parent=43 // pred_region
        %p328 = scmp.lt.s32.totalorder %s23, 1
        %s329 = scalar_select %p328, %s23, 1
        %p330 = scmp.lt.s32.totalorder %s24, 0
        %s331 = scalar_select %p330, %s24, 0
        %s332 = sadd.s32 %s331, %s329
        %s333 = smul.addr %s332, 4
        %s334 = scalar_lea.vmem %s0, %s333
      $region48: #{decoder_forward.7} parent=43 // pred_fallthru
        _
      // Predicated region
      $region49: #{decoder_forward.7} parent=43 // pred_check
        %p335 = pneg %p76
      $region50: #{decoder_forward.7} parent=43 // pred_check_branch
        %337 = sbr.rel (%p335) target = $region52
      $region51: #{decoder_forward.7} parent=43 // pred_region
        %p338 = scmp.lt.s32.totalorder %s23, 1
        %s339 = scalar_select %p338, %s23, 1
        %s340 = smul.addr %s339, 4
        %s341 = scalar_lea.vmem %s1, %s340
      $region52: #{decoder_forward.7} parent=43 // pred_fallthru
        _
      // Predicated region
      $region53: #{decoder_forward.7} parent=43 // pred_check
        %p342 = pneg %p209
      $region54: #{decoder_forward.7} parent=43 // pred_check_branch
        %344 = sbr.rel (%p342) target = $region56
      $region55: #{decoder_forward.7} parent=43 // pred_region
        %p345 = scmp.lt.s32.totalorder %s23, 1
        %s346 = scalar_select %p345, %s23, 1
        %p347 = scmp.lt.s32.totalorder %s24, 0
        %s348 = scalar_select %p347, %s24, 0
        %s349 = sadd.s32 %s348, %s346
        %s350 = smul.addr %s349, 2
        %s351 = scalar_lea.vmem %s7, %s350
      $region56: #{decoder_forward.7} parent=43 // pred_fallthru
        _
    $region44: #{decoder_forward.7} parent=5 // pred_fallthru
      _
    %p352 = scmp.le.s32.totalorder 1, %s16
    %p353 = scmp.lt.s32.totalorder %s16, 3
    %p354 = pnand %p352, %p353
    %p355 = pneg %p354
    // Predicated region
    $region57: #{decoder_forward.7} parent=5 // pred_check
      _
    $region58: #{decoder_forward.7} parent=5 // pred_check_branch
      %357 = sbr.rel (%p354) target = $region60
    $region59: #{decoder_forward.7} parent=5 // pred_region
      %s358 = ssub.s32 %s16, 1
      %p359 = scmp.lt.s32.totalorder %s25, 1
      %s360 = scalar_select %p359, %s25, 1
      %p361 = scmp.lt.s32.totalorder %s26, 0
      %s362 = scalar_select %p361, %s26, 0
      %s363 = sadd.s32 %s362, %s360
      %s364 = smul.addr %s363, 4
      %s365 = scalar_lea.vmem %s0, %s364
      %p366 = pneg %p56
      %p367 = pneg %p53
      %p368 = scmp.lt.s32.totalorder %s25, 1
      %s369 = scalar_select %p368, %s25, 1
      %s370 = smul.addr %s369, 4
      %s371 = scalar_lea.vmem %s1, %s370
      %p372 = pneg %p82
      %p373 = pneg %p79
      %p374 = pneg %p103
      %p375 = pneg %p100
      %p376 = pneg %p124
      %p377 = pneg %p121
      %p378 = pneg %p145
      %p379 = pneg %p142
      %p380 = pneg %p166
      %p381 = pneg %p163
      %p382 = pneg %p187
      %p383 = pneg %p184
      %p384 = scmp.lt.s32.totalorder %s25, 1
      %s385 = scalar_select %p384, %s25, 1
      %p386 = scmp.lt.s32.totalorder %s26, 0
      %s387 = scalar_select %p386, %s26, 0
      %s388 = sadd.s32 %s387, %s385
      %s389 = smul.addr %s388, 2
      %s390 = scalar_lea.vmem %s7, %s389
      %p391 = pneg %p215
      %p392 = pneg %p212
      %p393 = pneg %p236
      %p394 = pneg %p233
      %p395 = pneg %p257
      %p396 = pneg %p254
      %p397 = pneg %p285
      %p398 = pneg %p282
      %p399 = scmp.lt.s32.totalorder %s25, 1
      %s400 = scalar_select %p399, %s25, 1
      %p401 = scmp.lt.s32.totalorder %s26, 0
      %s402 = scalar_select %p401, %s26, 0
      %s403 = sadd.s32 %s402, %s400
      %s404 = smul.addr %s403, 4
      %s405 = scalar_lea.vmem %s10, %s404
      %p406 = scmp.lt.s32.totalorder %s25, 1
      %s407 = scalar_select %p406, %s25, 1
      %p408 = scmp.lt.s32.totalorder %s26, 0
      %s409 = scalar_select %p408, %s26, 0
      %s410 = sadd.s32 %s409, %s407
      %s411 = smul.addr %s410, 4
      %s412 = scalar_lea.vmem %s0, %s411
      %p413 = scmp.lt.s32.totalorder %s25, 1
      %s414 = scalar_select %p413, %s25, 1
      %s415 = smul.addr %s414, 4
      %s416 = scalar_lea.vmem %s1, %s415
      %p417 = scmp.lt.s32.totalorder %s25, 1
      %s418 = scalar_select %p417, %s25, 1
      %p419 = scmp.lt.s32.totalorder %s26, 0
      %s420 = scalar_select %p419, %s26, 0
      %s421 = sadd.s32 %s420, %s418
      %s422 = smul.addr %s421, 2
      %s423 = scalar_lea.vmem %s7, %s422
      %p424 = scmp.lt.s32.totalorder %s25, 1
      %s425 = scalar_select %p424, %s25, 1
      %p426 = scmp.lt.s32.totalorder %s26, 0
      %s427 = scalar_select %p426, %s26, 0
      %s428 = sadd.s32 %s427, %s425
      %s429 = smul.addr %s428, 4
      %s430 = scalar_lea.vmem %s10, %s429
      %v432 = vld [vmem:[%s412] sm:$0xf]
      %v433 = vld [vmem:[%s416] sm:$0xf]
      %v434 = vld [vmem:[%s423] sm:$0x3]
      %v435 = vunpack.c.0.s8 %v434
      %v436 = vcvt.s32.f32 %v435
      %v437 = vld [vmem:[%s2] sm:$0xf]
      %v438 = vld [vmem:[%s2 + $0x4] sm:$0xf]
      %v439 = vld [vmem:[%s2 + $0x8] sm:$0xf]
      %v440 = vld [vmem:[%s2 + $0xc] sm:$0xf]
      %v445 = vunpack.c.l.b16 %v437
      %v446 = vunpack.c.l.b16 %v438
      %v447 = vunpack.c.l.b16 %v439
      %v448 = vunpack.c.l.b16 %v440
      %v449 = vpack.c.b16 %v446, %v445
      %v450 = vpack.c.b16 %v448, %v447
      %vm453 = vcmask 261120
      %v455 = vsel %vm453, %v432, 0
      %457 = vmatprep.subr.bf16.mxu0 0
      %458 = vmatpush1.bf16.msra.mxu0 %v449
      %459 = vmatprep.subr.bf16.mxu0 0
      %460 = vmatpush1.bf16.msra.mxu0 %v450
      %461 = vmatprep.subr.bf16.mxu0 0
      %462 = vmatpush1.bf16.msra.mxu0 0
      %463 = vmatprep.subr.bf16.mxu0 0
      %464 = vmatpush1.bf16.msra.mxu0 0
      %465 = vmatprep.subr.bf16.mxu0 0
      %466 = vmatpush1.bf16.msra.mxu0 0
      %467 = vmatprep.subr.bf16.mxu0 0
      %468 = vmatpush1.bf16.msra.mxu0 0
      %469 = vmatprep.subr.bf16.mxu0 0
      %470 = vmatpush1.bf16.msra.mxu0 0
      %471 = vmatprep.subr.bf16.mxu0 0
      %472 = vmatpush1.bf16.msra.mxu0 0
      %473 = vmatprep.subr.bf16.mxu0 0
      %474 = vmatpush1.bf16.msra.mxu0 0
      %475 = vmatprep.subr.bf16.mxu0 0
      %476 = vmatpush1.bf16.msra.mxu0 0
      %477 = vmatprep.subr.bf16.mxu0 0
      %478 = vmatpush1.bf16.msra.mxu0 0
      %479 = vmatprep.subr.bf16.mxu0 0
      %480 = vmatpush1.bf16.msra.mxu0 0
      %481 = vmatprep.subr.bf16.mxu0 0
      %482 = vmatpush1.bf16.msra.mxu0 0
      %483 = vmatprep.subr.bf16.mxu0 0
      %484 = vmatpush1.bf16.msra.mxu0 0
      %485 = vmatprep.subr.bf16.mxu0 0
      %486 = vmatpush1.bf16.msra.mxu0 0
      %487 = vmatprep.subr.bf16.mxu0 0
      %488 = vmatpush1.bf16.msra.mxu0 0
      %489 = vmatprep.mubr.bf16.mxu0 0
      %490 = vmatmul.mubr.bf16.gmra.mrb[0].mxu0 %v455
      %v491 = vpop.f32.mrb[0].mxu0
      %v492 = vadd.f32 0.0, %v491
      %v493 = vpop.f32.mrb[0].mxu0
      %v494 = vpop.f32.mrb[0].mxu0
      %v495 = vpop.f32.mrb[0].mxu0
      %496 = vdwg.mxu0
      %v497 = vmul.f32 %v492, 0.35355338
      %v498 = vpack.c.bf16 %v497, %v497
      %v499 = vld [vmem:[%s3] sm:$0xf]
      %v500 = vld [vmem:[%s3 + $0x4] sm:$0xf]
      %v501 = vld [vmem:[%s3 + $0x8] sm:$0xf]
      %v502 = vld [vmem:[%s3 + $0xc] sm:$0xf]
      %v507 = vunpack.c.l.b16 %v499
      %v508 = vunpack.c.l.b16 %v500
      %v509 = vunpack.c.l.b16 %v501
      %v510 = vunpack.c.l.b16 %v502
      %v511 = vpack.c.b16 %v508, %v507
      %v512 = vpack.c.b16 %v510, %v509
      %v516 = vsel %vm453, %v433, 0
      %518 = vmatprep.subr.bf16.mxu0 0
      %519 = vmatpush1.bf16.msra.mxu0 %v511
      %520 = vmatprep.subr.bf16.mxu0 0
      %521 = vmatpush1.bf16.msra.mxu0 %v512
      %522 = vmatprep.subr.bf16.mxu0 0
      %523 = vmatpush1.bf16.msra.mxu0 0
      %524 = vmatprep.subr.bf16.mxu0 0
      %525 = vmatpush1.bf16.msra.mxu0 0
      %526 = vmatprep.subr.bf16.mxu0 0
      %527 = vmatpush1.bf16.msra.mxu0 0
      %528 = vmatprep.subr.bf16.mxu0 0
      %529 = vmatpush1.bf16.msra.mxu0 0
      %530 = vmatprep.subr.bf16.mxu0 0
      %531 = vmatpush1.bf16.msra.mxu0 0
      %532 = vmatprep.subr.bf16.mxu0 0
      %533 = vmatpush1.bf16.msra.mxu0 0
      %534 = vmatprep.subr.bf16.mxu0 0
      %535 = vmatpush1.bf16.msra.mxu0 0
      %536 = vmatprep.subr.bf16.mxu0 0
      %537 = vmatpush1.bf16.msra.mxu0 0
      %538 = vmatprep.subr.bf16.mxu0 0
      %539 = vmatpush1.bf16.msra.mxu0 0
      %540 = vmatprep.subr.bf16.mxu0 0
      %541 = vmatpush1.bf16.msra.mxu0 0
      %542 = vmatprep.subr.bf16.mxu0 0
      %543 = vmatpush1.bf16.msra.mxu0 0
      %544 = vmatprep.subr.bf16.mxu0 0
      %545 = vmatpush1.bf16.msra.mxu0 0
      %546 = vmatprep.subr.bf16.mxu0 0
      %547 = vmatpush1.bf16.msra.mxu0 0
      %548 = vmatprep.subr.bf16.mxu0 0
      %549 = vmatpush1.bf16.msra.mxu0 0
      %550 = vmatprep.mubr.bf16.mxu0 0
      %551 = vmatmul.mubr.bf16.gmra.mrb[0].mxu0 %v516
      %v552 = vpop.f32.mrb[0].mxu0
      %v553 = vadd.f32 0.0, %v552
      %v554 = vpop.f32.mrb[0].mxu0
      %v555 = vpop.f32.mrb[0].mxu0
      %v556 = vpop.f32.mrb[0].mxu0
      %557 = vdwg.mxu0
      %v558 = vld [vmem:[%s4] sm:$0xf]
      %v559 = vld [vmem:[%s4 + $0x4] sm:$0xf]
      %v560 = vld [vmem:[%s4 + $0x8] sm:$0xf]
      %v561 = vld [vmem:[%s4 + $0xc] sm:$0xf]
      %v566 = vunpack.c.l.b16 %v558
      %v567 = vunpack.c.l.b16 %v559
      %v568 = vunpack.c.l.b16 %v560
      %v569 = vunpack.c.l.b16 %v561
      %v570 = vpack.c.b16 %v567, %v566
      %v571 = vpack.c.b16 %v569, %v568
      %574 = vmatprep.subr.bf16.mxu0 0
      %575 = vmatpush1.bf16.msra.mxu0 %v570
      %576 = vmatprep.subr.bf16.mxu0 0
      %577 = vmatpush1.bf16.msra.mxu0 %v571
      %578 = vmatprep.subr.bf16.mxu0 0
      %579 = vmatpush1.bf16.msra.mxu0 0
      %580 = vmatprep.subr.bf16.mxu0 0
      %581 = vmatpush1.bf16.msra.mxu0 0
      %582 = vmatprep.subr.bf16.mxu0 0
      %583 = vmatpush1.bf16.msra.mxu0 0
      %584 = vmatprep.subr.bf16.mxu0 0
      %585 = vmatpush1.bf16.msra.mxu0 0
      %586 = vmatprep.subr.bf16.mxu0 0
      %587 = vmatpush1.bf16.msra.mxu0 0
      %588 = vmatprep.subr.bf16.mxu0 0
      %589 = vmatpush1.bf16.msra.mxu0 0
      %590 = vmatprep.subr.bf16.mxu0 0
      %591 = vmatpush1.bf16.msra.mxu0 0
      %592 = vmatprep.subr.bf16.mxu0 0
      %593 = vmatpush1.bf16.msra.mxu0 0
      %594 = vmatprep.subr.bf16.mxu0 0
      %595 = vmatpush1.bf16.msra.mxu0 0
      %596 = vmatprep.subr.bf16.mxu0 0
      %597 = vmatpush1.bf16.msra.mxu0 0
      %598 = vmatprep.subr.bf16.mxu0 0
      %599 = vmatpush1.bf16.msra.mxu0 0
      %600 = vmatprep.subr.bf16.mxu0 0
      %601 = vmatpush1.bf16.msra.mxu0 0
      %602 = vmatprep.subr.bf16.mxu0 0
      %603 = vmatpush1.bf16.msra.mxu0 0
      %604 = vmatprep.subr.bf16.mxu0 0
      %605 = vmatpush1.bf16.msra.mxu0 0
      %606 = vmatprep.mubr.bf16.mxu0 0
      %607 = vmatmul.mubr.bf16.gmra.mrb[0].mxu0 %v516
      %v608 = vpop.f32.mrb[0].mxu0
      %v609 = vadd.f32 0.0, %v608
      %v610 = vpop.f32.mrb[0].mxu0
      %v611 = vpop.f32.mrb[0].mxu0
      %v612 = vpop.f32.mrb[0].mxu0
      %613 = vdwg.mxu0
      %v614 = vpack.c.bf16 %v553, %v553
      %vm615 = vcmask 64512
      %v617 = vsel %vm615, %v498, 0
      %v620 = vsel %vm615, %v614, 0
      %622 = vmatprep.subr.bf16.mxu0 0
      %623 = vmatpush1.bf16.xpose.msra.mxu0 %v620
      %624 = vmatprep.subr.bf16.mxu0 0
      %625 = vmatpush1.bf16.xpose.msra.mxu0 0
      %626 = vmatprep.subr.bf16.mxu0 0
      %627 = vmatpush1.bf16.xpose.msra.mxu0 0
      %628 = vmatprep.subr.bf16.mxu0 0
      %629 = vmatpush1.bf16.xpose.msra.mxu0 0
      %630 = vmatprep.subr.bf16.mxu0 0
      %631 = vmatpush1.bf16.xpose.msra.mxu0 0
      %632 = vmatprep.subr.bf16.mxu0 0
      %633 = vmatpush1.bf16.xpose.msra.mxu0 0
      %634 = vmatprep.subr.bf16.mxu0 0
      %635 = vmatpush1.bf16.xpose.msra.mxu0 0
      %636 = vmatprep.subr.bf16.mxu0 0
      %637 = vmatpush1.bf16.xpose.msra.mxu0 0
      %638 = vmatprep.subr.bf16.mxu0 0
      %639 = vmatpush1.bf16.xpose.msra.mxu0 0
      %640 = vmatprep.subr.bf16.mxu0 0
      %641 = vmatpush1.bf16.xpose.msra.mxu0 0
      %642 = vmatprep.subr.bf16.mxu0 0
      %643 = vmatpush1.bf16.xpose.msra.mxu0 0
      %644 = vmatprep.subr.bf16.mxu0 0
      %645 = vmatpush1.bf16.xpose.msra.mxu0 0
      %646 = vmatprep.subr.bf16.mxu0 0
      %647 = vmatpush1.bf16.xpose.msra.mxu0 0
      %648 = vmatprep.subr.bf16.mxu0 0
      %649 = vmatpush1.bf16.xpose.msra.mxu0 0
      %650 = vmatprep.subr.bf16.mxu0 0
      %651 = vmatpush1.bf16.xpose.msra.mxu0 0
      %652 = vmatprep.subr.bf16.mxu0 0
      %653 = vmatpush1.bf16.xpose.msra.mxu0 0
      %654 = vmatprep.mubr.bf16.mxu0 0
      %655 = vmatmul.mubr.bf16.gmra.mrb[0].mxu0 %v617
      %v656 = vpop.f32.mrb[0].mxu0
      %v657 = vadd.f32 0.0, %v656
      %v658 = vpop.f32.mrb[0].mxu0
      %v659 = vpop.f32.mrb[0].mxu0
      %v660 = vpop.f32.mrb[0].mxu0
      %661 = vdwg.mxu0
      %vm662 = vcmp.eq.f32.partialorder %v436, 0.0
      %v663 = vsel %vm662, -3.535534e-21, %v657
      %v664 = vsel %vm615, %v663, -inf
      %665 = vmax.xlane.f32.xlu0 %v664
      %v666 = vpop.xlane.xlu0 %665
      %v667 = vsub.f32 -inf, %v666
      %v668 = vmul.f32 %v667, 1.442695
      %v669 = vpow.pop %v668
      %v670 = vsub.f32 %v663, %v666
      %v671 = vmul.f32 %v670, 1.442695
      %v672 = vpow.pop %v671
      %v673 = vmul.f32 %v669, 0.0
      %v674 = vsel %vm615, %v672, 0.0
      %675 = vadd.xlane.f32.xlu0 %v674
      %v676 = vpop.xlane.xlu0 %675
      %v677 = vadd.f32 %v673, %v676
      %v678 = vpack.c.bf16 %v672, %v672
      %v679 = vpack.c.bf16 %v609, %v609
      %v681 = vsel %vm615, %v678, 0
      %vm683 = vcmask 1043456
      %v685 = vsel %vm683, %v679, 0
      %687 = vmatprep.subr.bf16.mxu0 0
      %688 = vmatpush1.bf16.msra.mxu0 %v685
      %689 = vmatprep.subr.bf16.mxu0 0
      %690 = vmatpush1.bf16.msra.mxu0 0
      %691 = vmatprep.subr.bf16.mxu0 0
      %692 = vmatpush1.bf16.msra.mxu0 0
      %693 = vmatprep.subr.bf16.mxu0 0
      %694 = vmatpush1.bf16.msra.mxu0 0
      %695 = vmatprep.subr.bf16.mxu0 0
      %696 = vmatpush1.bf16.msra.mxu0 0
      %697 = vmatprep.subr.bf16.mxu0 0
      %698 = vmatpush1.bf16.msra.mxu0 0
      %699 = vmatprep.subr.bf16.mxu0 0
      %700 = vmatpush1.bf16.msra.mxu0 0
      %701 = vmatprep.subr.bf16.mxu0 0
      %702 = vmatpush1.bf16.msra.mxu0 0
      %703 = vmatprep.subr.bf16.mxu0 0
      %704 = vmatpush1.bf16.msra.mxu0 0
      %705 = vmatprep.subr.bf16.mxu0 0
      %706 = vmatpush1.bf16.msra.mxu0 0
      %707 = vmatprep.subr.bf16.mxu0 0
      %708 = vmatpush1.bf16.msra.mxu0 0
      %709 = vmatprep.subr.bf16.mxu0 0
      %710 = vmatpush1.bf16.msra.mxu0 0
      %711 = vmatprep.subr.bf16.mxu0 0
      %712 = vmatpush1.bf16.msra.mxu0 0
      %713 = vmatprep.subr.bf16.mxu0 0
      %714 = vmatpush1.bf16.msra.mxu0 0
      %715 = vmatprep.subr.bf16.mxu0 0
      %716 = vmatpush1.bf16.msra.mxu0 0
      %717 = vmatprep.subr.bf16.mxu0 0
      %718 = vmatpush1.bf16.msra.mxu0 0
      %719 = vmatprep.mubr.bf16.mxu0 0
      %720 = vmatmul.mubr.bf16.gmra.mrb[0].mxu0 %v681
      %v721 = vpop.f32.mrb[0].mxu0
      %v722 = vadd.f32 0.0, %v721
      %v723 = vpop.f32.mrb[0].mxu0
      %v724 = vpop.f32.mrb[0].mxu0
      %v725 = vpop.f32.mrb[0].mxu0
      %726 = vdwg.mxu0
      %v727 = vadd.f32 %v673, %v722
      %v728 = vrcp.pop %v677
      %v729 = vmul.f32 %v727, %v728
      %v730 = vpack.c.bf16 %v729, %v729
      %v731 = vld [vmem:[%s5] sm:$0xf]
      %s732 = scalar_lea.vmem %s2, 16
      %v733 = vld [vmem:[%s732] sm:$0xf]
      %v734 = vld [vmem:[%s732 + $0x4] sm:$0xf]
      %v735 = vld [vmem:[%s732 + $0x8] sm:$0xf]
      %v736 = vld [vmem:[%s732 + $0xc] sm:$0xf]
      %v741 = vunpack.c.l.b16 %v733
      %v742 = vunpack.c.l.b16 %v734
      %v743 = vunpack.c.l.b16 %v735
      %v744 = vunpack.c.l.b16 %v736
      %v745 = vpack.c.b16 %v742, %v741
      %v746 = vpack.c.b16 %v744, %v743
      %749 = vmatprep.subr.bf16.mxu0 0
      %750 = vmatpush1.bf16.msra.mxu0 %v745
      %751 = vmatprep.subr.bf16.mxu0 0
      %752 = vmatpush1.bf16.msra.mxu0 %v746
      %753 = vmatprep.subr.bf16.mxu0 0
      %754 = vmatpush1.bf16.msra.mxu0 0
      %755 = vmatprep.subr.bf16.mxu0 0
      %756 = vmatpush1.bf16.msra.mxu0 0
      %757 = vmatprep.subr.bf16.mxu0 0
      %758 = vmatpush1.bf16.msra.mxu0 0
      %759 = vmatprep.subr.bf16.mxu0 0
      %760 = vmatpush1.bf16.msra.mxu0 0
      %761 = vmatprep.subr.bf16.mxu0 0
      %762 = vmatpush1.bf16.msra.mxu0 0
      %763 = vmatprep.subr.bf16.mxu0 0
      %764 = vmatpush1.bf16.msra.mxu0 0
      %765 = vmatprep.subr.bf16.mxu0 0
      %766 = vmatpush1.bf16.msra.mxu0 0
      %767 = vmatprep.subr.bf16.mxu0 0
      %768 = vmatpush1.bf16.msra.mxu0 0
      %769 = vmatprep.subr.bf16.mxu0 0
      %770 = vmatpush1.bf16.msra.mxu0 0
      %771 = vmatprep.subr.bf16.mxu0 0
      %772 = vmatpush1.bf16.msra.mxu0 0
      %773 = vmatprep.subr.bf16.mxu0 0
      %774 = vmatpush1.bf16.msra.mxu0 0
      %775 = vmatprep.subr.bf16.mxu0 0
      %776 = vmatpush1.bf16.msra.mxu0 0
      %777 = vmatprep.subr.bf16.mxu0 0
      %778 = vmatpush1.bf16.msra.mxu0 0
      %779 = vmatprep.subr.bf16.mxu0 0
      %780 = vmatpush1.bf16.msra.mxu0 0
      %781 = vmatprep.mubr.bf16.mxu0 0
      %782 = vmatmul.mubr.bf16.gmra.mrb[0].mxu0 %v455
      %v783 = vpop.f32.mrb[0].mxu0
      %v784 = vadd.f32 0.0, %v783
      %v785 = vpop.f32.mrb[0].mxu0
      %v786 = vpop.f32.mrb[0].mxu0
      %v787 = vpop.f32.mrb[0].mxu0
      %788 = vdwg.mxu0
      %v789 = vmul.f32 %v784, 0.35355338
      %v790 = vpack.c.bf16 %v789, %v789
      %s791 = scalar_lea.vmem %s3, 16
      %v792 = vld [vmem:[%s791] sm:$0xf]
      %v793 = vld [vmem:[%s791 + $0x4] sm:$0xf]
      %v794 = vld [vmem:[%s791 + $0x8] sm:$0xf]
      %v795 = vld [vmem:[%s791 + $0xc] sm:$0xf]
      %v800 = vunpack.c.l.b16 %v792
      %v801 = vunpack.c.l.b16 %v793
      %v802 = vunpack.c.l.b16 %v794
      %v803 = vunpack.c.l.b16 %v795
      %v804 = vpack.c.b16 %v801, %v800
      %v805 = vpack.c.b16 %v803, %v802
      %808 = vmatprep.subr.bf16.mxu0 0
      %809 = vmatpush1.bf16.msra.mxu0 %v804
      %810 = vmatprep.subr.bf16.mxu0 0
      %811 = vmatpush1.bf16.msra.mxu0 %v805
      %812 = vmatprep.subr.bf16.mxu0 0
      %813 = vmatpush1.bf16.msra.mxu0 0
      %814 = vmatprep.subr.bf16.mxu0 0
      %815 = vmatpush1.bf16.msra.mxu0 0
      %816 = vmatprep.subr.bf16.mxu0 0
      %817 = vmatpush1.bf16.msra.mxu0 0
      %818 = vmatprep.subr.bf16.mxu0 0
      %819 = vmatpush1.bf16.msra.mxu0 0
      %820 = vmatprep.subr.bf16.mxu0 0
      %821 = vmatpush1.bf16.msra.mxu0 0
      %822 = vmatprep.subr.bf16.mxu0 0
      %823 = vmatpush1.bf16.msra.mxu0 0
      %824 = vmatprep.subr.bf16.mxu0 0
      %825 = vmatpush1.bf16.msra.mxu0 0
      %826 = vmatprep.subr.bf16.mxu0 0
      %827 = vmatpush1.bf16.msra.mxu0 0
      %828 = vmatprep.subr.bf16.mxu0 0
      %829 = vmatpush1.bf16.msra.mxu0 0
      %830 = vmatprep.subr.bf16.mxu0 0
      %831 = vmatpush1.bf16.msra.mxu0 0
      %832 = vmatprep.subr.bf16.mxu0 0
      %833 = vmatpush1.bf16.msra.mxu0 0
      %834 = vmatprep.subr.bf16.mxu0 0
      %835 = vmatpush1.bf16.msra.mxu0 0
      %836 = vmatprep.subr.bf16.mxu0 0
      %837 = vmatpush1.bf16.msra.mxu0 0
      %838 = vmatprep.subr.bf16.mxu0 0
      %839 = vmatpush1.bf16.msra.mxu0 0
      %840 = vmatprep.mubr.bf16.mxu0 0
      %841 = vmatmul.mubr.bf16.gmra.mrb[0].mxu0 %v516
      %v842 = vpop.f32.mrb[0].mxu0
      %v843 = vadd.f32 0.0, %v842
      %v844 = vpop.f32.mrb[0].mxu0
      %v845 = vpop.f32.mrb[0].mxu0
      %v846 = vpop.f32.mrb[0].mxu0
      %847 = vdwg.mxu0
      %s848 = scalar_lea.vmem %s4, 16
      %v849 = vld [vmem:[%s848] sm:$0xf]
      %v850 = vld [vmem:[%s848 + $0x4] sm:$0xf]
      %v851 = vld [vmem:[%s848 + $0x8] sm:$0xf]
      %v852 = vld [vmem:[%s848 + $0xc] sm:$0xf]
      %v857 = vunpack.c.l.b16 %v849
      %v858 = vunpack.c.l.b16 %v850
      %v859 = vunpack.c.l.b16 %v851
      %v860 = vunpack.c.l.b16 %v852
      %v861 = vpack.c.b16 %v858, %v857
      %v862 = vpack.c.b16 %v860, %v859
      %865 = vmatprep.subr.bf16.mxu0 0
      %866 = vmatpush1.bf16.msra.mxu0 %v861
      %867 = vmatprep.subr.bf16.mxu0 0
      %868 = vmatpush1.bf16.msra.mxu0 %v862
      %869 = vmatprep.subr.bf16.mxu0 0
      %870 = vmatpush1.bf16.msra.mxu0 0
      %871 = vmatprep.subr.bf16.mxu0 0
      %872 = vmatpush1.bf16.msra.mxu0 0
      %873 = vmatprep.subr.bf16.mxu0 0
      %874 = vmatpush1.bf16.msra.mxu0 0
      %875 = vmatprep.subr.bf16.mxu0 0
      %876 = vmatpush1.bf16.msra.mxu0 0
      %877 = vmatprep.subr.bf16.mxu0 0
      %878 = vmatpush1.bf16.msra.mxu0 0
      %879 = vmatprep.subr.bf16.mxu0 0
      %880 = vmatpush1.bf16.msra.mxu0 0
      %881 = vmatprep.subr.bf16.mxu0 0
      %882 = vmatpush1.bf16.msra.mxu0 0
      %883 = vmatprep.subr.bf16.mxu0 0
      %884 = vmatpush1.bf16.msra.mxu0 0
      %885 = vmatprep.subr.bf16.mxu0 0
      %886 = vmatpush1.bf16.msra.mxu0 0
      %887 = vmatprep.subr.bf16.mxu0 0
      %888 = vmatpush1.bf16.msra.mxu0 0
      %889 = vmatprep.subr.bf16.mxu0 0
      %890 = vmatpush1.bf16.msra.mxu0 0
      %891 = vmatprep.subr.bf16.mxu0 0
      %892 = vmatpush1.bf16.msra.mxu0 0
      %893 = vmatprep.subr.bf16.mxu0 0
      %894 = vmatpush1.bf16.msra.mxu0 0
      %895 = vmatprep.subr.bf16.mxu0 0
      %896 = vmatpush1.bf16.msra.mxu0 0
      %897 = vmatprep.mubr.bf16.mxu0 0
      %898 = vmatmul.mubr.bf16.gmra.mrb[0].mxu0 %v516
      %v899 = vpop.f32.mrb[0].mxu0
      %v900 = vadd.f32 0.0, %v899
      %v901 = vpop.f32.mrb[0].mxu0
      %v902 = vpop.f32.mrb[0].mxu0
      %v903 = vpop.f32.mrb[0].mxu0
      %904 = vdwg.mxu0
      %v905 = vpack.c.bf16 %v843, %v843
      %v907 = vsel %vm615, %v790, 0
      %v910 = vsel %vm615, %v905, 0
      %912 = vmatprep.subr.bf16.mxu0 0
      %913 = vmatpush1.bf16.xpose.msra.mxu0 %v910
      %914 = vmatprep.subr.bf16.mxu0 0
      %915 = vmatpush1.bf16.xpose.msra.mxu0 0
      %916 = vmatprep.subr.bf16.mxu0 0
      %917 = vmatpush1.bf16.xpose.msra.mxu0 0
      %918 = vmatprep.subr.bf16.mxu0 0
      %919 = vmatpush1.bf16.xpose.msra.mxu0 0
      %920 = vmatprep.subr.bf16.mxu0 0
      %921 = vmatpush1.bf16.xpose.msra.mxu0 0
      %922 = vmatprep.subr.bf16.mxu0 0
      %923 = vmatpush1.bf16.xpose.msra.mxu0 0
      %924 = vmatprep.subr.bf16.mxu0 0
      %925 = vmatpush1.bf16.xpose.msra.mxu0 0
      %926 = vmatprep.subr.bf16.mxu0 0
      %927 = vmatpush1.bf16.xpose.msra.mxu0 0
      %928 = vmatprep.subr.bf16.mxu0 0
      %929 = vmatpush1.bf16.xpose.msra.mxu0 0
      %930 = vmatprep.subr.bf16.mxu0 0
      %931 = vmatpush1.bf16.xpose.msra.mxu0 0
      %932 = vmatprep.subr.bf16.mxu0 0
      %933 = vmatpush1.bf16.xpose.msra.mxu0 0
      %934 = vmatprep.subr.bf16.mxu0 0
      %935 = vmatpush1.bf16.xpose.msra.mxu0 0
      %936 = vmatprep.subr.bf16.mxu0 0
      %937 = vmatpush1.bf16.xpose.msra.mxu0 0
      %938 = vmatprep.subr.bf16.mxu0 0
      %939 = vmatpush1.bf16.xpose.msra.mxu0 0
      %940 = vmatprep.subr.bf16.mxu0 0
      %941 = vmatpush1.bf16.xpose.msra.mxu0 0
      %942 = vmatprep.subr.bf16.mxu0 0
      %943 = vmatpush1.bf16.xpose.msra.mxu0 0
      %944 = vmatprep.mubr.bf16.mxu0 0
      %945 = vmatmul.mubr.bf16.gmra.mrb[0].mxu0 %v907
      %v946 = vpop.f32.mrb[0].mxu0
      %v947 = vadd.f32 0.0, %v946
      %v948 = vpop.f32.mrb[0].mxu0
      %v949 = vpop.f32.mrb[0].mxu0
      %v950 = vpop.f32.mrb[0].mxu0
      %951 = vdwg.mxu0
      %v952 = vsel %vm662, -3.535534e-21, %v947
      %v953 = vsel %vm615, %v952, -inf
      %954 = vmax.xlane.f32.xlu0 %v953
      %v955 = vpop.xlane.xlu0 %954
      %v956 = vsub.f32 -inf, %v955
      %v957 = vmul.f32 %v956, 1.442695
      %v958 = vpow.pop %v957
      %v959 = vsub.f32 %v952, %v955
      %v960 = vmul.f32 %v959, 1.442695
      %v961 = vpow.pop %v960
      %v962 = vmul.f32 %v958, 0.0
      %v963 = vsel %vm615, %v961, 0.0
      %964 = vadd.xlane.f32.xlu0 %v963
      %v965 = vpop.xlane.xlu0 %964
      %v966 = vadd.f32 %v962, %v965
      %v967 = vpack.c.bf16 %v961, %v961
      %v968 = vpack.c.bf16 %v900, %v900
      %v970 = vsel %vm615, %v967, 0
      %v973 = vsel %vm683, %v968, 0
      %975 = vmatprep.subr.bf16.mxu0 0
      %976 = vmatpush1.bf16.msra.mxu0 %v973
      %977 = vmatprep.subr.bf16.mxu0 0
      %978 = vmatpush1.bf16.msra.mxu0 0
      %979 = vmatprep.subr.bf16.mxu0 0
      %980 = vmatpush1.bf16.msra.mxu0 0
      %981 = vmatprep.subr.bf16.mxu0 0
      %982 = vmatpush1.bf16.msra.mxu0 0
      %983 = vmatprep.subr.bf16.mxu0 0
      %984 = vmatpush1.bf16.msra.mxu0 0
      %985 = vmatprep.subr.bf16.mxu0 0
      %986 = vmatpush1.bf16.msra.mxu0 0
      %987 = vmatprep.subr.bf16.mxu0 0
      %988 = vmatpush1.bf16.msra.mxu0 0
      %989 = vmatprep.subr.bf16.mxu0 0
      %990 = vmatpush1.bf16.msra.mxu0 0
      %991 = vmatprep.subr.bf16.mxu0 0
      %992 = vmatpush1.bf16.msra.mxu0 0
      %993 = vmatprep.subr.bf16.mxu0 0
      %994 = vmatpush1.bf16.msra.mxu0 0
      %995 = vmatprep.subr.bf16.mxu0 0
      %996 = vmatpush1.bf16.msra.mxu0 0
      %997 = vmatprep.subr.bf16.mxu0 0
      %998 = vmatpush1.bf16.msra.mxu0 0
      %999 = vmatprep.subr.bf16.mxu0 0
      %1000 = vmatpush1.bf16.msra.mxu0 0
      %1001 = vmatprep.subr.bf16.mxu0 0
      %1002 = vmatpush1.bf16.msra.mxu0 0
      %1003 = vmatprep.subr.bf16.mxu0 0
      %1004 = vmatpush1.bf16.msra.mxu0 0
      %1005 = vmatprep.subr.bf16.mxu0 0
      %1006 = vmatpush1.bf16.msra.mxu0 0
      %1007 = vmatprep.mubr.bf16.mxu0 0
      %1008 = vmatmul.mubr.bf16.gmra.mrb[0].mxu0 %v970
      %v1009 = vpop.f32.mrb[0].mxu0
      %v1010 = vadd.f32 0.0, %v1009
      %v1011 = vpop.f32.mrb[0].mxu0
      %v1012 = vpop.f32.mrb[0].mxu0
      %v1013 = vpop.f32.mrb[0].mxu0
      %1014 = vdwg.mxu0
      %v1015 = vadd.f32 %v962, %v1010
      %v1016 = vrcp.pop %v966
      %v1017 = vmul.f32 %v1015, %v1016
      %v1018 = vpack.c.bf16 %v1017, %v1017
      %s1019 = scalar_lea.vmem %s5, 4
      %v1020 = vld [vmem:[%s1019] sm:$0xf]
      %v1022 = vsel %vm615, %v1018, 0
      %v1025 = vsel %vm683, %v1020, 0
      %1027 = vmatprep.subr.bf16.mxu0 0
      %1028 = vmatpush1.bf16.msra.mxu0 %v1025
      %1029 = vmatprep.subr.bf16.mxu0 0
      %1030 = vmatpush1.bf16.msra.mxu0 0
      %1031 = vmatprep.subr.bf16.mxu0 0
      %1032 = vmatpush1.bf16.msra.mxu0 0
      %1033 = vmatprep.subr.bf16.mxu0 0
      %1034 = vmatpush1.bf16.msra.mxu0 0
      %1035 = vmatprep.subr.bf16.mxu0 0
      %1036 = vmatpush1.bf16.msra.mxu0 0
      %1037 = vmatprep.subr.bf16.mxu0 0
      %1038 = vmatpush1.bf16.msra.mxu0 0
      %1039 = vmatprep.subr.bf16.mxu0 0
      %1040 = vmatpush1.bf16.msra.mxu0 0
      %1041 = vmatprep.subr.bf16.mxu0 0
      %1042 = vmatpush1.bf16.msra.mxu0 0
      %1043 = vmatprep.subr.bf16.mxu0 0
      %1044 = vmatpush1.bf16.msra.mxu0 0
      %1045 = vmatprep.subr.bf16.mxu0 0
      %1046 = vmatpush1.bf16.msra.mxu0 0
      %1047 = vmatprep.subr.bf16.mxu0 0
      %1048 = vmatpush1.bf16.msra.mxu0 0
      %1049 = vmatprep.subr.bf16.mxu0 0
      %1050 = vmatpush1.bf16.msra.mxu0 0
      %1051 = vmatprep.subr.bf16.mxu0 0
      %1052 = vmatpush1.bf16.msra.mxu0 0
      %1053 = vmatprep.subr.bf16.mxu0 0
      %1054 = vmatpush1.bf16.msra.mxu0 0
      %1055 = vmatprep.subr.bf16.mxu0 0
      %1056 = vmatpush1.bf16.msra.mxu0 0
      %1057 = vmatprep.subr.bf16.mxu0 0
      %1058 = vmatpush1.bf16.msra.mxu0 0
      %1059 = vmatprep.mubr.bf16.mxu0 0
      %1060 = vmatmul.mubr.bf16.gmra.mrb[0].mxu0 %v1022
      %v1061 = vpop.f32.mrb[0].mxu0
      %v1062 = vadd.f32 0.0, %v1061
      %v1063 = vpop.f32.mrb[0].mxu0
      %v1064 = vpop.f32.mrb[0].mxu0
      %v1065 = vpop.f32.mrb[0].mxu0
      %1066 = vdwg.mxu0
      %v1068 = vsel %vm615, %v730, 0
      %v1071 = vsel %vm683, %v731, 0
      %1073 = vmatprep.subr.bf16.mxu0 0
      %1074 = vmatpush1.bf16.msra.mxu0 %v1071
      %1075 = vmatprep.subr.bf16.mxu0 0
      %1076 = vmatpush1.bf16.msra.mxu0 0
      %1077 = vmatprep.subr.bf16.mxu0 0
      %1078 = vmatpush1.bf16.msra.mxu0 0
      %1079 = vmatprep.subr.bf16.mxu0 0
      %1080 = vmatpush1.bf16.msra.mxu0 0
      %1081 = vmatprep.subr.bf16.mxu0 0
      %1082 = vmatpush1.bf16.msra.mxu0 0
      %1083 = vmatprep.subr.bf16.mxu0 0
      %1084 = vmatpush1.bf16.msra.mxu0 0
      %1085 = vmatprep.subr.bf16.mxu0 0
      %1086 = vmatpush1.bf16.msra.mxu0 0
      %1087 = vmatprep.subr.bf16.mxu0 0
      %1088 = vmatpush1.bf16.msra.mxu0 0
      %1089 = vmatprep.subr.bf16.mxu0 0
      %1090 = vmatpush1.bf16.msra.mxu0 0
      %1091 = vmatprep.subr.bf16.mxu0 0
      %1092 = vmatpush1.bf16.msra.mxu0 0
      %1093 = vmatprep.subr.bf16.mxu0 0
      %1094 = vmatpush1.bf16.msra.mxu0 0
      %1095 = vmatprep.subr.bf16.mxu0 0
      %1096 = vmatpush1.bf16.msra.mxu0 0
      %1097 = vmatprep.subr.bf16.mxu0 0
      %1098 = vmatpush1.bf16.msra.mxu0 0
      %1099 = vmatprep.subr.bf16.mxu0 0
      %1100 = vmatpush1.bf16.msra.mxu0 0
      %1101 = vmatprep.subr.bf16.mxu0 0
      %1102 = vmatpush1.bf16.msra.mxu0 0
      %1103 = vmatprep.subr.bf16.mxu0 0
      %1104 = vmatpush1.bf16.msra.mxu0 0
      %1105 = vmatprep.mubr.bf16.mxu0 0
      %1106 = vmatmul.mubr.bf16.gmra.mrb[0].mxu0 %v1068
      %v1107 = vpop.f32.mrb[0].mxu0
      %v1108 = vadd.f32 %v1062, %v1107
      %v1109 = vpop.f32.mrb[0].mxu0
      %v1110 = vpop.f32.mrb[0].mxu0
      %v1111 = vpop.f32.mrb[0].mxu0
      %1112 = vdwg.mxu0
      %s1113 = scalar_lea.vmem %s2, 32
      %v1114 = vld [vmem:[%s1113] sm:$0xf]
      %v1115 = vld [vmem:[%s1113 + $0x4] sm:$0xf]
      %v1116 = vld [vmem:[%s1113 + $0x8] sm:$0xf]
      %v1117 = vld [vmem:[%s1113 + $0xc] sm:$0xf]
      %v1122 = vunpack.c.l.b16 %v1114
      %v1123 = vunpack.c.l.b16 %v1115
      %v1124 = vunpack.c.l.b16 %v1116
      %v1125 = vunpack.c.l.b16 %v1117
      %v1126 = vpack.c.b16 %v1123, %v1122
      %v1127 = vpack.c.b16 %v1125, %v1124
      %1130 = vmatprep.subr.bf16.mxu0 0
      %1131 = vmatpush1.bf16.msra.mxu0 %v1126
      %1132 = vmatprep.subr.bf16.mxu0 0
      %1133 = vmatpush1.bf16.msra.mxu0 %v1127
      %1134 = vmatprep.subr.bf16.mxu0 0
      %1135 = vmatpush1.bf16.msra.mxu0 0
      %1136 = vmatprep.subr.bf16.mxu0 0
      %1137 = vmatpush1.bf16.msra.mxu0 0
      %1138 = vmatprep.subr.bf16.mxu0 0
      %1139 = vmatpush1.bf16.msra.mxu0 0
      %1140 = vmatprep.subr.bf16.mxu0 0
      %1141 = vmatpush1.bf16.msra.mxu0 0
      %1142 = vmatprep.subr.bf16.mxu0 0
      %1143 = vmatpush1.bf16.msra.mxu0 0
      %1144 = vmatprep.subr.bf16.mxu0 0
      %1145 = vmatpush1.bf16.msra.mxu0 0
      %1146 = vmatprep.subr.bf16.mxu0 0
      %1147 = vmatpush1.bf16.msra.mxu0 0
      %1148 = vmatprep.subr.bf16.mxu0 0
      %1149 = vmatpush1.bf16.msra.mxu0 0
      %1150 = vmatprep.subr.bf16.mxu0 0
      %1151 = vmatpush1.bf16.msra.mxu0 0
      %1152 = vmatprep.subr.bf16.mxu0 0
      %1153 = vmatpush1.bf16.msra.mxu0 0
      %1154 = vmatprep.subr.bf16.mxu0 0
      %1155 = vmatpush1.bf16.msra.mxu0 0
      %1156 = vmatprep.subr.bf16.mxu0 0
      %1157 = vmatpush1.bf16.msra.mxu0 0
      %1158 = vmatprep.subr.bf16.mxu0 0
      %1159 = vmatpush1.bf16.msra.mxu0 0
      %1160 = vmatprep.subr.bf16.mxu0 0
      %1161 = vmatpush1.bf16.msra.mxu0 0
      %1162 = vmatprep.mubr.bf16.mxu0 0
      %1163 = vmatmul.mubr.bf16.gmra.mrb[0].mxu0 %v455
      %v1164 = vpop.f32.mrb[0].mxu0
      %v1165 = vadd.f32 0.0, %v1164
      %v1166 = vpop.f32.mrb[0].mxu0
      %v1167 = vpop.f32.mrb[0].mxu0
      %v1168 = vpop.f32.mrb[0].mxu0
      %1169 = vdwg.mxu0
      %v1170 = vmul.f32 %v1165, 0.35355338
      %v1171 = vpack.c.bf16 %v1170, %v1170
      %s1172 = scalar_lea.vmem %s3, 32
      %v1173 = vld [vmem:[%s1172] sm:$0xf]
      %v1174 = vld [vmem:[%s1172 + $0x4] sm:$0xf]
      %v1175 = vld [vmem:[%s1172 + $0x8] sm:$0xf]
      %v1176 = vld [vmem:[%s1172 + $0xc] sm:$0xf]
      %v1181 = vunpack.c.l.b16 %v1173
      %v1182 = vunpack.c.l.b16 %v1174
      %v1183 = vunpack.c.l.b16 %v1175
      %v1184 = vunpack.c.l.b16 %v1176
      %v1185 = vpack.c.b16 %v1182, %v1181
      %v1186 = vpack.c.b16 %v1184, %v1183
      %1189 = vmatprep.subr.bf16.mxu0 0
      %1190 = vmatpush1.bf16.msra.mxu0 %v1185
      %1191 = vmatprep.subr.bf16.mxu0 0
      %1192 = vmatpush1.bf16.msra.mxu0 %v1186
      %1193 = vmatprep.subr.bf16.mxu0 0
      %1194 = vmatpush1.bf16.msra.mxu0 0
      %1195 = vmatprep.subr.bf16.mxu0 0
      %1196 = vmatpush1.bf16.msra.mxu0 0
      %1197 = vmatprep.subr.bf16.mxu0 0
      %1198 = vmatpush1.bf16.msra.mxu0 0
      %1199 = vmatprep.subr.bf16.mxu0 0
      %1200 = vmatpush1.bf16.msra.mxu0 0
      %1201 = vmatprep.subr.bf16.mxu0 0
      %1202 = vmatpush1.bf16.msra.mxu0 0
      %1203 = vmatprep.subr.bf16.mxu0 0
      %1204 = vmatpush1.bf16.msra.mxu0 0
      %1205 = vmatprep.subr.bf16.mxu0 0
      %1206 = vmatpush1.bf16.msra.mxu0 0
      %1207 = vmatprep.subr.bf16.mxu0 0
      %1208 = vmatpush1.bf16.msra.mxu0 0
      %1209 = vmatprep.subr.bf16.mxu0 0
      %1210 = vmatpush1.bf16.msra.mxu0 0
      %1211 = vmatprep.subr.bf16.mxu0 0
      %1212 = vmatpush1.bf16.msra.mxu0 0
      %1213 = vmatprep.subr.bf16.mxu0 0
      %1214 = vmatpush1.bf16.msra.mxu0 0
      %1215 = vmatprep.subr.bf16.mxu0 0
      %1216 = vmatpush1.bf16.msra.mxu0 0
      %1217 = vmatprep.subr.bf16.mxu0 0
      %1218 = vmatpush1.bf16.msra.mxu0 0
      %1219 = vmatprep.subr.bf16.mxu0 0
      %1220 = vmatpush1.bf16.msra.mxu0 0
      %1221 = vmatprep.mubr.bf16.mxu0 0
      %1222 = vmatmul.mubr.bf16.gmra.mrb[0].mxu0 %v516
      %v1223 = vpop.f32.mrb[0].mxu0
      %v1224 = vadd.f32 0.0, %v1223
      %v1225 = vpop.f32.mrb[0].mxu0
      %v1226 = vpop.f32.mrb[0].mxu0
      %v1227 = vpop.f32.mrb[0].mxu0
      %1228 = vdwg.mxu0
      %s1229 = scalar_lea.vmem %s4, 32
      %v1230 = vld [vmem:[%s1229] sm:$0xf]
      %v1231 = vld [vmem:[%s1229 + $0x4] sm:$0xf]
      %v1232 = vld [vmem:[%s1229 + $0x8] sm:$0xf]
      %v1233 = vld [vmem:[%s1229 + $0xc] sm:$0xf]
      %v1238 = vunpack.c.l.b16 %v1230
      %v1239 = vunpack.c.l.b16 %v1231
      %v1240 = vunpack.c.l.b16 %v1232
      %v1241 = vunpack.c.l.b16 %v1233
      %v1242 = vpack.c.b16 %v1239, %v1238
      %v1243 = vpack.c.b16 %v1241, %v1240
      %1246 = vmatprep.subr.bf16.mxu0 0
      %1247 = vmatpush1.bf16.msra.mxu0 %v1242
      %1248 = vmatprep.subr.bf16.mxu0 0
      %1249 = vmatpush1.bf16.msra.mxu0 %v1243
      %1250 = vmatprep.subr.bf16.mxu0 0
      %1251 = vmatpush1.bf16.msra.mxu0 0
      %1252 = vmatprep.subr.bf16.mxu0 0
      %1253 = vmatpush1.bf16.msra.mxu0 0
      %1254 = vmatprep.subr.bf16.mxu0 0
      %1255 = vmatpush1.bf16.msra.mxu0 0
      %1256 = vmatprep.subr.bf16.mxu0 0
      %1257 = vmatpush1.bf16.msra.mxu0 0
      %1258 = vmatprep.subr.bf16.mxu0 0
      %1259 = vmatpush1.bf16.msra.mxu0 0
      %1260 = vmatprep.subr.bf16.mxu0 0
      %1261 = vmatpush1.bf16.msra.mxu0 0
      %1262 = vmatprep.subr.bf16.mxu0 0
      %1263 = vmatpush1.bf16.msra.mxu0 0
      %1264 = vmatprep.subr.bf16.mxu0 0
      %1265 = vmatpush1.bf16.msra.mxu0 0
      %1266 = vmatprep.subr.bf16.mxu0 0
      %1267 = vmatpush1.bf16.msra.mxu0 0
      %1268 = vmatprep.subr.bf16.mxu0 0
      %1269 = vmatpush1.bf16.msra.mxu0 0
      %1270 = vmatprep.subr.bf16.mxu0 0
      %1271 = vmatpush1.bf16.msra.mxu0 0
      %1272 = vmatprep.subr.bf16.mxu0 0
      %1273 = vmatpush1.bf16.msra.mxu0 0
      %1274 = vmatprep.subr.bf16.mxu0 0
      %1275 = vmatpush1.bf16.msra.mxu0 0
      %1276 = vmatprep.subr.bf16.mxu0 0
      %1277 = vmatpush1.bf16.msra.mxu0 0
      %1278 = vmatprep.mubr.bf16.mxu0 0
      %1279 = vmatmul.mubr.bf16.gmra.mrb[0].mxu0 %v516
      %v1280 = vpop.f32.mrb[0].mxu0
      %v1281 = vadd.f32 0.0, %v1280
      %v1282 = vpop.f32.mrb[0].mxu0
      %v1283 = vpop.f32.mrb[0].mxu0
      %v1284 = vpop.f32.mrb[0].mxu0
      %1285 = vdwg.mxu0
      %v1286 = vpack.c.bf16 %v1224, %v1224
      %v1288 = vsel %vm615, %v1171, 0
      %v1291 = vsel %vm615, %v1286, 0
      %1293 = vmatprep.subr.bf16.mxu0 0
      %1294 = vmatpush1.bf16.xpose.msra.mxu0 %v1291
      %1295 = vmatprep.subr.bf16.mxu0 0
      %1296 = vmatpush1.bf16.xpose.msra.mxu0 0
      %1297 = vmatprep.subr.bf16.mxu0 0
      %1298 = vmatpush1.bf16.xpose.msra.mxu0 0
      %1299 = vmatprep.subr.bf16.mxu0 0
      %1300 = vmatpush1.bf16.xpose.msra.mxu0 0
      %1301 = vmatprep.subr.bf16.mxu0 0
      %1302 = vmatpush1.bf16.xpose.msra.mxu0 0
      %1303 = vmatprep.subr.bf16.mxu0 0
      %1304 = vmatpush1.bf16.xpose.msra.mxu0 0
      %1305 = vmatprep.subr.bf16.mxu0 0
      %1306 = vmatpush1.bf16.xpose.msra.mxu0 0
      %1307 = vmatprep.subr.bf16.mxu0 0
      %1308 = vmatpush1.bf16.xpose.msra.mxu0 0
      %1309 = vmatprep.subr.bf16.mxu0 0
      %1310 = vmatpush1.bf16.xpose.msra.mxu0 0
      %1311 = vmatprep.subr.bf16.mxu0 0
      %1312 = vmatpush1.bf16.xpose.msra.mxu0 0
      %1313 = vmatprep.subr.bf16.mxu0 0
      %1314 = vmatpush1.bf16.xpose.msra.mxu0 0
      %1315 = vmatprep.subr.bf16.mxu0 0
      %1316 = vmatpush1.bf16.xpose.msra.mxu0 0
      %1317 = vmatprep.subr.bf16.mxu0 0
      %1318 = vmatpush1.bf16.xpose.msra.mxu0 0
      %1319 = vmatprep.subr.bf16.mxu0 0
      %1320 = vmatpush1.bf16.xpose.msra.mxu0 0
      %1321 = vmatprep.subr.bf16.mxu0 0
      %1322 = vmatpush1.bf16.xpose.msra.mxu0 0
      %1323 = vmatprep.subr.bf16.mxu0 0
      %1324 = vmatpush1.bf16.xpose.msra.mxu0 0
      %1325 = vmatprep.mubr.bf16.mxu0 0
      %1326 = vmatmul.mubr.bf16.gmra.mrb[0].mxu0 %v1288
      %v1327 = vpop.f32.mrb[0].mxu0
      %v1328 = vadd.f32 0.0, %v1327
      %v1329 = vpop.f32.mrb[0].mxu0
      %v1330 = vpop.f32.mrb[0].mxu0
      %v1331 = vpop.f32.mrb[0].mxu0
      %1332 = vdwg.mxu0
      %v1333 = vsel %vm662, -3.535534e-21, %v1328
      %v1334 = vsel %vm615, %v1333, -inf
      %1335 = vmax.xlane.f32.xlu0 %v1334
      %v1336 = vpop.xlane.xlu0 %1335
      %v1337 = vsub.f32 -inf, %v1336
      %v1338 = vmul.f32 %v1337, 1.442695
      %v1339 = vpow.pop %v1338
      %v1340 = vsub.f32 %v1333, %v1336
      %v1341 = vmul.f32 %v1340, 1.442695
      %v1342 = vpow.pop %v1341
      %v1343 = vmul.f32 %v1339, 0.0
      %v1344 = vsel %vm615, %v1342, 0.0
      %1345 = vadd.xlane.f32.xlu0 %v1344
      %v1346 = vpop.xlane.xlu0 %1345
      %v1347 = vadd.f32 %v1343, %v1346
      %v1348 = vpack.c.bf16 %v1342, %v1342
      %v1349 = vpack.c.bf16 %v1281, %v1281
      %v1351 = vsel %vm615, %v1348, 0
      %v1354 = vsel %vm683, %v1349, 0
      %1356 = vmatprep.subr.bf16.mxu0 0
      %1357 = vmatpush1.bf16.msra.mxu0 %v1354
      %1358 = vmatprep.subr.bf16.mxu0 0
      %1359 = vmatpush1.bf16.msra.mxu0 0
      %1360 = vmatprep.subr.bf16.mxu0 0
      %1361 = vmatpush1.bf16.msra.mxu0 0
      %1362 = vmatprep.subr.bf16.mxu0 0
      %1363 = vmatpush1.bf16.msra.mxu0 0
      %1364 = vmatprep.subr.bf16.mxu0 0
      %1365 = vmatpush1.bf16.msra.mxu0 0
      %1366 = vmatprep.subr.bf16.mxu0 0
      %1367 = vmatpush1.bf16.msra.mxu0 0
      %1368 = vmatprep.subr.bf16.mxu0 0
      %1369 = vmatpush1.bf16.msra.mxu0 0
      %1370 = vmatprep.subr.bf16.mxu0 0
      %1371 = vmatpush1.bf16.msra.mxu0 0
      %1372 = vmatprep.subr.bf16.mxu0 0
      %1373 = vmatpush1.bf16.msra.mxu0 0
      %1374 = vmatprep.subr.bf16.mxu0 0
      %1375 = vmatpush1.bf16.msra.mxu0 0
      %1376 = vmatprep.subr.bf16.mxu0 0
      %1377 = vmatpush1.bf16.msra.mxu0 0
      %1378 = vmatprep.subr.bf16.mxu0 0
      %1379 = vmatpush1.bf16.msra.mxu0 0
      %1380 = vmatprep.subr.bf16.mxu0 0
      %1381 = vmatpush1.bf16.msra.mxu0 0
      %1382 = vmatprep.subr.bf16.mxu0 0
      %1383 = vmatpush1.bf16.msra.mxu0 0
      %1384 = vmatprep.subr.bf16.mxu0 0
      %1385 = vmatpush1.bf16.msra.mxu0 0
      %1386 = vmatprep.subr.bf16.mxu0 0
      %1387 = vmatpush1.bf16.msra.mxu0 0
      %1388 = vmatprep.mubr.bf16.mxu0 0
      %1389 = vmatmul.mubr.bf16.gmra.mrb[0].mxu0 %v1351
      %v1390 = vpop.f32.mrb[0].mxu0
      %v1391 = vadd.f32 0.0, %v1390
      %v1392 = vpop.f32.mrb[0].mxu0
      %v1393 = vpop.f32.mrb[0].mxu0
      %v1394 = vpop.f32.mrb[0].mxu0
      %1395 = vdwg.mxu0
      %v1396 = vadd.f32 %v1343, %v1391
      %v1397 = vrcp.pop %v1347
      %v1398 = vmul.f32 %v1396, %v1397
      %v1399 = vpack.c.bf16 %v1398, %v1398
      %s1400 = scalar_lea.vmem %s5, 8
      %v1401 = vld [vmem:[%s1400] sm:$0xf]
      %v1403 = vsel %vm615, %v1399, 0
      %v1406 = vsel %vm683, %v1401, 0
      %1408 = vmatprep.subr.bf16.mxu0 0
      %1409 = vmatpush1.bf16.msra.mxu0 %v1406
      %1410 = vmatprep.subr.bf16.mxu0 0
      %1411 = vmatpush1.bf16.msra.mxu0 0
      %1412 = vmatprep.subr.bf16.mxu0 0
      %1413 = vmatpush1.bf16.msra.mxu0 0
      %1414 = vmatprep.subr.bf16.mxu0 0
      %1415 = vmatpush1.bf16.msra.mxu0 0
      %1416 = vmatprep.subr.bf16.mxu0 0
      %1417 = vmatpush1.bf16.msra.mxu0 0
      %1418 = vmatprep.subr.bf16.mxu0 0
      %1419 = vmatpush1.bf16.msra.mxu0 0
      %1420 = vmatprep.subr.bf16.mxu0 0
      %1421 = vmatpush1.bf16.msra.mxu0 0
      %1422 = vmatprep.subr.bf16.mxu0 0
      %1423 = vmatpush1.bf16.msra.mxu0 0
      %1424 = vmatprep.subr.bf16.mxu0 0
      %1425 = vmatpush1.bf16.msra.mxu0 0
      %1426 = vmatprep.subr.bf16.mxu0 0
      %1427 = vmatpush1.bf16.msra.mxu0 0
      %1428 = vmatprep.subr.bf16.mxu0 0
      %1429 = vmatpush1.bf16.msra.mxu0 0
      %1430 = vmatprep.subr.bf16.mxu0 0
      %1431 = vmatpush1.bf16.msra.mxu0 0
      %1432 = vmatprep.subr.bf16.mxu0 0
      %1433 = vmatpush1.bf16.msra.mxu0 0
      %1434 = vmatprep.subr.bf16.mxu0 0
      %1435 = vmatpush1.bf16.msra.mxu0 0
      %1436 = vmatprep.subr.bf16.mxu0 0
      %1437 = vmatpush1.bf16.msra.mxu0 0
      %1438 = vmatprep.subr.bf16.mxu0 0
      %1439 = vmatpush1.bf16.msra.mxu0 0
      %1440 = vmatprep.mubr.bf16.mxu0 0
      %1441 = vmatmul.mubr.bf16.gmra.mrb[0].mxu0 %v1403
      %v1442 = vpop.f32.mrb[0].mxu0
      %v1443 = vadd.f32 0.0, %v1442
      %v1444 = vpop.f32.mrb[0].mxu0
      %v1445 = vpop.f32.mrb[0].mxu0
      %v1446 = vpop.f32.mrb[0].mxu0
      %1447 = vdwg.mxu0
      %v1448 = vadd.f32 %v1108, %v1443
      %s1449 = scalar_lea.vmem %s2, 48
      %v1450 = vld [vmem:[%s1449] sm:$0xf]
      %v1451 = vld [vmem:[%s1449 + $0x4] sm:$0xf]
      %v1452 = vld [vmem:[%s1449 + $0x8] sm:$0xf]
      %v1453 = vld [vmem:[%s1449 + $0xc] sm:$0xf]
      %v1458 = vunpack.c.l.b16 %v1450
      %v1459 = vunpack.c.l.b16 %v1451
      %v1460 = vunpack.c.l.b16 %v1452
      %v1461 = vunpack.c.l.b16 %v1453
      %v1462 = vpack.c.b16 %v1459, %v1458
      %v1463 = vpack.c.b16 %v1461, %v1460
      %1466 = vmatprep.subr.bf16.mxu0 0
      %1467 = vmatpush1.bf16.msra.mxu0 %v1462
      %1468 = vmatprep.subr.bf16.mxu0 0
      %1469 = vmatpush1.bf16.msra.mxu0 %v1463
      %1470 = vmatprep.subr.bf16.mxu0 0
      %1471 = vmatpush1.bf16.msra.mxu0 0
      %1472 = vmatprep.subr.bf16.mxu0 0
      %1473 = vmatpush1.bf16.msra.mxu0 0
      %1474 = vmatprep.subr.bf16.mxu0 0
      %1475 = vmatpush1.bf16.msra.mxu0 0
      %1476 = vmatprep.subr.bf16.mxu0 0
      %1477 = vmatpush1.bf16.msra.mxu0 0
      %1478 = vmatprep.subr.bf16.mxu0 0
      %1479 = vmatpush1.bf16.msra.mxu0 0
      %1480 = vmatprep.subr.bf16.mxu0 0
      %1481 = vmatpush1.bf16.msra.mxu0 0
      %1482 = vmatprep.subr.bf16.mxu0 0
      %1483 = vmatpush1.bf16.msra.mxu0 0
      %1484 = vmatprep.subr.bf16.mxu0 0
      %1485 = vmatpush1.bf16.msra.mxu0 0
      %1486 = vmatprep.subr.bf16.mxu0 0
      %1487 = vmatpush1.bf16.msra.mxu0 0
      %1488 = vmatprep.subr.bf16.mxu0 0
      %1489 = vmatpush1.bf16.msra.mxu0 0
      %1490 = vmatprep.subr.bf16.mxu0 0
      %1491 = vmatpush1.bf16.msra.mxu0 0
      %1492 = vmatprep.subr.bf16.mxu0 0
      %1493 = vmatpush1.bf16.msra.mxu0 0
      %1494 = vmatprep.subr.bf16.mxu0 0
      %1495 = vmatpush1.bf16.msra.mxu0 0
      %1496 = vmatprep.subr.bf16.mxu0 0
      %1497 = vmatpush1.bf16.msra.mxu0 0
      %1498 = vmatprep.mubr.bf16.mxu0 0
      %1499 = vmatmul.mubr.bf16.gmra.mrb[0].mxu0 %v455
      %v1500 = vpop.f32.mrb[0].mxu0
      %v1501 = vadd.f32 0.0, %v1500
      %v1502 = vpop.f32.mrb[0].mxu0
      %v1503 = vpop.f32.mrb[0].mxu0
      %v1504 = vpop.f32.mrb[0].mxu0
      %1505 = vdwg.mxu0
      %v1506 = vmul.f32 %v1501, 0.35355338
      %v1507 = vpack.c.bf16 %v1506, %v1506
      %s1508 = scalar_lea.vmem %s3, 48
      %v1509 = vld [vmem:[%s1508] sm:$0xf]
      %v1510 = vld [vmem:[%s1508 + $0x4] sm:$0xf]
      %v1511 = vld [vmem:[%s1508 + $0x8] sm:$0xf]
      %v1512 = vld [vmem:[%s1508 + $0xc] sm:$0xf]
      %v1517 = vunpack.c.l.b16 %v1509
      %v1518 = vunpack.c.l.b16 %v1510
      %v1519 = vunpack.c.l.b16 %v1511
      %v1520 = vunpack.c.l.b16 %v1512
      %v1521 = vpack.c.b16 %v1518, %v1517
      %v1522 = vpack.c.b16 %v1520, %v1519
      %1525 = vmatprep.subr.bf16.mxu0 0
      %1526 = vmatpush1.bf16.msra.mxu0 %v1521
      %1527 = vmatprep.subr.bf16.mxu0 0
      %1528 = vmatpush1.bf16.msra.mxu0 %v1522
      %1529 = vmatprep.subr.bf16.mxu0 0
      %1530 = vmatpush1.bf16.msra.mxu0 0
      %1531 = vmatprep.subr.bf16.mxu0 0
      %1532 = vmatpush1.bf16.msra.mxu0 0
      %1533 = vmatprep.subr.bf16.mxu0 0
      %1534 = vmatpush1.bf16.msra.mxu0 0
      %1535 = vmatprep.subr.bf16.mxu0 0
      %1536 = vmatpush1.bf16.msra.mxu0 0
      %1537 = vmatprep.subr.bf16.mxu0 0
      %1538 = vmatpush1.bf16.msra.mxu0 0
      %1539 = vmatprep.subr.bf16.mxu0 0
      %1540 = vmatpush1.bf16.msra.mxu0 0
      %1541 = vmatprep.subr.bf16.mxu0 0
      %1542 = vmatpush1.bf16.msra.mxu0 0
      %1543 = vmatprep.subr.bf16.mxu0 0
      %1544 = vmatpush1.bf16.msra.mxu0 0
      %1545 = vmatprep.subr.bf16.mxu0 0
      %1546 = vmatpush1.bf16.msra.mxu0 0
      %1547 = vmatprep.subr.bf16.mxu0 0
      %1548 = vmatpush1.bf16.msra.mxu0 0
      %1549 = vmatprep.subr.bf16.mxu0 0
      %1550 = vmatpush1.bf16.msra.mxu0 0
      %1551 = vmatprep.subr.bf16.mxu0 0
      %1552 = vmatpush1.bf16.msra.mxu0 0
      %1553 = vmatprep.subr.bf16.mxu0 0
      %1554 = vmatpush1.bf16.msra.mxu0 0
      %1555 = vmatprep.subr.bf16.mxu0 0
      %1556 = vmatpush1.bf16.msra.mxu0 0
      %1557 = vmatprep.mubr.bf16.mxu0 0
      %1558 = vmatmul.mubr.bf16.gmra.mrb[0].mxu0 %v516
      %v1559 = vpop.f32.mrb[0].mxu0
      %v1560 = vadd.f32 0.0, %v1559
      %v1561 = vpop.f32.mrb[0].mxu0
      %v1562 = vpop.f32.mrb[0].mxu0
      %v1563 = vpop.f32.mrb[0].mxu0
      %1564 = vdwg.mxu0
      %s1565 = scalar_lea.vmem %s4, 48
      %v1566 = vld [vmem:[%s1565] sm:$0xf]
      %v1567 = vld [vmem:[%s1565 + $0x4] sm:$0xf]
      %v1568 = vld [vmem:[%s1565 + $0x8] sm:$0xf]
      %v1569 = vld [vmem:[%s1565 + $0xc] sm:$0xf]
      %v1574 = vunpack.c.l.b16 %v1566
      %v1575 = vunpack.c.l.b16 %v1567
      %v1576 = vunpack.c.l.b16 %v1568
      %v1577 = vunpack.c.l.b16 %v1569
      %v1578 = vpack.c.b16 %v1575, %v1574
      %v1579 = vpack.c.b16 %v1577, %v1576
      %1582 = vmatprep.subr.bf16.mxu0 0
      %1583 = vmatpush1.bf16.msra.mxu0 %v1578
      %1584 = vmatprep.subr.bf16.mxu0 0
      %1585 = vmatpush1.bf16.msra.mxu0 %v1579
      %1586 = vmatprep.subr.bf16.mxu0 0
      %1587 = vmatpush1.bf16.msra.mxu0 0
      %1588 = vmatprep.subr.bf16.mxu0 0
      %1589 = vmatpush1.bf16.msra.mxu0 0
      %1590 = vmatprep.subr.bf16.mxu0 0
      %1591 = vmatpush1.bf16.msra.mxu0 0
      %1592 = vmatprep.subr.bf16.mxu0 0
      %1593 = vmatpush1.bf16.msra.mxu0 0
      %1594 = vmatprep.subr.bf16.mxu0 0
      %1595 = vmatpush1.bf16.msra.mxu0 0
      %1596 = vmatprep.subr.bf16.mxu0 0
      %1597 = vmatpush1.bf16.msra.mxu0 0
      %1598 = vmatprep.subr.bf16.mxu0 0
      %1599 = vmatpush1.bf16.msra.mxu0 0
      %1600 = vmatprep.subr.bf16.mxu0 0
      %1601 = vmatpush1.bf16.msra.mxu0 0
      %1602 = vmatprep.subr.bf16.mxu0 0
      %1603 = vmatpush1.bf16.msra.mxu0 0
      %1604 = vmatprep.subr.bf16.mxu0 0
      %1605 = vmatpush1.bf16.msra.mxu0 0
      %1606 = vmatprep.subr.bf16.mxu0 0
      %1607 = vmatpush1.bf16.msra.mxu0 0
      %1608 = vmatprep.subr.bf16.mxu0 0
      %1609 = vmatpush1.bf16.msra.mxu0 0
      %1610 = vmatprep.subr.bf16.mxu0 0
      %1611 = vmatpush1.bf16.msra.mxu0 0
      %1612 = vmatprep.subr.bf16.mxu0 0
      %1613 = vmatpush1.bf16.msra.mxu0 0
      %1614 = vmatprep.mubr.bf16.mxu0 0
      %1615 = vmatmul.mubr.bf16.gmra.mrb[0].mxu0 %v516
      %v1616 = vpop.f32.mrb[0].mxu0
      %v1617 = vadd.f32 0.0, %v1616
      %v1618 = vpop.f32.mrb[0].mxu0
      %v1619 = vpop.f32.mrb[0].mxu0
      %v1620 = vpop.f32.mrb[0].mxu0
      %1621 = vdwg.mxu0
      %v1622 = vpack.c.bf16 %v1560, %v1560
      %v1624 = vsel %vm615, %v1507, 0
      %v1627 = vsel %vm615, %v1622, 0
      %1629 = vmatprep.subr.bf16.mxu0 0
      %1630 = vmatpush1.bf16.xpose.msra.mxu0 %v1627
      %1631 = vmatprep.subr.bf16.mxu0 0
      %1632 = vmatpush1.bf16.xpose.msra.mxu0 0
      %1633 = vmatprep.subr.bf16.mxu0 0
      %1634 = vmatpush1.bf16.xpose.msra.mxu0 0
      %1635 = vmatprep.subr.bf16.mxu0 0
      %1636 = vmatpush1.bf16.xpose.msra.mxu0 0
      %1637 = vmatprep.subr.bf16.mxu0 0
      %1638 = vmatpush1.bf16.xpose.msra.mxu0 0
      %1639 = vmatprep.subr.bf16.mxu0 0
      %1640 = vmatpush1.bf16.xpose.msra.mxu0 0
      %1641 = vmatprep.subr.bf16.mxu0 0
      %1642 = vmatpush1.bf16.xpose.msra.mxu0 0
      %1643 = vmatprep.subr.bf16.mxu0 0
      %1644 = vmatpush1.bf16.xpose.msra.mxu0 0
      %1645 = vmatprep.subr.bf16.mxu0 0
      %1646 = vmatpush1.bf16.xpose.msra.mxu0 0
      %1647 = vmatprep.subr.bf16.mxu0 0
      %1648 = vmatpush1.bf16.xpose.msra.mxu0 0
      %1649 = vmatprep.subr.bf16.mxu0 0
      %1650 = vmatpush1.bf16.xpose.msra.mxu0 0
      %1651 = vmatprep.subr.bf16.mxu0 0
      %1652 = vmatpush1.bf16.xpose.msra.mxu0 0
      %1653 = vmatprep.subr.bf16.mxu0 0
      %1654 = vmatpush1.bf16.xpose.msra.mxu0 0
      %1655 = vmatprep.subr.bf16.mxu0 0
      %1656 = vmatpush1.bf16.xpose.msra.mxu0 0
      %1657 = vmatprep.subr.bf16.mxu0 0
      %1658 = vmatpush1.bf16.xpose.msra.mxu0 0
      %1659 = vmatprep.subr.bf16.mxu0 0
      %1660 = vmatpush1.bf16.xpose.msra.mxu0 0
      %1661 = vmatprep.mubr.bf16.mxu0 0
      %1662 = vmatmul.mubr.bf16.gmra.mrb[0].mxu0 %v1624
      %v1663 = vpop.f32.mrb[0].mxu0
      %v1664 = vadd.f32 0.0, %v1663
      %v1665 = vpop.f32.mrb[0].mxu0
      %v1666 = vpop.f32.mrb[0].mxu0
      %v1667 = vpop.f32.mrb[0].mxu0
      %1668 = vdwg.mxu0
      %v1669 = vsel %vm662, -3.535534e-21, %v1664
      %v1670 = vsel %vm615, %v1669, -inf
      %1671 = vmax.xlane.f32.xlu0 %v1670
      %v1672 = vpop.xlane.xlu0 %1671
      %v1673 = vsub.f32 -inf, %v1672
      %v1674 = vmul.f32 %v1673, 1.442695
      %v1675 = vpow.pop %v1674
      %v1676 = vsub.f32 %v1669, %v1672
      %v1677 = vmul.f32 %v1676, 1.442695
      %v1678 = vpow.pop %v1677
      %v1679 = vmul.f32 %v1675, 0.0
      %v1680 = vsel %vm615, %v1678, 0.0
      %1681 = vadd.xlane.f32.xlu0 %v1680
      %v1682 = vpop.xlane.xlu0 %1681
      %v1683 = vadd.f32 %v1679, %v1682
      %v1684 = vpack.c.bf16 %v1678, %v1678
      %v1685 = vpack.c.bf16 %v1617, %v1617
      %v1687 = vsel %vm615, %v1684, 0
      %v1690 = vsel %vm683, %v1685, 0
      %1692 = vmatprep.subr.bf16.mxu0 0
      %1693 = vmatpush1.bf16.msra.mxu0 %v1690
      %1694 = vmatprep.subr.bf16.mxu0 0
      %1695 = vmatpush1.bf16.msra.mxu0 0
      %1696 = vmatprep.subr.bf16.mxu0 0
      %1697 = vmatpush1.bf16.msra.mxu0 0
      %1698 = vmatprep.subr.bf16.mxu0 0
      %1699 = vmatpush1.bf16.msra.mxu0 0
      %1700 = vmatprep.subr.bf16.mxu0 0
      %1701 = vmatpush1.bf16.msra.mxu0 0
      %1702 = vmatprep.subr.bf16.mxu0 0
      %1703 = vmatpush1.bf16.msra.mxu0 0
      %1704 = vmatprep.subr.bf16.mxu0 0
      %1705 = vmatpush1.bf16.msra.mxu0 0
      %1706 = vmatprep.subr.bf16.mxu0 0
      %1707 = vmatpush1.bf16.msra.mxu0 0
      %1708 = vmatprep.subr.bf16.mxu0 0
      %1709 = vmatpush1.bf16.msra.mxu0 0
      %1710 = vmatprep.subr.bf16.mxu0 0
      %1711 = vmatpush1.bf16.msra.mxu0 0
      %1712 = vmatprep.subr.bf16.mxu0 0
      %1713 = vmatpush1.bf16.msra.mxu0 0
      %1714 = vmatprep.subr.bf16.mxu0 0
      %1715 = vmatpush1.bf16.msra.mxu0 0
      %1716 = vmatprep.subr.bf16.mxu0 0
      %1717 = vmatpush1.bf16.msra.mxu0 0
      %1718 = vmatprep.subr.bf16.mxu0 0
      %1719 = vmatpush1.bf16.msra.mxu0 0
      %1720 = vmatprep.subr.bf16.mxu0 0
      %1721 = vmatpush1.bf16.msra.mxu0 0
      %1722 = vmatprep.subr.bf16.mxu0 0
      %1723 = vmatpush1.bf16.msra.mxu0 0
      %1724 = vmatprep.mubr.bf16.mxu0 0
      %1725 = vmatmul.mubr.bf16.gmra.mrb[0].mxu0 %v1687
      %v1726 = vpop.f32.mrb[0].mxu0
      %v1727 = vadd.f32 0.0, %v1726
      %v1728 = vpop.f32.mrb[0].mxu0
      %v1729 = vpop.f32.mrb[0].mxu0
      %v1730 = vpop.f32.mrb[0].mxu0
      %1731 = vdwg.mxu0
      %v1732 = vadd.f32 %v1679, %v1727
      %v1733 = vrcp.pop %v1683
      %v1734 = vmul.f32 %v1732, %v1733
      %v1735 = vpack.c.bf16 %v1734, %v1734
      %s1736 = scalar_lea.vmem %s5, 12
      %v1737 = vld [vmem:[%s1736] sm:$0xf]
      %v1739 = vsel %vm615, %v1735, 0
      %v1742 = vsel %vm683, %v1737, 0
      %1744 = vmatprep.subr.bf16.mxu0 0
      %1745 = vmatpush1.bf16.msra.mxu0 %v1742
      %1746 = vmatprep.subr.bf16.mxu0 0
      %1747 = vmatpush1.bf16.msra.mxu0 0
      %1748 = vmatprep.subr.bf16.mxu0 0
      %1749 = vmatpush1.bf16.msra.mxu0 0
      %1750 = vmatprep.subr.bf16.mxu0 0
      %1751 = vmatpush1.bf16.msra.mxu0 0
      %1752 = vmatprep.subr.bf16.mxu0 0
      %1753 = vmatpush1.bf16.msra.mxu0 0
      %1754 = vmatprep.subr.bf16.mxu0 0
      %1755 = vmatpush1.bf16.msra.mxu0 0
      %1756 = vmatprep.subr.bf16.mxu0 0
      %1757 = vmatpush1.bf16.msra.mxu0 0
      %1758 = vmatprep.subr.bf16.mxu0 0
      %1759 = vmatpush1.bf16.msra.mxu0 0
      %1760 = vmatprep.subr.bf16.mxu0 0
      %1761 = vmatpush1.bf16.msra.mxu0 0
      %1762 = vmatprep.subr.bf16.mxu0 0
      %1763 = vmatpush1.bf16.msra.mxu0 0
      %1764 = vmatprep.subr.bf16.mxu0 0
      %1765 = vmatpush1.bf16.msra.mxu0 0
      %1766 = vmatprep.subr.bf16.mxu0 0
      %1767 = vmatpush1.bf16.msra.mxu0 0
      %1768 = vmatprep.subr.bf16.mxu0 0
      %1769 = vmatpush1.bf16.msra.mxu0 0
      %1770 = vmatprep.subr.bf16.mxu0 0
      %1771 = vmatpush1.bf16.msra.mxu0 0
      %1772 = vmatprep.subr.bf16.mxu0 0
      %1773 = vmatpush1.bf16.msra.mxu0 0
      %1774 = vmatprep.subr.bf16.mxu0 0
      %1775 = vmatpush1.bf16.msra.mxu0 0
      %1776 = vmatprep.mubr.bf16.mxu0 0
      %1777 = vmatmul.mubr.bf16.gmra.mrb[0].mxu0 %v1739
      %v1778 = vpop.f32.mrb[0].mxu0
      %v1779 = vadd.f32 0.0, %v1778
      %v1780 = vpop.f32.mrb[0].mxu0
      %v1781 = vpop.f32.mrb[0].mxu0
      %v1782 = vpop.f32.mrb[0].mxu0
      %1783 = vdwg.mxu0
      %v1784 = vadd.f32 %v1448, %v1779
      %v1785 = vld [vmem:[%s6] sm:$0x1]
      %v1787 = vlaneseq
      %v1788 = vshrl.u32 %v1787, 7
      %v1789 = vsub.s32 0, %v1788
      %v1790 = vrot.slane %v1785, %v1789
      %v1792 = vadd.f32 %v1784, %v1790
      %v1793 = vunpack.c.l.bf16 %v432
      %v1794 = vadd.f32 %v1792, %v1793
      %v1795 = vld [vmem:[%s8] sm:$0x1]
      %v1796 = vld [vmem:[%s9] sm:$0x1]
      %v1797 = vsel %vm453, %v1794, 0.0
      %1798 = vadd.xlane.f32.xlu0 %v1797
      %v1799 = vpop.xlane.xlu0 %1798
      %v1800 = vrcp.pop 32.0
      %v1801 = vmul.f32 %v1799, %v1800
      %v1802 = vsub.f32 %v1794, %v1801
      %v1803 = vmul.f32 %v1802, %v1802
      %v1804 = vsel %vm453, %v1803, 0.0
      %1805 = vadd.xlane.f32.xlu0 %v1804
      %v1806 = vpop.xlane.xlu0 %1805
      %v1807 = vmul.f32 %v1806, %v1800
      %v1808 = vadd.f32 %v1807, 1e-05
      %v1809 = vrsqrt.pop %v1808
      %v1810 = vmul.f32 %v1802, %v1809
      %v1812 = vlaneseq
      %v1813 = vshrl.u32 %v1812, 7
      %v1814 = vsub.s32 0, %v1813
      %v1815 = vrot.slane %v1795, %v1814
      %v1817 = vmul.f32 %v1810, %v1815
      %v1819 = vlaneseq
      %v1820 = vshrl.u32 %v1819, 7
      %v1821 = vsub.s32 0, %v1820
      %v1822 = vrot.slane %v1796, %v1821
      %v1824 = vadd.f32 %v1817, %v1822
      %v1825 = vpack.c.bf16 %v1824, %v1824
      %vm1826 = vcmask 257024
      %1827 = vst.msk [vmem:[%s430] sm:$0xf] %vm1826, %v1825
      %p1828 = scmp.lt.s32.totalorder %s25, 1
      %s1829 = scalar_select %p1828, %s25, 1
      %p1830 = scmp.lt.s32.totalorder %s26, 0
      %s1831 = scalar_select %p1830, %s26, 0
      %s1832 = sadd.s32 %s1831, %s1829
      %s1833 = smul.addr %s1832, 4
      %s1834 = scalar_lea.vmem %s10, %s1833
      // Predicated region
      $region61: #{decoder_forward.7} parent=59 // pred_check
        %p1835 = pneg %p282
      $region62: #{decoder_forward.7} parent=59 // pred_check_branch
        %1837 = sbr.rel (%p1835) target = $region64
      $region63: #{decoder_forward.7} parent=59 // pred_region
        _
      $region64: #{decoder_forward.7} parent=59 // pred_fallthru
        _
    $region60: #{decoder_forward.7} parent=5 // pred_fallthru
      _
    %p1838 = scmp.le.s32.totalorder 2, %s16
    // Predicated region
    $region65: #{decoder_forward.7} parent=5 // pred_check
      %p1839 = pneg %p1838
    $region66: #{decoder_forward.7} parent=5 // pred_check_branch
      %1841 = sbr.rel (%p1839) target = $region68
    $region67: #{decoder_forward.7} parent=5 // pred_region
      %s1842 = ssub.s32 %s16, 2
      // Predicated region
      $region69: #{decoder_forward.7} parent=67 // pred_check
        %p1843 = pneg %p288
      $region70: #{decoder_forward.7} parent=67 // pred_check_branch
        %1845 = sbr.rel (%p1843) target = $region72
      $region71: #{decoder_forward.7} parent=67 // pred_region
        %p1846 = scmp.lt.s32.totalorder %s27, 1
        %s1847 = scalar_select %p1846, %s27, 1
        %p1848 = scmp.lt.s32.totalorder %s28, 0
        %s1849 = scalar_select %p1848, %s28, 0
        %s1850 = sadd.s32 %s1849, %s1847
        %s1851 = smul.addr %s1850, 4
        %s1852 = scalar_lea.vmem %s10, %s1851
      $region72: #{decoder_forward.7} parent=67 // pred_fallthru
        _
    $region68: #{decoder_forward.7} parent=5 // pred_fallthru
      _
  $region6: #{decoder_forward.7} parent=0 // loop_footer
    %s20 = sadd.s32 1, %s16
  $region7: #{decoder_forward.7} parent=0 // loop_footer_branch
    %15 = sbr.rel target = $region3
  $region8: #{decoder_forward.7} parent=0 // loop_exit
    _

// kernel: decoder_forward.8
$region0: #{decoder_forward.8}
  #allocation0 [shape = 'u32[]', space=smem, size = 0x4, offset = 0x4, fixed_abs, tag = 'smem constant byte address 0x4 - core index']
  #allocation1 [shape = 'u32[144,128]{1,0:T(1,128)}', space=vmem, size = 0x12000, scoped, tag = 'internal scratch']
  %s0 = inlined_call_operand.vmem [shape: bf16[2,8,32], index: 0, kind: input, shape index: {}]
  %s1 = inlined_call_operand.vmem [shape: bf16[2,8,32], index: 1, kind: input, shape index: {}]
  %s2 = inlined_call_operand.vmem [shape: bf16[4,32,8], index: 2, kind: input, shape index: {}]
  %s3 = inlined_call_operand.vmem [shape: bf16[4,32,8], index: 3, kind: input, shape index: {}]
  %s4 = inlined_call_operand.vmem [shape: bf16[4,32,8], index: 4, kind: input, shape index: {}]
  %s5 = inlined_call_operand.vmem [shape: bf16[4,8,32], index: 5, kind: input, shape index: {}]
  %s6 = inlined_call_operand.vmem [shape: f32[1,32], index: 6, kind: input, shape index: {}]
  %s7 = inlined_call_operand.vmem [shape: s8[2,1,8], index: 7, kind: input, shape index: {}]
  %s8 = inlined_call_operand.vmem [shape: f32[1,32], index: 8, kind: input, shape index: {}]
  %s9 = inlined_call_operand.vmem [shape: f32[1,32], index: 9, kind: input, shape index: {}]
  %s10 = inlined_call_operand.vmem [shape: bf16[2,8,32], index: 10, kind: output, shape index: {}]
  %s11 = sld [smem:[#allocation0]]
  $region73: #{decoder_forward.8} parent=0
    _
  %s13 = ssub.s32 1, %s11
  %s14 = scalar_select 0, %s13, %s11
  loop: start=0, step=1, limit=4
  $region2: #{decoder_forward.8} parent=0 // loop_pre_header
    _
  $region3: #{decoder_forward.8} parent=0 // loop_header
    %s16 = sphi 0, %s20
    %p17 = scmp.ge.s32.totalorder %s16, 4
    %s23 = sphi 0, %s35
    %s24 = sphi 0, %s31
    %s25 = sphi 0, %s23
    %s26 = sphi 0, %s24
    %s27 = sphi 0, %s25
    %s28 = sphi 0, %s26
    %s40 = sphi 0, %s42
    %s43 = sphi 0, %s40
    %s44 = sphi 0, %s43
    %s60 = sphi 0, %s44
    %s66 = sphi 0, %s68
    %s69 = sphi 0, %s66
    %s70 = sphi 0, %s69
    %s86 = sphi 0, %s70
    %s90 = sphi 0, %s90
    %s92 = sphi 0, %s90
    %s93 = sphi 0, %s92
    %s107 = sphi 0, %s93
    %s111 = sphi 0, %s111
    %s113 = sphi 0, %s111
    %s114 = sphi 0, %s113
    %s128 = sphi 0, %s114
    %s132 = sphi 0, %s132
    %s134 = sphi 0, %s132
    %s135 = sphi 0, %s134
    %s149 = sphi 0, %s135
    %s153 = sphi 0, %s153
    %s155 = sphi 0, %s153
    %s156 = sphi 0, %s155
    %s170 = sphi 0, %s156
    %s174 = sphi 0, %s174
    %s176 = sphi 0, %s174
    %s177 = sphi 0, %s176
    %s191 = sphi 0, %s177
    %s197 = sphi 0, %s199
    %s200 = sphi 0, %s197
    %s201 = sphi 0, %s200
    %s217 = sphi 0, %s201
    %s221 = sphi 0, %s221
    %s223 = sphi 0, %s221
    %s224 = sphi 0, %s223
    %s238 = sphi 0, %s224
    %s242 = sphi 0, %s242
    %s244 = sphi 0, %s242
    %s245 = sphi 0, %s244
    %s259 = sphi 0, %s245
    %s267 = sphi 0, %s269
    %s270 = sphi 0, %s267
    %s271 = sphi 0, %s270
    %s287 = sphi 0, %s271
  $region4: #{decoder_forward.8} parent=0 // loop_header_branch
    %19 = sbr.rel (%p17) target = $region8
  $region5: #{decoder_forward.8} parent=0 // loop_body
    %s21 = ssub.s32 %s16, 1
    %s22 = ssub.s32 %s16, 2
    %s29 = sadd.s32 1, %s24
    %p30 = scmp.ge.s32.totalorder %s29, 1
    %s31 = scalar_select %p30, 0, %s29
    %s32 = sadd.s32 1, %s23
    %s33 = scalar_select %p30, %s32, %s23
    %p34 = scmp.ge.s32.totalorder %s33, 2
    %s35 = scalar_select %p34, 0, %s33
    %s36 = ssub.s32 %s23, %s35
    %s37 = ssub.s32 %s24, %s31
    %s38 = sor.u32 %s36, %s37
    %p39 = scmp.eq.s32.totalorder %s38, 0
    %s41 = sadd.s32 %s40, 1
    %s42 = scalar_select %p39, %s40, %s41
    %p45 = pneg %p39
    %p46 = scmp.eq.s32.totalorder %s16, 1
    %p47 = por %p45, %p46
    %p48 = scmp.ne.s32.totalorder %s40, %s43
    %p49 = scmp.eq.s32.totalorder %s16, 0
    %p50 = por %p48, %p49
    %p51 = scmp.ne.s32.totalorder %s40, %s43
    %p52 = scmp.eq.s32.totalorder %s21, 1
    %p53 = por %p51, %p52
    %p54 = scmp.ne.s32.totalorder %s43, %s44
    %p55 = scmp.eq.s32.totalorder %s21, 0
    %p56 = por %p54, %p55
    %p57 = scmp.ne.s32.totalorder %s43, %s44
    %p58 = scmp.eq.s32.totalorder %s22, 1
    %p59 = por %p57, %p58
    %p61 = scmp.ne.s32.totalorder %s44, %s60
    %p62 = scmp.eq.s32.totalorder %s22, 0
    %p63 = por %p61, %p62
    %s64 = ssub.s32 %s23, %s35
    %p65 = scmp.eq.s32.totalorder %s64, 0
    %s67 = sadd.s32 %s66, 1
    %s68 = scalar_select %p65, %s66, %s67
    %p71 = pneg %p65
    %p72 = scmp.eq.s32.totalorder %s16, 1
    %p73 = por %p71, %p72
    %p74 = scmp.ne.s32.totalorder %s66, %s69
    %p75 = scmp.eq.s32.totalorder %s16, 0
    %p76 = por %p74, %p75
    %p77 = scmp.ne.s32.totalorder %s66, %s69
    %p78 = scmp.eq.s32.totalorder %s21, 1
    %p79 = por %p77, %p78
    %p80 = scmp.ne.s32.totalorder %s69, %s70
    %p81 = scmp.eq.s32.totalorder %s21, 0
    %p82 = por %p80, %p81
    %p83 = scmp.ne.s32.totalorder %s69, %s70
    %p84 = scmp.eq.s32.totalorder %s22, 1
    %p85 = por %p83, %p84
    %p87 = scmp.ne.s32.totalorder %s70, %s86
    %p88 = scmp.eq.s32.totalorder %s22, 0
    %p89 = por %p87, %p88
    %s91 = sadd.s32 %s90, 1
    %p94 = scmp.eq.s32.totalorder %s16, 1
    %p95 = scmp.ne.s32.totalorder %s90, %s92
    %p96 = scmp.eq.s32.totalorder %s16, 0
    %p97 = por %p95, %p96
    %p98 = scmp.ne.s32.totalorder %s90, %s92
    %p99 = scmp.eq.s32.totalorder %s21, 1
    %p100 = por %p98, %p99
    %p101 = scmp.ne.s32.totalorder %s92, %s93
    %p102 = scmp.eq.s32.totalorder %s21, 0
    %p103 = por %p101, %p102
    %p104 = scmp.ne.s32.totalorder %s92, %s93
    %p105 = scmp.eq.s32.totalorder %s22, 1
    %p106 = por %p104, %p105
    %p108 = scmp.ne.s32.totalorder %s93, %s107
    %p109 = scmp.eq.s32.totalorder %s22, 0
    %p110 = por %p108, %p109
    %s112 = sadd.s32 %s111, 1
    %p115 = scmp.eq.s32.totalorder %s16, 1
    %p116 = scmp.ne.s32.totalorder %s111, %s113
    %p117 = scmp.eq.s32.totalorder %s16, 0
    %p118 = por %p116, %p117
    %p119 = scmp.ne.s32.totalorder %s111, %s113
    %p120 = scmp.eq.s32.totalorder %s21, 1
    %p121 = por %p119, %p120
    %p122 = scmp.ne.s32.totalorder %s113, %s114
    %p123 = scmp.eq.s32.totalorder %s21, 0
    %p124 = por %p122, %p123
    %p125 = scmp.ne.s32.totalorder %s113, %s114
    %p126 = scmp.eq.s32.totalorder %s22, 1
    %p127 = por %p125, %p126
    %p129 = scmp.ne.s32.totalorder %s114, %s128
    %p130 = scmp.eq.s32.totalorder %s22, 0
    %p131 = por %p129, %p130
    %s133 = sadd.s32 %s132, 1
    %p136 = scmp.eq.s32.totalorder %s16, 1
    %p137 = scmp.ne.s32.totalorder %s132, %s134
    %p138 = scmp.eq.s32.totalorder %s16, 0
    %p139 = por %p137, %p138
    %p140 = scmp.ne.s32.totalorder %s132, %s134
    %p141 = scmp.eq.s32.totalorder %s21, 1
    %p142 = por %p140, %p141
    %p143 = scmp.ne.s32.totalorder %s134, %s135
    %p144 = scmp.eq.s32.totalorder %s21, 0
    %p145 = por %p143, %p144
    %p146 = scmp.ne.s32.totalorder %s134, %s135
    %p147 = scmp.eq.s32.totalorder %s22, 1
    %p148 = por %p146, %p147
    %p150 = scmp.ne.s32.totalorder %s135, %s149
    %p151 = scmp.eq.s32.totalorder %s22, 0
    %p152 = por %p150, %p151
    %s154 = sadd.s32 %s153, 1
    %p157 = scmp.eq.s32.totalorder %s16, 1
    %p158 = scmp.ne.s32.totalorder %s153, %s155
    %p159 = scmp.eq.s32.totalorder %s16, 0
    %p160 = por %p158, %p159
    %p161 = scmp.ne.s32.totalorder %s153, %s155
    %p162 = scmp.eq.s32.totalorder %s21, 1
    %p163 = por %p161, %p162
    %p164 = scmp.ne.s32.totalorder %s155, %s156
    %p165 = scmp.eq.s32.totalorder %s21, 0
    %p166 = por %p164, %p165
    %p167 = scmp.ne.s32.totalorder %s155, %s156
    %p168 = scmp.eq.s32.totalorder %s22, 1
    %p169 = por %p167, %p168
    %p171 = scmp.ne.s32.totalorder %s156, %s170
    %p172 = scmp.eq.s32.totalorder %s22, 0
    %p173 = por %p171, %p172
    %s175 = sadd.s32 %s174, 1
    %p178 = scmp.eq.s32.totalorder %s16, 1
    %p179 = scmp.ne.s32.totalorder %s174, %s176
    %p180 = scmp.eq.s32.totalorder %s16, 0
    %p181 = por %p179, %p180
    %p182 = scmp.ne.s32.totalorder %s174, %s176
    %p183 = scmp.eq.s32.totalorder %s21, 1
    %p184 = por %p182, %p183
    %p185 = scmp.ne.s32.totalorder %s176, %s177
    %p186 = scmp.eq.s32.totalorder %s21, 0
    %p187 = por %p185, %p186
    %p188 = scmp.ne.s32.totalorder %s176, %s177
    %p189 = scmp.eq.s32.totalorder %s22, 1
    %p190 = por %p188, %p189
    %p192 = scmp.ne.s32.totalorder %s177, %s191
    %p193 = scmp.eq.s32.totalorder %s22, 0
    %p194 = por %p192, %p193
    %s195 = ssub.s32 %s23, %s35
    %p196 = scmp.eq.s32.totalorder %s195, 0
    %s198 = sadd.s32 %s197, 1
    %s199 = scalar_select %p196, %s197, %s198
    %p202 = pneg %p196
    %p203 = scmp.eq.s32.totalorder %s16, 1
    %p204 = por %p202, %p203
    %p205 = scmp.ne.s32.totalorder %s197, %s200
    %p206 = scmp.eq.s32.totalorder %s16, 0
    %p207 = por %p205, %p206
    %p208 = scmp.ne.s32.totalorder %s197, %s200
    %p209 = scmp.eq.s32.totalorder %s21, 1
    %p210 = por %p208, %p209
    %p211 = scmp.ne.s32.totalorder %s200, %s201
    %p212 = scmp.eq.s32.totalorder %s21, 0
    %p213 = por %p211, %p212
    %p214 = scmp.ne.s32.totalorder %s200, %s201
    %p215 = scmp.eq.s32.totalorder %s22, 1
    %p216 = por %p214, %p215
    %p218 = scmp.ne.s32.totalorder %s201, %s217
    %p219 = scmp.eq.s32.totalorder %s22, 0
    %p220 = por %p218, %p219
    %s222 = sadd.s32 %s221, 1
    %p225 = scmp.eq.s32.totalorder %s16, 1
    %p226 = scmp.ne.s32.totalorder %s221, %s223
    %p227 = scmp.eq.s32.totalorder %s16, 0
    %p228 = por %p226, %p227
    %p229 = scmp.ne.s32.totalorder %s221, %s223
    %p230 = scmp.eq.s32.totalorder %s21, 1
    %p231 = por %p229, %p230
    %p232 = scmp.ne.s32.totalorder %s223, %s224
    %p233 = scmp.eq.s32.totalorder %s21, 0
    %p234 = por %p232, %p233
    %p235 = scmp.ne.s32.totalorder %s223, %s224
    %p236 = scmp.eq.s32.totalorder %s22, 1
    %p237 = por %p235, %p236
    %p239 = scmp.ne.s32.totalorder %s224, %s238
    %p240 = scmp.eq.s32.totalorder %s22, 0
    %p241 = por %p239, %p240
    %s243 = sadd.s32 %s242, 1
    %p246 = scmp.eq.s32.totalorder %s16, 1
    %p247 = scmp.ne.s32.totalorder %s242, %s244
    %p248 = scmp.eq.s32.totalorder %s16, 0
    %p249 = por %p247, %p248
    %p250 = scmp.ne.s32.totalorder %s242, %s244
    %p251 = scmp.eq.s32.totalorder %s21, 1
    %p252 = por %p250, %p251
    %p253 = scmp.ne.s32.totalorder %s244, %s245
    %p254 = scmp.eq.s32.totalorder %s21, 0
    %p255 = por %p253, %p254
    %p256 = scmp.ne.s32.totalorder %s244, %s245
    %p257 = scmp.eq.s32.totalorder %s22, 1
    %p258 = por %p256, %p257
    %p260 = scmp.ne.s32.totalorder %s245, %s259
    %p261 = scmp.eq.s32.totalorder %s22, 0
    %p262 = por %p260, %p261
    %s263 = ssub.s32 %s23, %s35
    %s264 = ssub.s32 %s24, %s31
    %s265 = sor.u32 %s263, %s264
    %p266 = scmp.eq.s32.totalorder %s265, 0
    %s268 = sadd.s32 %s267, 1
    %s269 = scalar_select %p266, %s267, %s268
    %p272 = pneg %p266
    %p273 = scmp.eq.s32.totalorder %s16, 1
    %p274 = por %p272, %p273
    %p275 = scmp.ne.s32.totalorder %s267, %s270
    %p276 = scmp.eq.s32.totalorder %s16, 0
    %p277 = por %p275, %p276
    %p278 = scmp.ne.s32.totalorder %s267, %s270
    %p279 = scmp.eq.s32.totalorder %s21, 1
    %p280 = por %p278, %p279
    %p281 = scmp.ne.s32.totalorder %s270, %s271
    %p282 = scmp.eq.s32.totalorder %s21, 0
    %p283 = por %p281, %p282
    %p284 = scmp.ne.s32.totalorder %s270, %s271
    %p285 = scmp.eq.s32.totalorder %s22, 1
    %p286 = por %p284, %p285
    %p288 = scmp.ne.s32.totalorder %s271, %s287
    %p289 = scmp.eq.s32.totalorder %s22, 0
    %p290 = por %p288, %p289
    %p291 = scmp.le.s32.totalorder 1, %s16
    %p292 = scmp.lt.s32.totalorder %s16, 3
    %p293 = pnand %p291, %p292
    %p294 = pneg %p293
    // Predicated region
    $region9: #{decoder_forward.8} parent=5 // pred_check
      _
    $region10: #{decoder_forward.8} parent=5 // pred_check_branch
      %296 = sbr.rel (%p293) target = $region12
    $region11: #{decoder_forward.8} parent=5 // pred_region
      %s297 = ssub.s32 %s16, 1
      // Predicated region
      $region13: #{decoder_forward.8} parent=11 // pred_check
        %p298 = pneg %p103
      $region14: #{decoder_forward.8} parent=11 // pred_check_branch
        %300 = sbr.rel (%p298) target = $region16
      $region15: #{decoder_forward.8} parent=11 // pred_region
        _
      $region16: #{decoder_forward.8} parent=11 // pred_fallthru
        _
      // Predicated region
      $region17: #{decoder_forward.8} parent=11 // pred_check
        %p301 = pneg %p124
      $region18: #{decoder_forward.8} parent=11 // pred_check_branch
        %303 = sbr.rel (%p301) target = $region20
      $region19: #{decoder_forward.8} parent=11 // pred_region
        _
      $region20: #{decoder_forward.8} parent=11 // pred_fallthru
        _
      // Predicated region
      $region21: #{decoder_forward.8} parent=11 // pred_check
        %p304 = pneg %p145
      $region22: #{decoder_forward.8} parent=11 // pred_check_branch
        %306 = sbr.rel (%p304) target = $region24
      $region23: #{decoder_forward.8} parent=11 // pred_region
        _
      $region24: #{decoder_forward.8} parent=11 // pred_fallthru
        _
      // Predicated region
      $region25: #{decoder_forward.8} parent=11 // pred_check
        %p307 = pneg %p166
      $region26: #{decoder_forward.8} parent=11 // pred_check_branch
        %309 = sbr.rel (%p307) target = $region28
      $region27: #{decoder_forward.8} parent=11 // pred_region
        _
      $region28: #{decoder_forward.8} parent=11 // pred_fallthru
        _
      // Predicated region
      $region29: #{decoder_forward.8} parent=11 // pred_check
        %p310 = pneg %p187
      $region30: #{decoder_forward.8} parent=11 // pred_check_branch
        %312 = sbr.rel (%p310) target = $region32
      $region31: #{decoder_forward.8} parent=11 // pred_region
        _
      $region32: #{decoder_forward.8} parent=11 // pred_fallthru
        _
      // Predicated region
      $region33: #{decoder_forward.8} parent=11 // pred_check
        %p313 = pneg %p234
      $region34: #{decoder_forward.8} parent=11 // pred_check_branch
        %315 = sbr.rel (%p313) target = $region36
      $region35: #{decoder_forward.8} parent=11 // pred_region
        _
      $region36: #{decoder_forward.8} parent=11 // pred_fallthru
        _
      // Predicated region
      $region37: #{decoder_forward.8} parent=11 // pred_check
        %p316 = pneg %p255
      $region38: #{decoder_forward.8} parent=11 // pred_check_branch
        %318 = sbr.rel (%p316) target = $region40
      $region39: #{decoder_forward.8} parent=11 // pred_region
        _
      $region40: #{decoder_forward.8} parent=11 // pred_fallthru
        _
    $region12: #{decoder_forward.8} parent=5 // pred_fallthru
      _
    %p319 = scmp.lt.s32.totalorder %s16, 2
    // Predicated region
    $region41: #{decoder_forward.8} parent=5 // pred_check
      %p320 = pneg %p319
    $region42: #{decoder_forward.8} parent=5 // pred_check_branch
      %322 = sbr.rel (%p320) target = $region44
    $region43: #{decoder_forward.8} parent=5 // pred_region
      // Predicated region
      $region45: #{decoder_forward.8} parent=43 // pred_check
        %p323 = pneg %p50
      $region46: #{decoder_forward.8} parent=43 // pred_check_branch
        %325 = sbr.rel (%p323) target = $region48
      $region47: #{decoder_forward.8} parent=43 // pred_region
        %p326 = scmp.lt.s32.totalorder %s23, 1
        %s327 = scalar_select %p326, %s23, 1
        %p328 = scmp.lt.s32.totalorder %s24, 0
        %s329 = scalar_select %p328, %s24, 0
        %s330 = sadd.s32 %s329, %s327
        %s331 = smul.addr %s330, 4
        %s332 = scalar_lea.vmem %s0, %s331
      $region48: #{decoder_forward.8} parent=43 // pred_fallthru
        _
      // Predicated region
      $region49: #{decoder_forward.8} parent=43 // pred_check
        %p333 = pneg %p76
      $region50: #{decoder_forward.8} parent=43 // pred_check_branch
        %335 = sbr.rel (%p333) target = $region52
      $region51: #{decoder_forward.8} parent=43 // pred_region
        %p336 = scmp.lt.s32.totalorder %s23, 1
        %s337 = scalar_select %p336, %s23, 1
        %s338 = smul.addr %s337, 4
        %s339 = scalar_lea.vmem %s1, %s338
      $region52: #{decoder_forward.8} parent=43 // pred_fallthru
        _
      // Predicated region
      $region53: #{decoder_forward.8} parent=43 // pred_check
        %p340 = pneg %p207
      $region54: #{decoder_forward.8} parent=43 // pred_check_branch
        %342 = sbr.rel (%p340) target = $region56
      $region55: #{decoder_forward.8} parent=43 // pred_region
        %p343 = scmp.lt.s32.totalorder %s23, 1
        %s344 = scalar_select %p343, %s23, 1
        %s345 = scalar_lea.vmem %s7, %s344
      $region56: #{decoder_forward.8} parent=43 // pred_fallthru
        _
    $region44: #{decoder_forward.8} parent=5 // pred_fallthru
      _
    %p346 = scmp.le.s32.totalorder 1, %s16
    %p347 = scmp.lt.s32.totalorder %s16, 3
    %p348 = pnand %p346, %p347
    %p349 = pneg %p348
    // Predicated region
    $region57: #{decoder_forward.8} parent=5 // pred_check
      _
    $region58: #{decoder_forward.8} parent=5 // pred_check_branch
      %351 = sbr.rel (%p348) target = $region60
    $region59: #{decoder_forward.8} parent=5 // pred_region
      %s352 = ssub.s32 %s16, 1
      %p353 = scmp.lt.s32.totalorder %s25, 1
      %s354 = scalar_select %p353, %s25, 1
      %p355 = scmp.lt.s32.totalorder %s26, 0
      %s356 = scalar_select %p355, %s26, 0
      %s357 = sadd.s32 %s356, %s354
      %s358 = smul.addr %s357, 4
      %s359 = scalar_lea.vmem %s0, %s358
      %p360 = pneg %p56
      %p361 = pneg %p53
      %p362 = scmp.lt.s32.totalorder %s25, 1
      %s363 = scalar_select %p362, %s25, 1
      %s364 = smul.addr %s363, 4
      %s365 = scalar_lea.vmem %s1, %s364
      %p366 = pneg %p82
      %p367 = pneg %p79
      %p368 = pneg %p103
      %p369 = pneg %p100
      %p370 = pneg %p124
      %p371 = pneg %p121
      %p372 = pneg %p145
      %p373 = pneg %p142
      %p374 = pneg %p166
      %p375 = pneg %p163
      %p376 = pneg %p187
      %p377 = pneg %p184
      %p378 = scmp.lt.s32.totalorder %s25, 1
      %s379 = scalar_select %p378, %s25, 1
      %s380 = scalar_lea.vmem %s7, %s379
      %p381 = pneg %p213
      %p382 = pneg %p210
      %p383 = pneg %p234
      %p384 = pneg %p231
      %p385 = pneg %p255
      %p386 = pneg %p252
      %p387 = pneg %p283
      %p388 = pneg %p280
      %p389 = scmp.lt.s32.totalorder %s25, 1
      %s390 = scalar_select %p389, %s25, 1
      %p391 = scmp.lt.s32.totalorder %s26, 0
      %s392 = scalar_select %p391, %s26, 0
      %s393 = sadd.s32 %s392, %s390
      %s394 = smul.addr %s393, 4
      %s395 = scalar_lea.vmem %s10, %s394
      %p396 = scmp.lt.s32.totalorder %s25, 1
      %s397 = scalar_select %p396, %s25, 1
      %p398 = scmp.lt.s32.totalorder %s26, 0
      %s399 = scalar_select %p398, %s26, 0
      %s400 = sadd.s32 %s399, %s397
      %s401 = smul.addr %s400, 4
      %s402 = scalar_lea.vmem %s0, %s401
      %p403 = scmp.lt.s32.totalorder %s25, 1
      %s404 = scalar_select %p403, %s25, 1
      %s405 = smul.addr %s404, 4
      %s406 = scalar_lea.vmem %s1, %s405
      %p407 = scmp.lt.s32.totalorder %s25, 1
      %s408 = scalar_select %p407, %s25, 1
      %s409 = scalar_lea.vmem %s7, %s408
      %p410 = scmp.lt.s32.totalorder %s25, 1
      %s411 = scalar_select %p410, %s25, 1
      %p412 = scmp.lt.s32.totalorder %s26, 0
      %s413 = scalar_select %p412, %s26, 0
      %s414 = sadd.s32 %s413, %s411
      %s415 = smul.addr %s414, 4
      %s416 = scalar_lea.vmem %s10, %s415
      %v418 = vld [vmem:[%s402] sm:$0xf]
      %v419 = vld [vmem:[%s406] sm:$0xf]
      %v420 = vld [vmem:[%s409] sm:$0x1]
      %v421 = vunpack.c.0.s8 %v420
      %v422 = vcvt.s32.f32 %v421
      %v423 = vld [vmem:[%s2] sm:$0xf]
      %v424 = vld [vmem:[%s2 + $0x4] sm:$0xf]
      %v425 = vld [vmem:[%s2 + $0x8] sm:$0xf]
      %v426 = vld [vmem:[%s2 + $0xc] sm:$0xf]
      %v431 = vunpack.c.l.b16 %v423
      %v432 = vunpack.c.l.b16 %v424
      %v433 = vunpack.c.l.b16 %v425
      %v434 = vunpack.c.l.b16 %v426
      %v435 = vpack.c.b16 %v432, %v431
      %v436 = vpack.c.b16 %v434, %v433
      %vm439 = vcmask 261120
      %v441 = vsel %vm439, %v418, 0
      %443 = vmatprep.subr.bf16.mxu0 0
      %444 = vmatpush1.bf16.msra.mxu0 %v435
      %445 = vmatprep.subr.bf16.mxu0 0
      %446 = vmatpush1.bf16.msra.mxu0 %v436
      %447 = vmatprep.subr.bf16.mxu0 0
      %448 = vmatpush1.bf16.msra.mxu0 0
      %449 = vmatprep.subr.bf16.mxu0 0
      %450 = vmatpush1.bf16.msra.mxu0 0
      %451 = vmatprep.subr.bf16.mxu0 0
      %452 = vmatpush1.bf16.msra.mxu0 0
      %453 = vmatprep.subr.bf16.mxu0 0
      %454 = vmatpush1.bf16.msra.mxu0 0
      %455 = vmatprep.subr.bf16.mxu0 0
      %456 = vmatpush1.bf16.msra.mxu0 0
      %457 = vmatprep.subr.bf16.mxu0 0
      %458 = vmatpush1.bf16.msra.mxu0 0
      %459 = vmatprep.subr.bf16.mxu0 0
      %460 = vmatpush1.bf16.msra.mxu0 0
      %461 = vmatprep.subr.bf16.mxu0 0
      %462 = vmatpush1.bf16.msra.mxu0 0
      %463 = vmatprep.subr.bf16.mxu0 0
      %464 = vmatpush1.bf16.msra.mxu0 0
      %465 = vmatprep.subr.bf16.mxu0 0
      %466 = vmatpush1.bf16.msra.mxu0 0
      %467 = vmatprep.subr.bf16.mxu0 0
      %468 = vmatpush1.bf16.msra.mxu0 0
      %469 = vmatprep.subr.bf16.mxu0 0
      %470 = vmatpush1.bf16.msra.mxu0 0
      %471 = vmatprep.subr.bf16.mxu0 0
      %472 = vmatpush1.bf16.msra.mxu0 0
      %473 = vmatprep.subr.bf16.mxu0 0
      %474 = vmatpush1.bf16.msra.mxu0 0
      %475 = vmatprep.mubr.bf16.mxu0 0
      %476 = vmatmul.mubr.bf16.gmra.mrb[0].mxu0 %v441
      %v477 = vpop.f32.mrb[0].mxu0
      %v478 = vadd.f32 0.0, %v477
      %v479 = vpop.f32.mrb[0].mxu0
      %v480 = vpop.f32.mrb[0].mxu0
      %v481 = vpop.f32.mrb[0].mxu0
      %482 = vdwg.mxu0
      %v483 = vmul.f32 %v478, 0.35355338
      %v484 = vpack.c.bf16 %v483, %v483
      %v485 = vld [vmem:[%s3] sm:$0xf]
      %v486 = vld [vmem:[%s3 + $0x4] sm:$0xf]
      %v487 = vld [vmem:[%s3 + $0x8] sm:$0xf]
      %v488 = vld [vmem:[%s3 + $0xc] sm:$0xf]
      %v493 = vunpack.c.l.b16 %v485
      %v494 = vunpack.c.l.b16 %v486
      %v495 = vunpack.c.l.b16 %v487
      %v496 = vunpack.c.l.b16 %v488
      %v497 = vpack.c.b16 %v494, %v493
      %v498 = vpack.c.b16 %v496, %v495
      %v502 = vsel %vm439, %v419, 0
      %504 = vmatprep.subr.bf16.mxu0 0
      %505 = vmatpush1.bf16.msra.mxu0 %v497
      %506 = vmatprep.subr.bf16.mxu0 0
      %507 = vmatpush1.bf16.msra.mxu0 %v498
      %508 = vmatprep.subr.bf16.mxu0 0
      %509 = vmatpush1.bf16.msra.mxu0 0
      %510 = vmatprep.subr.bf16.mxu0 0
      %511 = vmatpush1.bf16.msra.mxu0 0
      %512 = vmatprep.subr.bf16.mxu0 0
      %513 = vmatpush1.bf16.msra.mxu0 0
      %514 = vmatprep.subr.bf16.mxu0 0
      %515 = vmatpush1.bf16.msra.mxu0 0
      %516 = vmatprep.subr.bf16.mxu0 0
      %517 = vmatpush1.bf16.msra.mxu0 0
      %518 = vmatprep.subr.bf16.mxu0 0
      %519 = vmatpush1.bf16.msra.mxu0 0
      %520 = vmatprep.subr.bf16.mxu0 0
      %521 = vmatpush1.bf16.msra.mxu0 0
      %522 = vmatprep.subr.bf16.mxu0 0
      %523 = vmatpush1.bf16.msra.mxu0 0
      %524 = vmatprep.subr.bf16.mxu0 0
      %525 = vmatpush1.bf16.msra.mxu0 0
      %526 = vmatprep.subr.bf16.mxu0 0
      %527 = vmatpush1.bf16.msra.mxu0 0
      %528 = vmatprep.subr.bf16.mxu0 0
      %529 = vmatpush1.bf16.msra.mxu0 0
      %530 = vmatprep.subr.bf16.mxu0 0
      %531 = vmatpush1.bf16.msra.mxu0 0
      %532 = vmatprep.subr.bf16.mxu0 0
      %533 = vmatpush1.bf16.msra.mxu0 0
      %534 = vmatprep.subr.bf16.mxu0 0
      %535 = vmatpush1.bf16.msra.mxu0 0
      %536 = vmatprep.mubr.bf16.mxu0 0
      %537 = vmatmul.mubr.bf16.gmra.mrb[0].mxu0 %v502
      %v538 = vpop.f32.mrb[0].mxu0
      %v539 = vadd.f32 0.0, %v538
      %v540 = vpop.f32.mrb[0].mxu0
      %v541 = vpop.f32.mrb[0].mxu0
      %v542 = vpop.f32.mrb[0].mxu0
      %543 = vdwg.mxu0
      %v544 = vld [vmem:[%s4] sm:$0xf]
      %v545 = vld [vmem:[%s4 + $0x4] sm:$0xf]
      %v546 = vld [vmem:[%s4 + $0x8] sm:$0xf]
      %v547 = vld [vmem:[%s4 + $0xc] sm:$0xf]
      %v552 = vunpack.c.l.b16 %v544
      %v553 = vunpack.c.l.b16 %v545
      %v554 = vunpack.c.l.b16 %v546
      %v555 = vunpack.c.l.b16 %v547
      %v556 = vpack.c.b16 %v553, %v552
      %v557 = vpack.c.b16 %v555, %v554
      %560 = vmatprep.subr.bf16.mxu0 0
      %561 = vmatpush1.bf16.msra.mxu0 %v556
      %562 = vmatprep.subr.bf16.mxu0 0
      %563 = vmatpush1.bf16.msra.mxu0 %v557
      %564 = vmatprep.subr.bf16.mxu0 0
      %565 = vmatpush1.bf16.msra.mxu0 0
      %566 = vmatprep.subr.bf16.mxu0 0
      %567 = vmatpush1.bf16.msra.mxu0 0
      %568 = vmatprep.subr.bf16.mxu0 0
      %569 = vmatpush1.bf16.msra.mxu0 0
      %570 = vmatprep.subr.bf16.mxu0 0
      %571 = vmatpush1.bf16.msra.mxu0 0
      %572 = vmatprep.subr.bf16.mxu0 0
      %573 = vmatpush1.bf16.msra.mxu0 0
      %574 = vmatprep.subr.bf16.mxu0 0
      %575 = vmatpush1.bf16.msra.mxu0 0
      %576 = vmatprep.subr.bf16.mxu0 0
      %577 = vmatpush1.bf16.msra.mxu0 0
      %578 = vmatprep.subr.bf16.mxu0 0
      %579 = vmatpush1.bf16.msra.mxu0 0
      %580 = vmatprep.subr.bf16.mxu0 0
      %581 = vmatpush1.bf16.msra.mxu0 0
      %582 = vmatprep.subr.bf16.mxu0 0
      %583 = vmatpush1.bf16.msra.mxu0 0
      %584 = vmatprep.subr.bf16.mxu0 0
      %585 = vmatpush1.bf16.msra.mxu0 0
      %586 = vmatprep.subr.bf16.mxu0 0
      %587 = vmatpush1.bf16.msra.mxu0 0
      %588 = vmatprep.subr.bf16.mxu0 0
      %589 = vmatpush1.bf16.msra.mxu0 0
      %590 = vmatprep.subr.bf16.mxu0 0
      %591 = vmatpush1.bf16.msra.mxu0 0
      %592 = vmatprep.mubr.bf16.mxu0 0
      %593 = vmatmul.mubr.bf16.gmra.mrb[0].mxu0 %v502
      %v594 = vpop.f32.mrb[0].mxu0
      %v595 = vadd.f32 0.0, %v594
      %v596 = vpop.f32.mrb[0].mxu0
      %v597 = vpop.f32.mrb[0].mxu0
      %v598 = vpop.f32.mrb[0].mxu0
      %599 = vdwg.mxu0
      %v600 = vpack.c.bf16 %v539, %v539
      %vm601 = vcmask 64512
      %v603 = vsel %vm601, %v484, 0
      %v606 = vsel %vm601, %v600, 0
      %608 = vmatprep.subr.bf16.mxu0 0
      %609 = vmatpush1.bf16.xpose.msra.mxu0 %v606
      %610 = vmatprep.subr.bf16.mxu0 0
      %611 = vmatpush1.bf16.xpose.msra.mxu0 0
      %612 = vmatprep.subr.bf16.mxu0 0
      %613 = vmatpush1.bf16.xpose.msra.mxu0 0
      %614 = vmatprep.subr.bf16.mxu0 0
      %615 = vmatpush1.bf16.xpose.msra.mxu0 0
      %616 = vmatprep.subr.bf16.mxu0 0
      %617 = vmatpush1.bf16.xpose.msra.mxu0 0
      %618 = vmatprep.subr.bf16.mxu0 0
      %619 = vmatpush1.bf16.xpose.msra.mxu0 0
      %620 = vmatprep.subr.bf16.mxu0 0
      %621 = vmatpush1.bf16.xpose.msra.mxu0 0
      %622 = vmatprep.subr.bf16.mxu0 0
      %623 = vmatpush1.bf16.xpose.msra.mxu0 0
      %624 = vmatprep.subr.bf16.mxu0 0
      %625 = vmatpush1.bf16.xpose.msra.mxu0 0
      %626 = vmatprep.subr.bf16.mxu0 0
      %627 = vmatpush1.bf16.xpose.msra.mxu0 0
      %628 = vmatprep.subr.bf16.mxu0 0
      %629 = vmatpush1.bf16.xpose.msra.mxu0 0
      %630 = vmatprep.subr.bf16.mxu0 0
      %631 = vmatpush1.bf16.xpose.msra.mxu0 0
      %632 = vmatprep.subr.bf16.mxu0 0
      %633 = vmatpush1.bf16.xpose.msra.mxu0 0
      %634 = vmatprep.subr.bf16.mxu0 0
      %635 = vmatpush1.bf16.xpose.msra.mxu0 0
      %636 = vmatprep.subr.bf16.mxu0 0
      %637 = vmatpush1.bf16.xpose.msra.mxu0 0
      %638 = vmatprep.subr.bf16.mxu0 0
      %639 = vmatpush1.bf16.xpose.msra.mxu0 0
      %640 = vmatprep.mubr.bf16.mxu0 0
      %641 = vmatmul.mubr.bf16.gmra.mrb[0].mxu0 %v603
      %v642 = vpop.f32.mrb[0].mxu0
      %v643 = vadd.f32 0.0, %v642
      %v644 = vpop.f32.mrb[0].mxu0
      %v645 = vpop.f32.mrb[0].mxu0
      %v646 = vpop.f32.mrb[0].mxu0
      %647 = vdwg.mxu0
      %vm648 = vcmp.eq.f32.partialorder %v422, 0.0
      %v649 = vsel %vm648, 1, 0
      %v650 = vlaneseq
      %v651 = vshrl.u32 %v650, 7
      %v652 = vsub.s32 0, %v651
      %v653 = vrot.slane %v649, %v652
      %vm654 = vcmp.eq.s32.totalorder %v653, 1
      %v655 = vsel %vm654, -3.535534e-21, %v643
      %v656 = vsel %vm601, %v655, -inf
      %657 = vmax.xlane.f32.xlu0 %v656
      %v658 = vpop.xlane.xlu0 %657
      %v659 = vsub.f32 -inf, %v658
      %v660 = vmul.f32 %v659, 1.442695
      %v661 = vpow.pop %v660
      %v662 = vsub.f32 %v655, %v658
      %v663 = vmul.f32 %v662, 1.442695
      %v664 = vpow.pop %v663
      %v665 = vmul.f32 %v661, 0.0
      %v666 = vsel %vm601, %v664, 0.0
      %667 = vadd.xlane.f32.xlu0 %v666
      %v668 = vpop.xlane.xlu0 %667
      %v669 = vadd.f32 %v665, %v668
      %v670 = vpack.c.bf16 %v664, %v664
      %v671 = vpack.c.bf16 %v595, %v595
      %v673 = vsel %vm601, %v670, 0
      %vm675 = vcmask 1043456
      %v677 = vsel %vm675, %v671, 0
      %679 = vmatprep.subr.bf16.mxu0 0
      %680 = vmatpush1.bf16.msra.mxu0 %v677
      %681 = vmatprep.subr.bf16.mxu0 0
      %682 = vmatpush1.bf16.msra.mxu0 0
      %683 = vmatprep.subr.bf16.mxu0 0
      %684 = vmatpush1.bf16.msra.mxu0 0
      %685 = vmatprep.subr.bf16.mxu0 0
      %686 = vmatpush1.bf16.msra.mxu0 0
      %687 = vmatprep.subr.bf16.mxu0 0
      %688 = vmatpush1.bf16.msra.mxu0 0
      %689 = vmatprep.subr.bf16.mxu0 0
      %690 = vmatpush1.bf16.msra.mxu0 0
      %691 = vmatprep.subr.bf16.mxu0 0
      %692 = vmatpush1.bf16.msra.mxu0 0
      %693 = vmatprep.subr.bf16.mxu0 0
      %694 = vmatpush1.bf16.msra.mxu0 0
      %695 = vmatprep.subr.bf16.mxu0 0
      %696 = vmatpush1.bf16.msra.mxu0 0
      %697 = vmatprep.subr.bf16.mxu0 0
      %698 = vmatpush1.bf16.msra.mxu0 0
      %699 = vmatprep.subr.bf16.mxu0 0
      %700 = vmatpush1.bf16.msra.mxu0 0
      %701 = vmatprep.subr.bf16.mxu0 0
      %702 = vmatpush1.bf16.msra.mxu0 0
      %703 = vmatprep.subr.bf16.mxu0 0
      %704 = vmatpush1.bf16.msra.mxu0 0
      %705 = vmatprep.subr.bf16.mxu0 0
      %706 = vmatpush1.bf16.msra.mxu0 0
      %707 = vmatprep.subr.bf16.mxu0 0
      %708 = vmatpush1.bf16.msra.mxu0 0
      %709 = vmatprep.subr.bf16.mxu0 0
      %710 = vmatpush1.bf16.msra.mxu0 0
      %711 = vmatprep.mubr.bf16.mxu0 0
      %712 = vmatmul.mubr.bf16.gmra.mrb[0].mxu0 %v673
      %v713 = vpop.f32.mrb[0].mxu0
      %v714 = vadd.f32 0.0, %v713
      %v715 = vpop.f32.mrb[0].mxu0
      %v716 = vpop.f32.mrb[0].mxu0
      %v717 = vpop.f32.mrb[0].mxu0
      %718 = vdwg.mxu0
      %v719 = vadd.f32 %v665, %v714
      %v720 = vrcp.pop %v669
      %v721 = vmul.f32 %v719, %v720
      %v722 = vpack.c.bf16 %v721, %v721
      %v723 = vld [vmem:[%s5] sm:$0xf]
      %s724 = scalar_lea.vmem %s2, 16
      %v725 = vld [vmem:[%s724] sm:$0xf]
      %v726 = vld [vmem:[%s724 + $0x4] sm:$0xf]
      %v727 = vld [vmem:[%s724 + $0x8] sm:$0xf]
      %v728 = vld [vmem:[%s724 + $0xc] sm:$0xf]
      %v733 = vunpack.c.l.b16 %v725
      %v734 = vunpack.c.l.b16 %v726
      %v735 = vunpack.c.l.b16 %v727
      %v736 = vunpack.c.l.b16 %v728
      %v737 = vpack.c.b16 %v734, %v733
      %v738 = vpack.c.b16 %v736, %v735
      %741 = vmatprep.subr.bf16.mxu0 0
      %742 = vmatpush1.bf16.msra.mxu0 %v737
      %743 = vmatprep.subr.bf16.mxu0 0
      %744 = vmatpush1.bf16.msra.mxu0 %v738
      %745 = vmatprep.subr.bf16.mxu0 0
      %746 = vmatpush1.bf16.msra.mxu0 0
      %747 = vmatprep.subr.bf16.mxu0 0
      %748 = vmatpush1.bf16.msra.mxu0 0
      %749 = vmatprep.subr.bf16.mxu0 0
      %750 = vmatpush1.bf16.msra.mxu0 0
      %751 = vmatprep.subr.bf16.mxu0 0
      %752 = vmatpush1.bf16.msra.mxu0 0
      %753 = vmatprep.subr.bf16.mxu0 0
      %754 = vmatpush1.bf16.msra.mxu0 0
      %755 = vmatprep.subr.bf16.mxu0 0
      %756 = vmatpush1.bf16.msra.mxu0 0
      %757 = vmatprep.subr.bf16.mxu0 0
      %758 = vmatpush1.bf16.msra.mxu0 0
      %759 = vmatprep.subr.bf16.mxu0 0
      %760 = vmatpush1.bf16.msra.mxu0 0
      %761 = vmatprep.subr.bf16.mxu0 0
      %762 = vmatpush1.bf16.msra.mxu0 0
      %763 = vmatprep.subr.bf16.mxu0 0
      %764 = vmatpush1.bf16.msra.mxu0 0
      %765 = vmatprep.subr.bf16.mxu0 0
      %766 = vmatpush1.bf16.msra.mxu0 0
      %767 = vmatprep.subr.bf16.mxu0 0
      %768 = vmatpush1.bf16.msra.mxu0 0
      %769 = vmatprep.subr.bf16.mxu0 0
      %770 = vmatpush1.bf16.msra.mxu0 0
      %771 = vmatprep.subr.bf16.mxu0 0
      %772 = vmatpush1.bf16.msra.mxu0 0
      %773 = vmatprep.mubr.bf16.mxu0 0
      %774 = vmatmul.mubr.bf16.gmra.mrb[0].mxu0 %v441
      %v775 = vpop.f32.mrb[0].mxu0
      %v776 = vadd.f32 0.0, %v775
      %v777 = vpop.f32.mrb[0].mxu0
      %v778 = vpop.f32.mrb[0].mxu0
      %v779 = vpop.f32.mrb[0].mxu0
      %780 = vdwg.mxu0
      %v781 = vmul.f32 %v776, 0.35355338
      %v782 = vpack.c.bf16 %v781, %v781
      %s783 = scalar_lea.vmem %s3, 16
      %v784 = vld [vmem:[%s783] sm:$0xf]
      %v785 = vld [vmem:[%s783 + $0x4] sm:$0xf]
      %v786 = vld [vmem:[%s783 + $0x8] sm:$0xf]
      %v787 = vld [vmem:[%s783 + $0xc] sm:$0xf]
      %v792 = vunpack.c.l.b16 %v784
      %v793 = vunpack.c.l.b16 %v785
      %v794 = vunpack.c.l.b16 %v786
      %v795 = vunpack.c.l.b16 %v787
      %v796 = vpack.c.b16 %v793, %v792
      %v797 = vpack.c.b16 %v795, %v794
      %800 = vmatprep.subr.bf16.mxu0 0
      %801 = vmatpush1.bf16.msra.mxu0 %v796
      %802 = vmatprep.subr.bf16.mxu0 0
      %803 = vmatpush1.bf16.msra.mxu0 %v797
      %804 = vmatprep.subr.bf16.mxu0 0
      %805 = vmatpush1.bf16.msra.mxu0 0
      %806 = vmatprep.subr.bf16.mxu0 0
      %807 = vmatpush1.bf16.msra.mxu0 0
      %808 = vmatprep.subr.bf16.mxu0 0
      %809 = vmatpush1.bf16.msra.mxu0 0
      %810 = vmatprep.subr.bf16.mxu0 0
      %811 = vmatpush1.bf16.msra.mxu0 0
      %812 = vmatprep.subr.bf16.mxu0 0
      %813 = vmatpush1.bf16.msra.mxu0 0
      %814 = vmatprep.subr.bf16.mxu0 0
      %815 = vmatpush1.bf16.msra.mxu0 0
      %816 = vmatprep.subr.bf16.mxu0 0
      %817 = vmatpush1.bf16.msra.mxu0 0
      %818 = vmatprep.subr.bf16.mxu0 0
      %819 = vmatpush1.bf16.msra.mxu0 0
      %820 = vmatprep.subr.bf16.mxu0 0
      %821 = vmatpush1.bf16.msra.mxu0 0
      %822 = vmatprep.subr.bf16.mxu0 0
      %823 = vmatpush1.bf16.msra.mxu0 0
      %824 = vmatprep.subr.bf16.mxu0 0
      %825 = vmatpush1.bf16.msra.mxu0 0
      %826 = vmatprep.subr.bf16.mxu0 0
      %827 = vmatpush1.bf16.msra.mxu0 0
      %828 = vmatprep.subr.bf16.mxu0 0
      %829 = vmatpush1.bf16.msra.mxu0 0
      %830 = vmatprep.subr.bf16.mxu0 0
      %831 = vmatpush1.bf16.msra.mxu0 0
      %832 = vmatprep.mubr.bf16.mxu0 0
      %833 = vmatmul.mubr.bf16.gmra.mrb[0].mxu0 %v502
      %v834 = vpop.f32.mrb[0].mxu0
      %v835 = vadd.f32 0.0, %v834
      %v836 = vpop.f32.mrb[0].mxu0
      %v837 = vpop.f32.mrb[0].mxu0
      %v838 = vpop.f32.mrb[0].mxu0
      %839 = vdwg.mxu0
      %s840 = scalar_lea.vmem %s4, 16
      %v841 = vld [vmem:[%s840] sm:$0xf]
      %v842 = vld [vmem:[%s840 + $0x4] sm:$0xf]
      %v843 = vld [vmem:[%s840 + $0x8] sm:$0xf]
      %v844 = vld [vmem:[%s840 + $0xc] sm:$0xf]
      %v849 = vunpack.c.l.b16 %v841
      %v850 = vunpack.c.l.b16 %v842
      %v851 = vunpack.c.l.b16 %v843
      %v852 = vunpack.c.l.b16 %v844
      %v853 = vpack.c.b16 %v850, %v849
      %v854 = vpack.c.b16 %v852, %v851
      %857 = vmatprep.subr.bf16.mxu0 0
      %858 = vmatpush1.bf16.msra.mxu0 %v853
      %859 = vmatprep.subr.bf16.mxu0 0
      %860 = vmatpush1.bf16.msra.mxu0 %v854
      %861 = vmatprep.subr.bf16.mxu0 0
      %862 = vmatpush1.bf16.msra.mxu0 0
      %863 = vmatprep.subr.bf16.mxu0 0
      %864 = vmatpush1.bf16.msra.mxu0 0
      %865 = vmatprep.subr.bf16.mxu0 0
      %866 = vmatpush1.bf16.msra.mxu0 0
      %867 = vmatprep.subr.bf16.mxu0 0
      %868 = vmatpush1.bf16.msra.mxu0 0
      %869 = vmatprep.subr.bf16.mxu0 0
      %870 = vmatpush1.bf16.msra.mxu0 0
      %871 = vmatprep.subr.bf16.mxu0 0
      %872 = vmatpush1.bf16.msra.mxu0 0
      %873 = vmatprep.subr.bf16.mxu0 0
      %874 = vmatpush1.bf16.msra.mxu0 0
      %875 = vmatprep.subr.bf16.mxu0 0
      %876 = vmatpush1.bf16.msra.mxu0 0
      %877 = vmatprep.subr.bf16.mxu0 0
      %878 = vmatpush1.bf16.msra.mxu0 0
      %879 = vmatprep.subr.bf16.mxu0 0
      %880 = vmatpush1.bf16.msra.mxu0 0
      %881 = vmatprep.subr.bf16.mxu0 0
      %882 = vmatpush1.bf16.msra.mxu0 0
      %883 = vmatprep.subr.bf16.mxu0 0
      %884 = vmatpush1.bf16.msra.mxu0 0
      %885 = vmatprep.subr.bf16.mxu0 0
      %886 = vmatpush1.bf16.msra.mxu0 0
      %887 = vmatprep.subr.bf16.mxu0 0
      %888 = vmatpush1.bf16.msra.mxu0 0
      %889 = vmatprep.mubr.bf16.mxu0 0
      %890 = vmatmul.mubr.bf16.gmra.mrb[0].mxu0 %v502
      %v891 = vpop.f32.mrb[0].mxu0
      %v892 = vadd.f32 0.0, %v891
      %v893 = vpop.f32.mrb[0].mxu0
      %v894 = vpop.f32.mrb[0].mxu0
      %v895 = vpop.f32.mrb[0].mxu0
      %896 = vdwg.mxu0
      %v897 = vpack.c.bf16 %v835, %v835
      %v899 = vsel %vm601, %v782, 0
      %v902 = vsel %vm601, %v897, 0
      %904 = vmatprep.subr.bf16.mxu0 0
      %905 = vmatpush1.bf16.xpose.msra.mxu0 %v902
      %906 = vmatprep.subr.bf16.mxu0 0
      %907 = vmatpush1.bf16.xpose.msra.mxu0 0
      %908 = vmatprep.subr.bf16.mxu0 0
      %909 = vmatpush1.bf16.xpose.msra.mxu0 0
      %910 = vmatprep.subr.bf16.mxu0 0
      %911 = vmatpush1.bf16.xpose.msra.mxu0 0
      %912 = vmatprep.subr.bf16.mxu0 0
      %913 = vmatpush1.bf16.xpose.msra.mxu0 0
      %914 = vmatprep.subr.bf16.mxu0 0
      %915 = vmatpush1.bf16.xpose.msra.mxu0 0
      %916 = vmatprep.subr.bf16.mxu0 0
      %917 = vmatpush1.bf16.xpose.msra.mxu0 0
      %918 = vmatprep.subr.bf16.mxu0 0
      %919 = vmatpush1.bf16.xpose.msra.mxu0 0
      %920 = vmatprep.subr.bf16.mxu0 0
      %921 = vmatpush1.bf16.xpose.msra.mxu0 0
      %922 = vmatprep.subr.bf16.mxu0 0
      %923 = vmatpush1.bf16.xpose.msra.mxu0 0
      %924 = vmatprep.subr.bf16.mxu0 0
      %925 = vmatpush1.bf16.xpose.msra.mxu0 0
      %926 = vmatprep.subr.bf16.mxu0 0
      %927 = vmatpush1.bf16.xpose.msra.mxu0 0
      %928 = vmatprep.subr.bf16.mxu0 0
      %929 = vmatpush1.bf16.xpose.msra.mxu0 0
      %930 = vmatprep.subr.bf16.mxu0 0
      %931 = vmatpush1.bf16.xpose.msra.mxu0 0
      %932 = vmatprep.subr.bf16.mxu0 0
      %933 = vmatpush1.bf16.xpose.msra.mxu0 0
      %934 = vmatprep.subr.bf16.mxu0 0
      %935 = vmatpush1.bf16.xpose.msra.mxu0 0
      %936 = vmatprep.mubr.bf16.mxu0 0
      %937 = vmatmul.mubr.bf16.gmra.mrb[0].mxu0 %v899
      %v938 = vpop.f32.mrb[0].mxu0
      %v939 = vadd.f32 0.0, %v938
      %v940 = vpop.f32.mrb[0].mxu0
      %v941 = vpop.f32.mrb[0].mxu0
      %v942 = vpop.f32.mrb[0].mxu0
      %943 = vdwg.mxu0
      %v944 = vsel %vm654, -3.535534e-21, %v939
      %v945 = vsel %vm601, %v944, -inf
      %946 = vmax.xlane.f32.xlu0 %v945
      %v947 = vpop.xlane.xlu0 %946
      %v948 = vsub.f32 -inf, %v947
      %v949 = vmul.f32 %v948, 1.442695
      %v950 = vpow.pop %v949
      %v951 = vsub.f32 %v944, %v947
      %v952 = vmul.f32 %v951, 1.442695
      %v953 = vpow.pop %v952
      %v954 = vmul.f32 %v950, 0.0
      %v955 = vsel %vm601, %v953, 0.0
      %956 = vadd.xlane.f32.xlu0 %v955
      %v957 = vpop.xlane.xlu0 %956
      %v958 = vadd.f32 %v954, %v957
      %v959 = vpack.c.bf16 %v953, %v953
      %v960 = vpack.c.bf16 %v892, %v892
      %v962 = vsel %vm601, %v959, 0
      %v965 = vsel %vm675, %v960, 0
      %967 = vmatprep.subr.bf16.mxu0 0
      %968 = vmatpush1.bf16.msra.mxu0 %v965
      %969 = vmatprep.subr.bf16.mxu0 0
      %970 = vmatpush1.bf16.msra.mxu0 0
      %971 = vmatprep.subr.bf16.mxu0 0
      %972 = vmatpush1.bf16.msra.mxu0 0
      %973 = vmatprep.subr.bf16.mxu0 0
      %974 = vmatpush1.bf16.msra.mxu0 0
      %975 = vmatprep.subr.bf16.mxu0 0
      %976 = vmatpush1.bf16.msra.mxu0 0
      %977 = vmatprep.subr.bf16.mxu0 0
      %978 = vmatpush1.bf16.msra.mxu0 0
      %979 = vmatprep.subr.bf16.mxu0 0
      %980 = vmatpush1.bf16.msra.mxu0 0
      %981 = vmatprep.subr.bf16.mxu0 0
      %982 = vmatpush1.bf16.msra.mxu0 0
      %983 = vmatprep.subr.bf16.mxu0 0
      %984 = vmatpush1.bf16.msra.mxu0 0
      %985 = vmatprep.subr.bf16.mxu0 0
      %986 = vmatpush1.bf16.msra.mxu0 0
      %987 = vmatprep.subr.bf16.mxu0 0
      %988 = vmatpush1.bf16.msra.mxu0 0
      %989 = vmatprep.subr.bf16.mxu0 0
      %990 = vmatpush1.bf16.msra.mxu0 0
      %991 = vmatprep.subr.bf16.mxu0 0
      %992 = vmatpush1.bf16.msra.mxu0 0
      %993 = vmatprep.subr.bf16.mxu0 0
      %994 = vmatpush1.bf16.msra.mxu0 0
      %995 = vmatprep.subr.bf16.mxu0 0
      %996 = vmatpush1.bf16.msra.mxu0 0
      %997 = vmatprep.subr.bf16.mxu0 0
      %998 = vmatpush1.bf16.msra.mxu0 0
      %999 = vmatprep.mubr.bf16.mxu0 0
      %1000 = vmatmul.mubr.bf16.gmra.mrb[0].mxu0 %v962
      %v1001 = vpop.f32.mrb[0].mxu0
      %v1002 = vadd.f32 0.0, %v1001
      %v1003 = vpop.f32.mrb[0].mxu0
      %v1004 = vpop.f32.mrb[0].mxu0
      %v1005 = vpop.f32.mrb[0].mxu0
      %1006 = vdwg.mxu0
      %v1007 = vadd.f32 %v954, %v1002
      %v1008 = vrcp.pop %v958
      %v1009 = vmul.f32 %v1007, %v1008
      %v1010 = vpack.c.bf16 %v1009, %v1009
      %s1011 = scalar_lea.vmem %s5, 4
      %v1012 = vld [vmem:[%s1011] sm:$0xf]
      %v1014 = vsel %vm601, %v1010, 0
      %v1017 = vsel %vm675, %v1012, 0
      %1019 = vmatprep.subr.bf16.mxu0 0
      %1020 = vmatpush1.bf16.msra.mxu0 %v1017
      %1021 = vmatprep.subr.bf16.mxu0 0
      %1022 = vmatpush1.bf16.msra.mxu0 0
      %1023 = vmatprep.subr.bf16.mxu0 0
      %1024 = vmatpush1.bf16.msra.mxu0 0
      %1025 = vmatprep.subr.bf16.mxu0 0
      %1026 = vmatpush1.bf16.msra.mxu0 0
      %1027 = vmatprep.subr.bf16.mxu0 0
      %1028 = vmatpush1.bf16.msra.mxu0 0
      %1029 = vmatprep.subr.bf16.mxu0 0
      %1030 = vmatpush1.bf16.msra.mxu0 0
      %1031 = vmatprep.subr.bf16.mxu0 0
      %1032 = vmatpush1.bf16.msra.mxu0 0
      %1033 = vmatprep.subr.bf16.mxu0 0
      %1034 = vmatpush1.bf16.msra.mxu0 0
      %1035 = vmatprep.subr.bf16.mxu0 0
      %1036 = vmatpush1.bf16.msra.mxu0 0
      %1037 = vmatprep.subr.bf16.mxu0 0
      %1038 = vmatpush1.bf16.msra.mxu0 0
      %1039 = vmatprep.subr.bf16.mxu0 0
      %1040 = vmatpush1.bf16.msra.mxu0 0
      %1041 = vmatprep.subr.bf16.mxu0 0
      %1042 = vmatpush1.bf16.msra.mxu0 0
      %1043 = vmatprep.subr.bf16.mxu0 0
      %1044 = vmatpush1.bf16.msra.mxu0 0
      %1045 = vmatprep.subr.bf16.mxu0 0
      %1046 = vmatpush1.bf16.msra.mxu0 0
      %1047 = vmatprep.subr.bf16.mxu0 0
      %1048 = vmatpush1.bf16.msra.mxu0 0
      %1049 = vmatprep.subr.bf16.mxu0 0
      %1050 = vmatpush1.bf16.msra.mxu0 0
      %1051 = vmatprep.mubr.bf16.mxu0 0
      %1052 = vmatmul.mubr.bf16.gmra.mrb[0].mxu0 %v1014
      %v1053 = vpop.f32.mrb[0].mxu0
      %v1054 = vadd.f32 0.0, %v1053
      %v1055 = vpop.f32.mrb[0].mxu0
      %v1056 = vpop.f32.mrb[0].mxu0
      %v1057 = vpop.f32.mrb[0].mxu0
      %1058 = vdwg.mxu0
      %v1060 = vsel %vm601, %v722, 0
      %v1063 = vsel %vm675, %v723, 0
      %1065 = vmatprep.subr.bf16.mxu0 0
      %1066 = vmatpush1.bf16.msra.mxu0 %v1063
      %1067 = vmatprep.subr.bf16.mxu0 0
      %1068 = vmatpush1.bf16.msra.mxu0 0
      %1069 = vmatprep.subr.bf16.mxu0 0
      %1070 = vmatpush1.bf16.msra.mxu0 0
      %1071 = vmatprep.subr.bf16.mxu0 0
      %1072 = vmatpush1.bf16.msra.mxu0 0
      %1073 = vmatprep.subr.bf16.mxu0 0
      %1074 = vmatpush1.bf16.msra.mxu0 0
      %1075 = vmatprep.subr.bf16.mxu0 0
      %1076 = vmatpush1.bf16.msra.mxu0 0
      %1077 = vmatprep.subr.bf16.mxu0 0
      %1078 = vmatpush1.bf16.msra.mxu0 0
      %1079 = vmatprep.subr.bf16.mxu0 0
      %1080 = vmatpush1.bf16.msra.mxu0 0
      %1081 = vmatprep.subr.bf16.mxu0 0
      %1082 = vmatpush1.bf16.msra.mxu0 0
      %1083 = vmatprep.subr.bf16.mxu0 0
      %1084 = vmatpush1.bf16.msra.mxu0 0
      %1085 = vmatprep.subr.bf16.mxu0 0
      %1086 = vmatpush1.bf16.msra.mxu0 0
      %1087 = vmatprep.subr.bf16.mxu0 0
      %1088 = vmatpush1.bf16.msra.mxu0 0
      %1089 = vmatprep.subr.bf16.mxu0 0
      %1090 = vmatpush1.bf16.msra.mxu0 0
      %1091 = vmatprep.subr.bf16.mxu0 0
      %1092 = vmatpush1.bf16.msra.mxu0 0
      %1093 = vmatprep.subr.bf16.mxu0 0
      %1094 = vmatpush1.bf16.msra.mxu0 0
      %1095 = vmatprep.subr.bf16.mxu0 0
      %1096 = vmatpush1.bf16.msra.mxu0 0
      %1097 = vmatprep.mubr.bf16.mxu0 0
      %1098 = vmatmul.mubr.bf16.gmra.mrb[0].mxu0 %v1060
      %v1099 = vpop.f32.mrb[0].mxu0
      %v1100 = vadd.f32 %v1054, %v1099
      %v1101 = vpop.f32.mrb[0].mxu0
      %v1102 = vpop.f32.mrb[0].mxu0
      %v1103 = vpop.f32.mrb[0].mxu0
      %1104 = vdwg.mxu0
      %s1105 = scalar_lea.vmem %s2, 32
      %v1106 = vld [vmem:[%s1105] sm:$0xf]
      %v1107 = vld [vmem:[%s1105 + $0x4] sm:$0xf]
      %v1108 = vld [vmem:[%s1105 + $0x8] sm:$0xf]
      %v1109 = vld [vmem:[%s1105 + $0xc] sm:$0xf]
      %v1114 = vunpack.c.l.b16 %v1106
      %v1115 = vunpack.c.l.b16 %v1107
      %v1116 = vunpack.c.l.b16 %v1108
      %v1117 = vunpack.c.l.b16 %v1109
      %v1118 = vpack.c.b16 %v1115, %v1114
      %v1119 = vpack.c.b16 %v1117, %v1116
      %1122 = vmatprep.subr.bf16.mxu0 0
      %1123 = vmatpush1.bf16.msra.mxu0 %v1118
      %1124 = vmatprep.subr.bf16.mxu0 0
      %1125 = vmatpush1.bf16.msra.mxu0 %v1119
      %1126 = vmatprep.subr.bf16.mxu0 0
      %1127 = vmatpush1.bf16.msra.mxu0 0
      %1128 = vmatprep.subr.bf16.mxu0 0
      %1129 = vmatpush1.bf16.msra.mxu0 0
      %1130 = vmatprep.subr.bf16.mxu0 0
      %1131 = vmatpush1.bf16.msra.mxu0 0
      %1132 = vmatprep.subr.bf16.mxu0 0
      %1133 = vmatpush1.bf16.msra.mxu0 0
      %1134 = vmatprep.subr.bf16.mxu0 0
      %1135 = vmatpush1.bf16.msra.mxu0 0
      %1136 = vmatprep.subr.bf16.mxu0 0
      %1137 = vmatpush1.bf16.msra.mxu0 0
      %1138 = vmatprep.subr.bf16.mxu0 0
      %1139 = vmatpush1.bf16.msra.mxu0 0
      %1140 = vmatprep.subr.bf16.mxu0 0
      %1141 = vmatpush1.bf16.msra.mxu0 0
      %1142 = vmatprep.subr.bf16.mxu0 0
      %1143 = vmatpush1.bf16.msra.mxu0 0
      %1144 = vmatprep.subr.bf16.mxu0 0
      %1145 = vmatpush1.bf16.msra.mxu0 0
      %1146 = vmatprep.subr.bf16.mxu0 0
      %1147 = vmatpush1.bf16.msra.mxu0 0
      %1148 = vmatprep.subr.bf16.mxu0 0
      %1149 = vmatpush1.bf16.msra.mxu0 0
      %1150 = vmatprep.subr.bf16.mxu0 0
      %1151 = vmatpush1.bf16.msra.mxu0 0
      %1152 = vmatprep.subr.bf16.mxu0 0
      %1153 = vmatpush1.bf16.msra.mxu0 0
      %1154 = vmatprep.mubr.bf16.mxu0 0
      %1155 = vmatmul.mubr.bf16.gmra.mrb[0].mxu0 %v441
      %v1156 = vpop.f32.mrb[0].mxu0
      %v1157 = vadd.f32 0.0, %v1156
      %v1158 = vpop.f32.mrb[0].mxu0
      %v1159 = vpop.f32.mrb[0].mxu0
      %v1160 = vpop.f32.mrb[0].mxu0
      %1161 = vdwg.mxu0
      %v1162 = vmul.f32 %v1157, 0.35355338
      %v1163 = vpack.c.bf16 %v1162, %v1162
      %s1164 = scalar_lea.vmem %s3, 32
      %v1165 = vld [vmem:[%s1164] sm:$0xf]
      %v1166 = vld [vmem:[%s1164 + $0x4] sm:$0xf]
      %v1167 = vld [vmem:[%s1164 + $0x8] sm:$0xf]
      %v1168 = vld [vmem:[%s1164 + $0xc] sm:$0xf]
      %v1173 = vunpack.c.l.b16 %v1165
      %v1174 = vunpack.c.l.b16 %v1166
      %v1175 = vunpack.c.l.b16 %v1167
      %v1176 = vunpack.c.l.b16 %v1168
      %v1177 = vpack.c.b16 %v1174, %v1173
      %v1178 = vpack.c.b16 %v1176, %v1175
      %1181 = vmatprep.subr.bf16.mxu0 0
      %1182 = vmatpush1.bf16.msra.mxu0 %v1177
      %1183 = vmatprep.subr.bf16.mxu0 0
      %1184 = vmatpush1.bf16.msra.mxu0 %v1178
      %1185 = vmatprep.subr.bf16.mxu0 0
      %1186 = vmatpush1.bf16.msra.mxu0 0
      %1187 = vmatprep.subr.bf16.mxu0 0
      %1188 = vmatpush1.bf16.msra.mxu0 0
      %1189 = vmatprep.subr.bf16.mxu0 0
      %1190 = vmatpush1.bf16.msra.mxu0 0
      %1191 = vmatprep.subr.bf16.mxu0 0
      %1192 = vmatpush1.bf16.msra.mxu0 0
      %1193 = vmatprep.subr.bf16.mxu0 0
      %1194 = vmatpush1.bf16.msra.mxu0 0
      %1195 = vmatprep.subr.bf16.mxu0 0
      %1196 = vmatpush1.bf16.msra.mxu0 0
      %1197 = vmatprep.subr.bf16.mxu0 0
      %1198 = vmatpush1.bf16.msra.mxu0 0
      %1199 = vmatprep.subr.bf16.mxu0 0
      %1200 = vmatpush1.bf16.msra.mxu0 0
      %1201 = vmatprep.subr.bf16.mxu0 0
      %1202 = vmatpush1.bf16.msra.mxu0 0
      %1203 = vmatprep.subr.bf16.mxu0 0
      %1204 = vmatpush1.bf16.msra.mxu0 0
      %1205 = vmatprep.subr.bf16.mxu0 0
      %1206 = vmatpush1.bf16.msra.mxu0 0
      %1207 = vmatprep.subr.bf16.mxu0 0
      %1208 = vmatpush1.bf16.msra.mxu0 0
      %1209 = vmatprep.subr.bf16.mxu0 0
      %1210 = vmatpush1.bf16.msra.mxu0 0
      %1211 = vmatprep.subr.bf16.mxu0 0
      %1212 = vmatpush1.bf16.msra.mxu0 0
      %1213 = vmatprep.mubr.bf16.mxu0 0
      %1214 = vmatmul.mubr.bf16.gmra.mrb[0].mxu0 %v502
      %v1215 = vpop.f32.mrb[0].mxu0
      %v1216 = vadd.f32 0.0, %v1215
      %v1217 = vpop.f32.mrb[0].mxu0
      %v1218 = vpop.f32.mrb[0].mxu0
      %v1219 = vpop.f32.mrb[0].mxu0
      %1220 = vdwg.mxu0
      %s1221 = scalar_lea.vmem %s4, 32
      %v1222 = vld [vmem:[%s1221] sm:$0xf]
      %v1223 = vld [vmem:[%s1221 + $0x4] sm:$0xf]
      %v1224 = vld [vmem:[%s1221 + $0x8] sm:$0xf]
      %v1225 = vld [vmem:[%s1221 + $0xc] sm:$0xf]
      %v1230 = vunpack.c.l.b16 %v1222
      %v1231 = vunpack.c.l.b16 %v1223
      %v1232 = vunpack.c.l.b16 %v1224
      %v1233 = vunpack.c.l.b16 %v1225
      %v1234 = vpack.c.b16 %v1231, %v1230
      %v1235 = vpack.c.b16 %v1233, %v1232
      %1238 = vmatprep.subr.bf16.mxu0 0
      %1239 = vmatpush1.bf16.msra.mxu0 %v1234
      %1240 = vmatprep.subr.bf16.mxu0 0
      %1241 = vmatpush1.bf16.msra.mxu0 %v1235
      %1242 = vmatprep.subr.bf16.mxu0 0
      %1243 = vmatpush1.bf16.msra.mxu0 0
      %1244 = vmatprep.subr.bf16.mxu0 0
      %1245 = vmatpush1.bf16.msra.mxu0 0
      %1246 = vmatprep.subr.bf16.mxu0 0
      %1247 = vmatpush1.bf16.msra.mxu0 0
      %1248 = vmatprep.subr.bf16.mxu0 0
      %1249 = vmatpush1.bf16.msra.mxu0 0
      %1250 = vmatprep.subr.bf16.mxu0 0
      %1251 = vmatpush1.bf16.msra.mxu0 0
      %1252 = vmatprep.subr.bf16.mxu0 0
      %1253 = vmatpush1.bf16.msra.mxu0 0
      %1254 = vmatprep.subr.bf16.mxu0 0
      %1255 = vmatpush1.bf16.msra.mxu0 0
      %1256 = vmatprep.subr.bf16.mxu0 0
      %1257 = vmatpush1.bf16.msra.mxu0 0
      %1258 = vmatprep.subr.bf16.mxu0 0
      %1259 = vmatpush1.bf16.msra.mxu0 0
      %1260 = vmatprep.subr.bf16.mxu0 0
      %1261 = vmatpush1.bf16.msra.mxu0 0
      %1262 = vmatprep.subr.bf16.mxu0 0
      %1263 = vmatpush1.bf16.msra.mxu0 0
      %1264 = vmatprep.subr.bf16.mxu0 0
      %1265 = vmatpush1.bf16.msra.mxu0 0
      %1266 = vmatprep.subr.bf16.mxu0 0
      %1267 = vmatpush1.bf16.msra.mxu0 0
      %1268 = vmatprep.subr.bf16.mxu0 0
      %1269 = vmatpush1.bf16.msra.mxu0 0
      %1270 = vmatprep.mubr.bf16.mxu0 0
      %1271 = vmatmul.mubr.bf16.gmra.mrb[0].mxu0 %v502
      %v1272 = vpop.f32.mrb[0].mxu0
      %v1273 = vadd.f32 0.0, %v1272
      %v1274 = vpop.f32.mrb[0].mxu0
      %v1275 = vpop.f32.mrb[0].mxu0
      %v1276 = vpop.f32.mrb[0].mxu0
      %1277 = vdwg.mxu0
      %v1278 = vpack.c.bf16 %v1216, %v1216
      %v1280 = vsel %vm601, %v1163, 0
      %v1283 = vsel %vm601, %v1278, 0
      %1285 = vmatprep.subr.bf16.mxu0 0
      %1286 = vmatpush1.bf16.xpose.msra.mxu0 %v1283
      %1287 = vmatprep.subr.bf16.mxu0 0
      %1288 = vmatpush1.bf16.xpose.msra.mxu0 0
      %1289 = vmatprep.subr.bf16.mxu0 0
      %1290 = vmatpush1.bf16.xpose.msra.mxu0 0
      %1291 = vmatprep.subr.bf16.mxu0 0
      %1292 = vmatpush1.bf16.xpose.msra.mxu0 0
      %1293 = vmatprep.subr.bf16.mxu0 0
      %1294 = vmatpush1.bf16.xpose.msra.mxu0 0
      %1295 = vmatprep.subr.bf16.mxu0 0
      %1296 = vmatpush1.bf16.xpose.msra.mxu0 0
      %1297 = vmatprep.subr.bf16.mxu0 0
      %1298 = vmatpush1.bf16.xpose.msra.mxu0 0
      %1299 = vmatprep.subr.bf16.mxu0 0
      %1300 = vmatpush1.bf16.xpose.msra.mxu0 0
      %1301 = vmatprep.subr.bf16.mxu0 0
      %1302 = vmatpush1.bf16.xpose.msra.mxu0 0
      %1303 = vmatprep.subr.bf16.mxu0 0
      %1304 = vmatpush1.bf16.xpose.msra.mxu0 0
      %1305 = vmatprep.subr.bf16.mxu0 0
      %1306 = vmatpush1.bf16.xpose.msra.mxu0 0
      %1307 = vmatprep.subr.bf16.mxu0 0
      %1308 = vmatpush1.bf16.xpose.msra.mxu0 0
      %1309 = vmatprep.subr.bf16.mxu0 0
      %1310 = vmatpush1.bf16.xpose.msra.mxu0 0
      %1311 = vmatprep.subr.bf16.mxu0 0
      %1312 = vmatpush1.bf16.xpose.msra.mxu0 0
      %1313 = vmatprep.subr.bf16.mxu0 0
      %1314 = vmatpush1.bf16.xpose.msra.mxu0 0
      %1315 = vmatprep.subr.bf16.mxu0 0
      %1316 = vmatpush1.bf16.xpose.msra.mxu0 0
      %1317 = vmatprep.mubr.bf16.mxu0 0
      %1318 = vmatmul.mubr.bf16.gmra.mrb[0].mxu0 %v1280
      %v1319 = vpop.f32.mrb[0].mxu0
      %v1320 = vadd.f32 0.0, %v1319
      %v1321 = vpop.f32.mrb[0].mxu0
      %v1322 = vpop.f32.mrb[0].mxu0
      %v1323 = vpop.f32.mrb[0].mxu0
      %1324 = vdwg.mxu0
      %v1325 = vsel %vm654, -3.535534e-21, %v1320
      %v1326 = vsel %vm601, %v1325, -inf
      %1327 = vmax.xlane.f32.xlu0 %v1326
      %v1328 = vpop.xlane.xlu0 %1327
      %v1329 = vsub.f32 -inf, %v1328
      %v1330 = vmul.f32 %v1329, 1.442695
      %v1331 = vpow.pop %v1330
      %v1332 = vsub.f32 %v1325, %v1328
      %v1333 = vmul.f32 %v1332, 1.442695
      %v1334 = vpow.pop %v1333
      %v1335 = vmul.f32 %v1331, 0.0
      %v1336 = vsel %vm601, %v1334, 0.0
      %1337 = vadd.xlane.f32.xlu0 %v1336
      %v1338 = vpop.xlane.xlu0 %1337
      %v1339 = vadd.f32 %v1335, %v1338
      %v1340 = vpack.c.bf16 %v1334, %v1334
      %v1341 = vpack.c.bf16 %v1273, %v1273
      %v1343 = vsel %vm601, %v1340, 0
      %v1346 = vsel %vm675, %v1341, 0
      %1348 = vmatprep.subr.bf16.mxu0 0
      %1349 = vmatpush1.bf16.msra.mxu0 %v1346
      %1350 = vmatprep.subr.bf16.mxu0 0
      %1351 = vmatpush1.bf16.msra.mxu0 0
      %1352 = vmatprep.subr.bf16.mxu0 0
      %1353 = vmatpush1.bf16.msra.mxu0 0
      %1354 = vmatprep.subr.bf16.mxu0 0
      %1355 = vmatpush1.bf16.msra.mxu0 0
      %1356 = vmatprep.subr.bf16.mxu0 0
      %1357 = vmatpush1.bf16.msra.mxu0 0
      %1358 = vmatprep.subr.bf16.mxu0 0
      %1359 = vmatpush1.bf16.msra.mxu0 0
      %1360 = vmatprep.subr.bf16.mxu0 0
      %1361 = vmatpush1.bf16.msra.mxu0 0
      %1362 = vmatprep.subr.bf16.mxu0 0
      %1363 = vmatpush1.bf16.msra.mxu0 0
      %1364 = vmatprep.subr.bf16.mxu0 0
      %1365 = vmatpush1.bf16.msra.mxu0 0
      %1366 = vmatprep.subr.bf16.mxu0 0
      %1367 = vmatpush1.bf16.msra.mxu0 0
      %1368 = vmatprep.subr.bf16.mxu0 0
      %1369 = vmatpush1.bf16.msra.mxu0 0
      %1370 = vmatprep.subr.bf16.mxu0 0
      %1371 = vmatpush1.bf16.msra.mxu0 0
      %1372 = vmatprep.subr.bf16.mxu0 0
      %1373 = vmatpush1.bf16.msra.mxu0 0
      %1374 = vmatprep.subr.bf16.mxu0 0
      %1375 = vmatpush1.bf16.msra.mxu0 0
      %1376 = vmatprep.subr.bf16.mxu0 0
      %1377 = vmatpush1.bf16.msra.mxu0 0
      %1378 = vmatprep.subr.bf16.mxu0 0
      %1379 = vmatpush1.bf16.msra.mxu0 0
      %1380 = vmatprep.mubr.bf16.mxu0 0
      %1381 = vmatmul.mubr.bf16.gmra.mrb[0].mxu0 %v1343
      %v1382 = vpop.f32.mrb[0].mxu0
      %v1383 = vadd.f32 0.0, %v1382
      %v1384 = vpop.f32.mrb[0].mxu0
      %v1385 = vpop.f32.mrb[0].mxu0
      %v1386 = vpop.f32.mrb[0].mxu0
      %1387 = vdwg.mxu0
      %v1388 = vadd.f32 %v1335, %v1383
      %v1389 = vrcp.pop %v1339
      %v1390 = vmul.f32 %v1388, %v1389
      %v1391 = vpack.c.bf16 %v1390, %v1390
      %s1392 = scalar_lea.vmem %s5, 8
      %v1393 = vld [vmem:[%s1392] sm:$0xf]
      %v1395 = vsel %vm601, %v1391, 0
      %v1398 = vsel %vm675, %v1393, 0
      %1400 = vmatprep.subr.bf16.mxu0 0
      %1401 = vmatpush1.bf16.msra.mxu0 %v1398
      %1402 = vmatprep.subr.bf16.mxu0 0
      %1403 = vmatpush1.bf16.msra.mxu0 0
      %1404 = vmatprep.subr.bf16.mxu0 0
      %1405 = vmatpush1.bf16.msra.mxu0 0
      %1406 = vmatprep.subr.bf16.mxu0 0
      %1407 = vmatpush1.bf16.msra.mxu0 0
      %1408 = vmatprep.subr.bf16.mxu0 0
      %1409 = vmatpush1.bf16.msra.mxu0 0
      %1410 = vmatprep.subr.bf16.mxu0 0
      %1411 = vmatpush1.bf16.msra.mxu0 0
      %1412 = vmatprep.subr.bf16.mxu0 0
      %1413 = vmatpush1.bf16.msra.mxu0 0
      %1414 = vmatprep.subr.bf16.mxu0 0
      %1415 = vmatpush1.bf16.msra.mxu0 0
      %1416 = vmatprep.subr.bf16.mxu0 0
      %1417 = vmatpush1.bf16.msra.mxu0 0
      %1418 = vmatprep.subr.bf16.mxu0 0
      %1419 = vmatpush1.bf16.msra.mxu0 0
      %1420 = vmatprep.subr.bf16.mxu0 0
      %1421 = vmatpush1.bf16.msra.mxu0 0
      %1422 = vmatprep.subr.bf16.mxu0 0
      %1423 = vmatpush1.bf16.msra.mxu0 0
      %1424 = vmatprep.subr.bf16.mxu0 0
      %1425 = vmatpush1.bf16.msra.mxu0 0
      %1426 = vmatprep.subr.bf16.mxu0 0
      %1427 = vmatpush1.bf16.msra.mxu0 0
      %1428 = vmatprep.subr.bf16.mxu0 0
      %1429 = vmatpush1.bf16.msra.mxu0 0
      %1430 = vmatprep.subr.bf16.mxu0 0
      %1431 = vmatpush1.bf16.msra.mxu0 0
      %1432 = vmatprep.mubr.bf16.mxu0 0
      %1433 = vmatmul.mubr.bf16.gmra.mrb[0].mxu0 %v1395
      %v1434 = vpop.f32.mrb[0].mxu0
      %v1435 = vadd.f32 0.0, %v1434
      %v1436 = vpop.f32.mrb[0].mxu0
      %v1437 = vpop.f32.mrb[0].mxu0
      %v1438 = vpop.f32.mrb[0].mxu0
      %1439 = vdwg.mxu0
      %v1440 = vadd.f32 %v1100, %v1435
      %s1441 = scalar_lea.vmem %s2, 48
      %v1442 = vld [vmem:[%s1441] sm:$0xf]
      %v1443 = vld [vmem:[%s1441 + $0x4] sm:$0xf]
      %v1444 = vld [vmem:[%s1441 + $0x8] sm:$0xf]
      %v1445 = vld [vmem:[%s1441 + $0xc] sm:$0xf]
      %v1450 = vunpack.c.l.b16 %v1442
      %v1451 = vunpack.c.l.b16 %v1443
      %v1452 = vunpack.c.l.b16 %v1444
      %v1453 = vunpack.c.l.b16 %v1445
      %v1454 = vpack.c.b16 %v1451, %v1450
      %v1455 = vpack.c.b16 %v1453, %v1452
      %1458 = vmatprep.subr.bf16.mxu0 0
      %1459 = vmatpush1.bf16.msra.mxu0 %v1454
      %1460 = vmatprep.subr.bf16.mxu0 0
      %1461 = vmatpush1.bf16.msra.mxu0 %v1455
      %1462 = vmatprep.subr.bf16.mxu0 0
      %1463 = vmatpush1.bf16.msra.mxu0 0
      %1464 = vmatprep.subr.bf16.mxu0 0
      %1465 = vmatpush1.bf16.msra.mxu0 0
      %1466 = vmatprep.subr.bf16.mxu0 0
      %1467 = vmatpush1.bf16.msra.mxu0 0
      %1468 = vmatprep.subr.bf16.mxu0 0
      %1469 = vmatpush1.bf16.msra.mxu0 0
      %1470 = vmatprep.subr.bf16.mxu0 0
      %1471 = vmatpush1.bf16.msra.mxu0 0
      %1472 = vmatprep.subr.bf16.mxu0 0
      %1473 = vmatpush1.bf16.msra.mxu0 0
      %1474 = vmatprep.subr.bf16.mxu0 0
      %1475 = vmatpush1.bf16.msra.mxu0 0
      %1476 = vmatprep.subr.bf16.mxu0 0
      %1477 = vmatpush1.bf16.msra.mxu0 0
      %1478 = vmatprep.subr.bf16.mxu0 0
      %1479 = vmatpush1.bf16.msra.mxu0 0
      %1480 = vmatprep.subr.bf16.mxu0 0
      %1481 = vmatpush1.bf16.msra.mxu0 0
      %1482 = vmatprep.subr.bf16.mxu0 0
      %1483 = vmatpush1.bf16.msra.mxu0 0
      %1484 = vmatprep.subr.bf16.mxu0 0
      %1485 = vmatpush1.bf16.msra.mxu0 0
      %1486 = vmatprep.subr.bf16.mxu0 0
      %1487 = vmatpush1.bf16.msra.mxu0 0
      %1488 = vmatprep.subr.bf16.mxu0 0
      %1489 = vmatpush1.bf16.msra.mxu0 0
      %1490 = vmatprep.mubr.bf16.mxu0 0
      %1491 = vmatmul.mubr.bf16.gmra.mrb[0].mxu0 %v441
      %v1492 = vpop.f32.mrb[0].mxu0
      %v1493 = vadd.f32 0.0, %v1492
      %v1494 = vpop.f32.mrb[0].mxu0
      %v1495 = vpop.f32.mrb[0].mxu0
      %v1496 = vpop.f32.mrb[0].mxu0
      %1497 = vdwg.mxu0
      %v1498 = vmul.f32 %v1493, 0.35355338
      %v1499 = vpack.c.bf16 %v1498, %v1498
      %s1500 = scalar_lea.vmem %s3, 48
      %v1501 = vld [vmem:[%s1500] sm:$0xf]
      %v1502 = vld [vmem:[%s1500 + $0x4] sm:$0xf]
      %v1503 = vld [vmem:[%s1500 + $0x8] sm:$0xf]
      %v1504 = vld [vmem:[%s1500 + $0xc] sm:$0xf]
      %v1509 = vunpack.c.l.b16 %v1501
      %v1510 = vunpack.c.l.b16 %v1502
      %v1511 = vunpack.c.l.b16 %v1503
      %v1512 = vunpack.c.l.b16 %v1504
      %v1513 = vpack.c.b16 %v1510, %v1509
      %v1514 = vpack.c.b16 %v1512, %v1511
      %1517 = vmatprep.subr.bf16.mxu0 0
      %1518 = vmatpush1.bf16.msra.mxu0 %v1513
      %1519 = vmatprep.subr.bf16.mxu0 0
      %1520 = vmatpush1.bf16.msra.mxu0 %v1514
      %1521 = vmatprep.subr.bf16.mxu0 0
      %1522 = vmatpush1.bf16.msra.mxu0 0
      %1523 = vmatprep.subr.bf16.mxu0 0
      %1524 = vmatpush1.bf16.msra.mxu0 0
      %1525 = vmatprep.subr.bf16.mxu0 0
      %1526 = vmatpush1.bf16.msra.mxu0 0
      %1527 = vmatprep.subr.bf16.mxu0 0
      %1528 = vmatpush1.bf16.msra.mxu0 0
      %1529 = vmatprep.subr.bf16.mxu0 0
      %1530 = vmatpush1.bf16.msra.mxu0 0
      %1531 = vmatprep.subr.bf16.mxu0 0
      %1532 = vmatpush1.bf16.msra.mxu0 0
      %1533 = vmatprep.subr.bf16.mxu0 0
      %1534 = vmatpush1.bf16.msra.mxu0 0
      %1535 = vmatprep.subr.bf16.mxu0 0
      %1536 = vmatpush1.bf16.msra.mxu0 0
      %1537 = vmatprep.subr.bf16.mxu0 0
      %1538 = vmatpush1.bf16.msra.mxu0 0
      %1539 = vmatprep.subr.bf16.mxu0 0
      %1540 = vmatpush1.bf16.msra.mxu0 0
      %1541 = vmatprep.subr.bf16.mxu0 0
      %1542 = vmatpush1.bf16.msra.mxu0 0
      %1543 = vmatprep.subr.bf16.mxu0 0
      %1544 = vmatpush1.bf16.msra.mxu0 0
      %1545 = vmatprep.subr.bf16.mxu0 0
      %1546 = vmatpush1.bf16.msra.mxu0 0
      %1547 = vmatprep.subr.bf16.mxu0 0
      %1548 = vmatpush1.bf16.msra.mxu0 0
      %1549 = vmatprep.mubr.bf16.mxu0 0
      %1550 = vmatmul.mubr.bf16.gmra.mrb[0].mxu0 %v502
      %v1551 = vpop.f32.mrb[0].mxu0
      %v1552 = vadd.f32 0.0, %v1551
      %v1553 = vpop.f32.mrb[0].mxu0
      %v1554 = vpop.f32.mrb[0].mxu0
      %v1555 = vpop.f32.mrb[0].mxu0
      %1556 = vdwg.mxu0
      %s1557 = scalar_lea.vmem %s4, 48
      %v1558 = vld [vmem:[%s1557] sm:$0xf]
      %v1559 = vld [vmem:[%s1557 + $0x4] sm:$0xf]
      %v1560 = vld [vmem:[%s1557 + $0x8] sm:$0xf]
      %v1561 = vld [vmem:[%s1557 + $0xc] sm:$0xf]
      %v1566 = vunpack.c.l.b16 %v1558
      %v1567 = vunpack.c.l.b16 %v1559
      %v1568 = vunpack.c.l.b16 %v1560
      %v1569 = vunpack.c.l.b16 %v1561
      %v1570 = vpack.c.b16 %v1567, %v1566
      %v1571 = vpack.c.b16 %v1569, %v1568
      %1574 = vmatprep.subr.bf16.mxu0 0
      %1575 = vmatpush1.bf16.msra.mxu0 %v1570
      %1576 = vmatprep.subr.bf16.mxu0 0
      %1577 = vmatpush1.bf16.msra.mxu0 %v1571
      %1578 = vmatprep.subr.bf16.mxu0 0
      %1579 = vmatpush1.bf16.msra.mxu0 0
      %1580 = vmatprep.subr.bf16.mxu0 0
      %1581 = vmatpush1.bf16.msra.mxu0 0
      %1582 = vmatprep.subr.bf16.mxu0 0
      %1583 = vmatpush1.bf16.msra.mxu0 0
      %1584 = vmatprep.subr.bf16.mxu0 0
      %1585 = vmatpush1.bf16.msra.mxu0 0
      %1586 = vmatprep.subr.bf16.mxu0 0
      %1587 = vmatpush1.bf16.msra.mxu0 0
      %1588 = vmatprep.subr.bf16.mxu0 0
      %1589 = vmatpush1.bf16.msra.mxu0 0
      %1590 = vmatprep.subr.bf16.mxu0 0
      %1591 = vmatpush1.bf16.msra.mxu0 0
      %1592 = vmatprep.subr.bf16.mxu0 0
      %1593 = vmatpush1.bf16.msra.mxu0 0
      %1594 = vmatprep.subr.bf16.mxu0 0
      %1595 = vmatpush1.bf16.msra.mxu0 0
      %1596 = vmatprep.subr.bf16.mxu0 0
      %1597 = vmatpush1.bf16.msra.mxu0 0
      %1598 = vmatprep.subr.bf16.mxu0 0
      %1599 = vmatpush1.bf16.msra.mxu0 0
      %1600 = vmatprep.subr.bf16.mxu0 0
      %1601 = vmatpush1.bf16.msra.mxu0 0
      %1602 = vmatprep.subr.bf16.mxu0 0
      %1603 = vmatpush1.bf16.msra.mxu0 0
      %1604 = vmatprep.subr.bf16.mxu0 0
      %1605 = vmatpush1.bf16.msra.mxu0 0
      %1606 = vmatprep.mubr.bf16.mxu0 0
      %1607 = vmatmul.mubr.bf16.gmra.mrb[0].mxu0 %v502
      %v1608 = vpop.f32.mrb[0].mxu0
      %v1609 = vadd.f32 0.0, %v1608
      %v1610 = vpop.f32.mrb[0].mxu0
      %v1611 = vpop.f32.mrb[0].mxu0
      %v1612 = vpop.f32.mrb[0].mxu0
      %1613 = vdwg.mxu0
      %v1614 = vpack.c.bf16 %v1552, %v1552
      %v1616 = vsel %vm601, %v1499, 0
      %v1619 = vsel %vm601, %v1614, 0
      %1621 = vmatprep.subr.bf16.mxu0 0
      %1622 = vmatpush1.bf16.xpose.msra.mxu0 %v1619
      %1623 = vmatprep.subr.bf16.mxu0 0
      %1624 = vmatpush1.bf16.xpose.msra.mxu0 0
      %1625 = vmatprep.subr.bf16.mxu0 0
      %1626 = vmatpush1.bf16.xpose.msra.mxu0 0
      %1627 = vmatprep.subr.bf16.mxu0 0
      %1628 = vmatpush1.bf16.xpose.msra.mxu0 0
      %1629 = vmatprep.subr.bf16.mxu0 0
      %1630 = vmatpush1.bf16.xpose.msra.mxu0 0
      %1631 = vmatprep.subr.bf16.mxu0 0
      %1632 = vmatpush1.bf16.xpose.msra.mxu0 0
      %1633 = vmatprep.subr.bf16.mxu0 0
      %1634 = vmatpush1.bf16.xpose.msra.mxu0 0
      %1635 = vmatprep.subr.bf16.mxu0 0
      %1636 = vmatpush1.bf16.xpose.msra.mxu0 0
      %1637 = vmatprep.subr.bf16.mxu0 0
      %1638 = vmatpush1.bf16.xpose.msra.mxu0 0
      %1639 = vmatprep.subr.bf16.mxu0 0
      %1640 = vmatpush1.bf16.xpose.msra.mxu0 0
      %1641 = vmatprep.subr.bf16.mxu0 0
      %1642 = vmatpush1.bf16.xpose.msra.mxu0 0
      %1643 = vmatprep.subr.bf16.mxu0 0
      %1644 = vmatpush1.bf16.xpose.msra.mxu0 0
      %1645 = vmatprep.subr.bf16.mxu0 0
      %1646 = vmatpush1.bf16.xpose.msra.mxu0 0
      %1647 = vmatprep.subr.bf16.mxu0 0
      %1648 = vmatpush1.bf16.xpose.msra.mxu0 0
      %1649 = vmatprep.subr.bf16.mxu0 0
      %1650 = vmatpush1.bf16.xpose.msra.mxu0 0
      %1651 = vmatprep.subr.bf16.mxu0 0
      %1652 = vmatpush1.bf16.xpose.msra.mxu0 0
      %1653 = vmatprep.mubr.bf16.mxu0 0
      %1654 = vmatmul.mubr.bf16.gmra.mrb[0].mxu0 %v1616
      %v1655 = vpop.f32.mrb[0].mxu0
      %v1656 = vadd.f32 0.0, %v1655
      %v1657 = vpop.f32.mrb[0].mxu0
      %v1658 = vpop.f32.mrb[0].mxu0
      %v1659 = vpop.f32.mrb[0].mxu0
      %1660 = vdwg.mxu0
      %v1661 = vsel %vm654, -3.535534e-21, %v1656
      %v1662 = vsel %vm601, %v1661, -inf
      %1663 = vmax.xlane.f32.xlu0 %v1662
      %v1664 = vpop.xlane.xlu0 %1663
      %v1665 = vsub.f32 -inf, %v1664
      %v1666 = vmul.f32 %v1665, 1.442695
      %v1667 = vpow.pop %v1666
      %v1668 = vsub.f32 %v1661, %v1664
      %v1669 = vmul.f32 %v1668, 1.442695
      %v1670 = vpow.pop %v1669
      %v1671 = vmul.f32 %v1667, 0.0
      %v1672 = vsel %vm601, %v1670, 0.0
      %1673 = vadd.xlane.f32.xlu0 %v1672
      %v1674 = vpop.xlane.xlu0 %1673
      %v1675 = vadd.f32 %v1671, %v1674
      %v1676 = vpack.c.bf16 %v1670, %v1670
      %v1677 = vpack.c.bf16 %v1609, %v1609
      %v1679 = vsel %vm601, %v1676, 0
      %v1682 = vsel %vm675, %v1677, 0
      %1684 = vmatprep.subr.bf16.mxu0 0
      %1685 = vmatpush1.bf16.msra.mxu0 %v1682
      %1686 = vmatprep.subr.bf16.mxu0 0
      %1687 = vmatpush1.bf16.msra.mxu0 0
      %1688 = vmatprep.subr.bf16.mxu0 0
      %1689 = vmatpush1.bf16.msra.mxu0 0
      %1690 = vmatprep.subr.bf16.mxu0 0
      %1691 = vmatpush1.bf16.msra.mxu0 0
      %1692 = vmatprep.subr.bf16.mxu0 0
      %1693 = vmatpush1.bf16.msra.mxu0 0
      %1694 = vmatprep.subr.bf16.mxu0 0
      %1695 = vmatpush1.bf16.msra.mxu0 0
      %1696 = vmatprep.subr.bf16.mxu0 0
      %1697 = vmatpush1.bf16.msra.mxu0 0
      %1698 = vmatprep.subr.bf16.mxu0 0
      %1699 = vmatpush1.bf16.msra.mxu0 0
      %1700 = vmatprep.subr.bf16.mxu0 0
      %1701 = vmatpush1.bf16.msra.mxu0 0
      %1702 = vmatprep.subr.bf16.mxu0 0
      %1703 = vmatpush1.bf16.msra.mxu0 0
      %1704 = vmatprep.subr.bf16.mxu0 0
      %1705 = vmatpush1.bf16.msra.mxu0 0
      %1706 = vmatprep.subr.bf16.mxu0 0
      %1707 = vmatpush1.bf16.msra.mxu0 0
      %1708 = vmatprep.subr.bf16.mxu0 0
      %1709 = vmatpush1.bf16.msra.mxu0 0
      %1710 = vmatprep.subr.bf16.mxu0 0
      %1711 = vmatpush1.bf16.msra.mxu0 0
      %1712 = vmatprep.subr.bf16.mxu0 0
      %1713 = vmatpush1.bf16.msra.mxu0 0
      %1714 = vmatprep.subr.bf16.mxu0 0
      %1715 = vmatpush1.bf16.msra.mxu0 0
      %1716 = vmatprep.mubr.bf16.mxu0 0
      %1717 = vmatmul.mubr.bf16.gmra.mrb[0].mxu0 %v1679
      %v1718 = vpop.f32.mrb[0].mxu0
      %v1719 = vadd.f32 0.0, %v1718
      %v1720 = vpop.f32.mrb[0].mxu0
      %v1721 = vpop.f32.mrb[0].mxu0
      %v1722 = vpop.f32.mrb[0].mxu0
      %1723 = vdwg.mxu0
      %v1724 = vadd.f32 %v1671, %v1719
      %v1725 = vrcp.pop %v1675
      %v1726 = vmul.f32 %v1724, %v1725
      %v1727 = vpack.c.bf16 %v1726, %v1726
      %s1728 = scalar_lea.vmem %s5, 12
      %v1729 = vld [vmem:[%s1728] sm:$0xf]
      %v1731 = vsel %vm601, %v1727, 0
      %v1734 = vsel %vm675, %v1729, 0
      %1736 = vmatprep.subr.bf16.mxu0 0
      %1737 = vmatpush1.bf16.msra.mxu0 %v1734
      %1738 = vmatprep.subr.bf16.mxu0 0
      %1739 = vmatpush1.bf16.msra.mxu0 0
      %1740 = vmatprep.subr.bf16.mxu0 0
      %1741 = vmatpush1.bf16.msra.mxu0 0
      %1742 = vmatprep.subr.bf16.mxu0 0
      %1743 = vmatpush1.bf16.msra.mxu0 0
      %1744 = vmatprep.subr.bf16.mxu0 0
      %1745 = vmatpush1.bf16.msra.mxu0 0
      %1746 = vmatprep.subr.bf16.mxu0 0
      %1747 = vmatpush1.bf16.msra.mxu0 0
      %1748 = vmatprep.subr.bf16.mxu0 0
      %1749 = vmatpush1.bf16.msra.mxu0 0
      %1750 = vmatprep.subr.bf16.mxu0 0
      %1751 = vmatpush1.bf16.msra.mxu0 0
      %1752 = vmatprep.subr.bf16.mxu0 0
      %1753 = vmatpush1.bf16.msra.mxu0 0
      %1754 = vmatprep.subr.bf16.mxu0 0
      %1755 = vmatpush1.bf16.msra.mxu0 0
      %1756 = vmatprep.subr.bf16.mxu0 0
      %1757 = vmatpush1.bf16.msra.mxu0 0
      %1758 = vmatprep.subr.bf16.mxu0 0
      %1759 = vmatpush1.bf16.msra.mxu0 0
      %1760 = vmatprep.subr.bf16.mxu0 0
      %1761 = vmatpush1.bf16.msra.mxu0 0
      %1762 = vmatprep.subr.bf16.mxu0 0
      %1763 = vmatpush1.bf16.msra.mxu0 0
      %1764 = vmatprep.subr.bf16.mxu0 0
      %1765 = vmatpush1.bf16.msra.mxu0 0
      %1766 = vmatprep.subr.bf16.mxu0 0
      %1767 = vmatpush1.bf16.msra.mxu0 0
      %1768 = vmatprep.mubr.bf16.mxu0 0
      %1769 = vmatmul.mubr.bf16.gmra.mrb[0].mxu0 %v1731
      %v1770 = vpop.f32.mrb[0].mxu0
      %v1771 = vadd.f32 0.0, %v1770
      %v1772 = vpop.f32.mrb[0].mxu0
      %v1773 = vpop.f32.mrb[0].mxu0
      %v1774 = vpop.f32.mrb[0].mxu0
      %1775 = vdwg.mxu0
      %v1776 = vadd.f32 %v1440, %v1771
      %v1777 = vld [vmem:[%s6] sm:$0x1]
      %v1779 = vlaneseq
      %v1780 = vshrl.u32 %v1779, 7
      %v1781 = vsub.s32 0, %v1780
      %v1782 = vrot.slane %v1777, %v1781
      %v1784 = vadd.f32 %v1776, %v1782
      %v1785 = vunpack.c.l.bf16 %v418
      %v1786 = vadd.f32 %v1784, %v1785
      %v1787 = vld [vmem:[%s8] sm:$0x1]
      %v1788 = vld [vmem:[%s9] sm:$0x1]
      %v1789 = vsel %vm439, %v1786, 0.0
      %1790 = vadd.xlane.f32.xlu0 %v1789
      %v1791 = vpop.xlane.xlu0 %1790
      %v1792 = vrcp.pop 32.0
      %v1793 = vmul.f32 %v1791, %v1792
      %v1794 = vsub.f32 %v1786, %v1793
      %v1795 = vmul.f32 %v1794, %v1794
      %v1796 = vsel %vm439, %v1795, 0.0
      %1797 = vadd.xlane.f32.xlu0 %v1796
      %v1798 = vpop.xlane.xlu0 %1797
      %v1799 = vmul.f32 %v1798, %v1792
      %v1800 = vadd.f32 %v1799, 1e-05
      %v1801 = vrsqrt.pop %v1800
      %v1802 = vmul.f32 %v1794, %v1801
      %v1804 = vlaneseq
      %v1805 = vshrl.u32 %v1804, 7
      %v1806 = vsub.s32 0, %v1805
      %v1807 = vrot.slane %v1787, %v1806
      %v1809 = vmul.f32 %v1802, %v1807
      %v1811 = vlaneseq
      %v1812 = vshrl.u32 %v1811, 7
      %v1813 = vsub.s32 0, %v1812
      %v1814 = vrot.slane %v1788, %v1813
      %v1816 = vadd.f32 %v1809, %v1814
      %v1817 = vpack.c.bf16 %v1816, %v1816
      %vm1818 = vcmask 257024
      %1819 = vst.msk [vmem:[%s416] sm:$0xf] %vm1818, %v1817
      %p1820 = scmp.lt.s32.totalorder %s25, 1
      %s1821 = scalar_select %p1820, %s25, 1
      %p1822 = scmp.lt.s32.totalorder %s26, 0
      %s1823 = scalar_select %p1822, %s26, 0
      %s1824 = sadd.s32 %s1823, %s1821
      %s1825 = smul.addr %s1824, 4
      %s1826 = scalar_lea.vmem %s10, %s1825
      // Predicated region
      $region61: #{decoder_forward.8} parent=59 // pred_check
        %p1827 = pneg %p280
      $region62: #{decoder_forward.8} parent=59 // pred_check_branch
        %1829 = sbr.rel (%p1827) target = $region64
      $region63: #{decoder_forward.8} parent=59 // pred_region
        _
      $region64: #{decoder_forward.8} parent=59 // pred_fallthru
        _
    $region60: #{decoder_forward.8} parent=5 // pred_fallthru
      _
    %p1830 = scmp.le.s32.totalorder 2, %s16
    // Predicated region
    $region65: #{decoder_forward.8} parent=5 // pred_check
      %p1831 = pneg %p1830
    $region66: #{decoder_forward.8} parent=5 // pred_check_branch
      %1833 = sbr.rel (%p1831) target = $region68
    $region67: #{decoder_forward.8} parent=5 // pred_region
      %s1834 = ssub.s32 %s16, 2
      // Predicated region
      $region69: #{decoder_forward.8} parent=67 // pred_check
        %p1835 = pneg %p286
      $region70: #{decoder_forward.8} parent=67 // pred_check_branch
        %1837 = sbr.rel (%p1835) target = $region72
      $region71: #{decoder_forward.8} parent=67 // pred_region
        %p1838 = scmp.lt.s32.totalorder %s27, 1
        %s1839 = scalar_select %p1838, %s27, 1
        %p1840 = scmp.lt.s32.totalorder %s28, 0
        %s1841 = scalar_select %p1840, %s28, 0
        %s1842 = sadd.s32 %s1841, %s1839
        %s1843 = smul.addr %s1842, 4
        %s1844 = scalar_lea.vmem %s10, %s1843
      $region72: #{decoder_forward.8} parent=67 // pred_fallthru
        _
    $region68: #{decoder_forward.8} parent=5 // pred_fallthru
      _
  $region6: #{decoder_forward.8} parent=0 // loop_footer
    %s20 = sadd.s32 1, %s16
  $region7: #{decoder_forward.8} parent=0 // loop_footer_branch
    %15 = sbr.rel target = $region3
  $region8: #{decoder_forward.8} parent=0 // loop_exit
    _

</llo_original>
